<compile_context>
chip_gen: v5e
topology: v5e:2x2
jax: 0.10.0
libtpu: 0.0.40
codegen_flags: <defaults>
</compile_context>

<pallas_src>
import jax
import jax.numpy as jnp
from jax.experimental import pallas as pl
from jax.experimental.pallas import tpu as pltpu


# ----------------------------------------------------------------------------
# in-kernel helpers
# ----------------------------------------------------------------------------
def _dense(h, w_ref, b_ref, relu=True):
    """h @ W + b with bf16-stored weights upcast to f32 and f32 MXU accumulation."""
    w = w_ref[...].astype(jnp.float32)
    y = jnp.dot(h, w, preferred_element_type=jnp.float32) + b_ref[...]
    return jnp.maximum(y, 0.0) if relu else y


def _chunk_max(h, tb, ch):
    """Per-example max over this chunk's CH points: (TB*CH, C) -> (TB, C)."""
    return jnp.concatenate(
        [jnp.max(h[t * ch:(t + 1) * ch, :], axis=0, keepdims=True) for t in range(tb)],
        axis=0)


# ----------------------------------------------------------------------------
# kernel 1: STN3d  (convs + online max pool + FCs -> flattened 3x3 transform)
# ----------------------------------------------------------------------------
def stn3d_kernel(x_ref,
                 w1_ref, b1_ref, w2_ref, b2_ref, w3_ref, b3_ref,
                 w4_ref, b4_ref, w5_ref, b5_ref, w6_ref, b6_ref,
                 trans_ref, pool_ref):
    j = pl.program_id(1)
    tb, ch, _ = x_ref.shape

    @pl.when(j == 0)
    def _init():
        pool_ref[...] = jnp.full(pool_ref.shape, -jnp.inf, dtype=pool_ref.dtype)

    # conv1/2/3 (+ folded BN) + ReLU on this chunk of points
    x2 = jnp.concatenate([x_ref[t] for t in range(tb)], axis=0)        # (TB*CH, 3)
    h = _dense(x2, w1_ref, b1_ref)                                     # (TB*CH, 64)
    h = _dense(h, w2_ref, b2_ref)                                      # (TB*CH, 128)
    h = _dense(h, w3_ref, b3_ref)                                      # (TB*CH, 1024)

    pool_ref[...] = jnp.maximum(pool_ref[...], _chunk_max(h, tb, ch))  # online max

    @pl.when(j == pl.num_programs(1) - 1)
    def _finish():
        f = _dense(pool_ref[...], w4_ref, b4_ref)                      # fc1+bn4+relu
        f = _dense(f, w5_ref, b5_ref)                                  # fc2+bn5+relu
        trans_ref[...] = _dense(f, w6_ref, b6_ref, relu=False)         # fc3 (+I in bias)


# ----------------------------------------------------------------------------
# kernel 2: input transform + PointNetfeat convs + max pool + regression head
# ----------------------------------------------------------------------------
def feat_head_kernel(x_ref, trans_ref,
                     w1_ref, b1_ref, w2_ref, b2_ref, w3_ref, b3_ref,
                     w4_ref, b4_ref, w5_ref, b5_ref, w6_ref, b6_ref,
                     out_ref, pool_ref):
    j = pl.program_id(1)
    tb, ch, _ = x_ref.shape

    @pl.when(j == 0)
    def _init():
        pool_ref[...] = jnp.full(pool_ref.shape, -jnp.inf, dtype=pool_ref.dtype)

    # per-example 3x3 transform folded into conv1: (x @ T) @ W1 == x @ (T @ W1)
    tr = trans_ref[...]                                                # (TB, 3, 3) f32
    w1 = w1_ref[...].astype(jnp.float32)                               # (3, 64)
    parts = []
    for t in range(tb):
        w1_t = jnp.dot(tr[t], w1, preferred_element_type=jnp.float32)  # (3, 64)
        parts.append(jnp.dot(x_ref[t], w1_t,
                             preferred_element_type=jnp.float32))      # (CH, 64)
    h = jnp.maximum(jnp.concatenate(parts, axis=0) + b1_ref[...], 0.0)  # conv1+bn1+relu
    h = _dense(h, w2_ref, b2_ref)                                      # conv2+bn2+relu
    h = _dense(h, w3_ref, b3_ref, relu=False)                          # conv3+bn3 (no relu)

    pool_ref[...] = jnp.maximum(pool_ref[...], _chunk_max(h, tb, ch))  # online max

    @pl.when(j == pl.num_programs(1) - 1)
    def _finish():
        c = _dense(pool_ref[...], w4_ref, b4_ref)                      # fc1+bn1+relu
        # TODO(synk): training-mode Dropout(p=0.3) would need pltpu.prng_* masking;
        #             inference treats it as identity.
        c = _dense(c, w5_ref, b5_ref)                                  # fc2+(drop=id)+bn2+relu
        out_ref[...] = _dense(c, w6_ref, b6_ref, relu=False)           # fused fc3/fc4/fc5


# ----------------------------------------------------------------------------
# wrapper
# ----------------------------------------------------------------------------
def pointnet_cylinder_forward(x_ncw, p, *, point_chunk=None, batch_tile=None):
    """x_ncw: (B, 3, N) float32 (PyTorch Conv1d layout). Returns (normal, center, radius)."""
    B, C, N = x_ncw.shape
    assert C == 3
    x = jnp.transpose(x_ncw, (0, 2, 1))                                # (B, N, 3)

    TB = batch_tile if batch_tile is not None else (B if B <= 8 else 8)
    CH = point_chunk if point_chunk is not None else min(N, 512)
    assert B % TB == 0 and (TB == B or TB % 8 == 0)
    assert N % CH == 0 and (CH == N or CH % 8 == 0)
    grid = (B // TB, N // CH)

    cparams = pltpu.CompilerParams(dimension_semantics=("parallel", "arbitrary"))

    def nbytes(*arrs):
        return int(sum(a.size * a.dtype.itemsize for a in arrs))

    # ------------------------- STN3d: per-example 3x3 ------------------------
    stn_w = [p["s1_w"], p["s1_b"], p["s2_w"], p["s2_b"], p["s3_w"], p["s3_b"],
             p["s4_w"], p["s4_b"], p["s5_w"], p["s5_b"], p["s6_w"], p["s6_b"]]
    flops_stn = (2 * B * N * (3 * 64 + 64 * 128 + 128 * 1024)
                 + 2 * B * (1024 * 512 + 512 * 256 + 256 * 9))
    trans_flat = pl.pallas_call(
        stn3d_kernel,
        out_shape=jax.ShapeDtypeStruct((B, 9), jnp.float32),
        grid=grid,
        in_specs=[pl.BlockSpec((TB, CH, 3), lambda i, j: (i, j, 0))]
        + [pl.BlockSpec(memory_space=pltpu.MemorySpace.VMEM) for _ in stn_w],
        out_specs=pl.BlockSpec((TB, 9), lambda i, j: (i, 0)),
        scratch_shapes=[pltpu.VMEM((TB, 1024), jnp.float32)],
        compiler_params=cparams,
        cost_estimate=pl.CostEstimate(flops=flops_stn, transcendentals=0,
                                      bytes_accessed=nbytes(x, *stn_w) + B * 9 * 4),
    )(x, *stn_w)
    trans = trans_flat.reshape(B, 3, 3)

    # ---------- transform + PointNetfeat + max pool + regression head --------
    feat_w = [p["f1_w"], p["f1_b"], p["f2_w"], p["f2_b"], p["f3_w"], p["f3_b"],
              p["h1_w"], p["h1_b"], p["h2_w"], p["h2_b"], p["hd_w"], p["hd_b"]]
    flops_feat = (2 * B * N * (3 * 3 + 3 * 64 + 64 * 128 + 128 * 1024)
                  + 2 * B * (1024 * 512 + 512 * 256 + 256 * 7))
    out7 = pl.pallas_call(
        feat_head_kernel,
        out_shape=jax.ShapeDtypeStruct((B, 7), jnp.float32),
        grid=grid,
        in_specs=[pl.BlockSpec((TB, CH, 3), lambda i, j: (i, j, 0)),
                  pl.BlockSpec((TB, 3, 3), lambda i, j: (i, 0, 0))]
        + [pl.BlockSpec(memory_space=pltpu.MemorySpace.VMEM) for _ in feat_w],
        out_specs=pl.BlockSpec((TB, 7), lambda i, j: (i, 0)),
        scratch_shapes=[pltpu.VMEM((TB, 1024), jnp.float32)],
        compiler_params=cparams,
        cost_estimate=pl.CostEstimate(flops=flops_feat, transcendentals=0,
                                      bytes_accessed=nbytes(x, trans, *feat_w) + B * 7 * 4),
    )(x, trans, *feat_w)

    normal = out7[:, 0:3]
    center = out7[:, 3:6]
    radius = out7[:, 6:7]
    return normal, center, radius


# ----------------------------------------------------------------------------
# deterministic parameter construction (BN folded, heads fused, bf16 weights)
# ----------------------------------------------------------------------------
def _fold_bn(w, b, g, beta, mean, var, eps=1e-5):
    """Fold inference BatchNorm into an (out, in) layer -> ((in, out) bf16, (1, out) f32)."""
    s = g / jnp.sqrt(var + eps)
    w_eff = (w * s[:, None]).T
    b_eff = (b - mean) * s + beta
    return w_eff.astype(jnp.bfloat16), b_eff[None, :].astype(jnp.float32)


def make_params(key):
    keys = list(jax.random.split(key, 80))
    it = iter(keys)

    def lin(out_c, in_c):
        w = 0.05 * jax.random.normal(next(it), (out_c, in_c), jnp.float32)
        b = 0.05 * jax.random.normal(next(it), (out_c,), jnp.float32)
        return w, b

    def bn(c):
        g = 1.0 + 0.1 * jax.random.normal(next(it), (c,), jnp.float32)
        beta = 0.1 * jax.random.normal(next(it), (c,), jnp.float32)
        mean = 0.1 * jax.random.normal(next(it), (c,), jnp.float32)
        var = 1.0 + 0.1 * jnp.abs(jax.random.normal(next(it), (c,), jnp.float32))
        return g, beta, mean, var

    p = {}
    # STN3d: conv1..3 and fc1..2 with folded BN; fc3 with the identity folded into bias
    for name, (oc, ic) in zip(("s1", "s2", "s3", "s4", "s5"),
                              ((64, 3), (128, 64), (1024, 128), (512, 1024), (256, 512))):
        w, b = lin(oc, ic)
        p[name + "_w"], p[name + "_b"] = _fold_bn(w, b, *bn(oc))
    w, b = lin(9, 256)
    p["s6_w"] = w.T.astype(jnp.bfloat16)
    p["s6_b"] = (b + jnp.eye(3, dtype=jnp.float32).reshape(-1))[None, :].astype(jnp.float32)

    # PointNetfeat convs (BN folded; conv3 has no ReLU but BN still folds)
    for name, (oc, ic) in zip(("f1", "f2", "f3"), ((64, 3), (128, 64), (1024, 128))):
        w, b = lin(oc, ic)
        p[name + "_w"], p[name + "_b"] = _fold_bn(w, b, *bn(oc))

    # regression head: fc1+bn1, fc2+bn2, fused fc3/fc4/fc5 -> (256, 7)
    for name, (oc, ic) in zip(("h1", "h2"), ((512, 1024), (256, 512))):
        w, b = lin(oc, ic)
        p[name + "_w"], p[name + "_b"] = _fold_bn(w, b, *bn(oc))
    w3, b3 = lin(3, 256)
    w4, b4 = lin(3, 256)
    w5, b5 = lin(1, 256)
    p["hd_w"] = jnp.concatenate([w3.T, w4.T, w5.T], axis=1).astype(jnp.bfloat16)   # (256, 7)
    p["hd_b"] = jnp.concatenate([b3, b4, b5])[None, :].astype(jnp.float32)         # (1, 7)
    return p


# ----------------------------------------------------------------------------
# pure-JAX reference (f32, same folded weights)
# ----------------------------------------------------------------------------
def pointnet_cylinder_reference(x_ncw, p):
    f32 = lambda a: a.astype(jnp.float32)
    relu = lambda a: jnp.maximum(a, 0.0)
    x = jnp.transpose(x_ncw, (0, 2, 1))                                # (B, N, 3)
    B = x.shape[0]

    # STN3d
    h = relu(x @ f32(p["s1_w"]) + p["s1_b"])
    h = relu(h @ f32(p["s2_w"]) + p["s2_b"])
    h = relu(h @ f32(p["s3_w"]) + p["s3_b"])
    g = jnp.max(h, axis=1)
    g = relu(g @ f32(p["s4_w"]) + p["s4_b"])
    g = relu(g @ f32(p["s5_w"]) + p["s5_b"])
    trans = (g @ f32(p["s6_w"]) + p["s6_b"]).reshape(B, 3, 3)

    # PointNetfeat (global_feat=True, feature_transform=False)
    xt = jnp.einsum("bnc,bcd->bnd", x, trans)
    h = relu(xt @ f32(p["f1_w"]) + p["f1_b"])
    h = relu(h @ f32(p["f2_w"]) + p["f2_b"])
    h = h @ f32(p["f3_w"]) + p["f3_b"]                                 # no ReLU
    feat = jnp.max(h, axis=1)

    # regression head (dropout = identity in eval)
    c = relu(feat @ f32(p["h1_w"]) + p["h1_b"])
    c = relu(c @ f32(p["h2_w"]) + p["h2_b"])
    out = c @ f32(p["hd_w"]) + p["hd_b"]
    return out[:, 0:3], out[:, 3:6], out[:, 6:7]


if __name__ == "__main__":
    B, N = 2, 128                                                      # small demo shapes
    key = jax.random.PRNGKey(0)
    kx, kp = jax.random.split(key)
    x = jax.random.normal(kx, (B, 3, N), jnp.float32)                  # NCW, like PyTorch
    params = make_params(kp)

    # point_chunk=64 -> two point chunks per example, exercising the online max path
    normal, center, radius = pointnet_cylinder_forward(x, params, point_chunk=64)
    normal, center, radius = jax.block_until_ready((normal, center, radius))

    rn, rc, rr = pointnet_cylinder_reference(x, params)
    assert normal.shape == (B, 3) and center.shape == (B, 3) and radius.shape == (B, 1)
    for got, ref in ((normal, rn), (center, rc), (radius, rr)):
        assert jnp.allclose(got, ref, atol=1e-3, rtol=1e-3), "mismatch vs JAX reference"

    print("KERNEL_OK")
</pallas_src>

<mosaic_0001>
module attributes {stable_mosaic.version = 11 : i64} {
  func.func @stn3d_kernel(%arg0: i32, %arg1: i32, %arg2: memref<2x64x3xf32, #tpu.memory_space<vmem>>, %arg3: memref<3x64xbf16, #tpu.memory_space<vmem>>, %arg4: memref<1x64xf32, #tpu.memory_space<vmem>>, %arg5: memref<64x128xbf16, #tpu.memory_space<vmem>>, %arg6: memref<1x128xf32, #tpu.memory_space<vmem>>, %arg7: memref<128x1024xbf16, #tpu.memory_space<vmem>>, %arg8: memref<1x1024xf32, #tpu.memory_space<vmem>>, %arg9: memref<1024x512xbf16, #tpu.memory_space<vmem>>, %arg10: memref<1x512xf32, #tpu.memory_space<vmem>>, %arg11: memref<512x256xbf16, #tpu.memory_space<vmem>>, %arg12: memref<1x256xf32, #tpu.memory_space<vmem>>, %arg13: memref<256x9xbf16, #tpu.memory_space<vmem>>, %arg14: memref<1x9xf32, #tpu.memory_space<vmem>>, %arg15: memref<2x9xf32, #tpu.memory_space<vmem>>, %arg16: memref<2x1024xf32, #tpu.memory_space<vmem>>) attributes {dimension_semantics = [#tpu.dimension_semantics<parallel>, #tpu.dimension_semantics<arbitrary>], iteration_bounds = array<i64: 1, 2>, scalar_prefetch = 0 : i64, scratch_operands = 1 : i64, tpu.core_type = #tpu.core_type<tc>, window_params = [{transform_indices = @transform_0, window_bounds = array<i64: 2, 64, 3>}, {pipeline_mode = #tpu.pipeline_mode<synchronous>, transform_indices = @transform_1, window_bounds = array<i64: 3, 64>}, {pipeline_mode = #tpu.pipeline_mode<synchronous>, transform_indices = @transform_2, window_bounds = array<i64: 1, 64>}, {pipeline_mode = #tpu.pipeline_mode<synchronous>, transform_indices = @transform_3, window_bounds = array<i64: 64, 128>}, {pipeline_mode = #tpu.pipeline_mode<synchronous>, transform_indices = @transform_4, window_bounds = array<i64: 1, 128>}, {pipeline_mode = #tpu.pipeline_mode<synchronous>, transform_indices = @transform_5, window_bounds = array<i64: 128, 1024>}, {pipeline_mode = #tpu.pipeline_mode<synchronous>, transform_indices = @transform_6, window_bounds = array<i64: 1, 1024>}, {pipeline_mode = #tpu.pipeline_mode<synchronous>, transform_indices = @transform_7, window_bounds = array<i64: 1024, 512>}, {pipeline_mode = #tpu.pipeline_mode<synchronous>, transform_indices = @transform_8, window_bounds = array<i64: 1, 512>}, {pipeline_mode = #tpu.pipeline_mode<synchronous>, transform_indices = @transform_9, window_bounds = array<i64: 512, 256>}, {pipeline_mode = #tpu.pipeline_mode<synchronous>, transform_indices = @transform_10, window_bounds = array<i64: 1, 256>}, {pipeline_mode = #tpu.pipeline_mode<synchronous>, transform_indices = @transform_11, window_bounds = array<i64: 256, 9>}, {pipeline_mode = #tpu.pipeline_mode<synchronous>, transform_indices = @transform_12, window_bounds = array<i64: 1, 9>}, {transform_indices = @transform_13, window_bounds = array<i64: 2, 9>}]} {
    %c0_i32 = arith.constant 0 : i32
    %0 = arith.cmpi eq, %arg1, %c0_i32 : i32
    %1 = arith.extui %0 : i1 to i32
    %c0_i32_0 = arith.constant 0 : i32
    %2 = arith.cmpi ne, %1, %c0_i32_0 : i32
    scf.if %2 {
      %cst_29 = arith.constant 0xFF800000 : f32
      %45 = vector.broadcast %cst_29 : f32 to vector<2x1024xf32>
      %c0_30 = arith.constant 0 : index
      %c0_31 = arith.constant 0 : index
      %46 = vector.load %arg16[%c0_30, %c0_31] : memref<2x1024xf32, #tpu.memory_space<vmem>>, vector<2x1024xf32>
      tpu.vector_store %arg16[%c0_30, %c0_31], %45 {strides = array<i32>} : memref<2x1024xf32, #tpu.memory_space<vmem>>, vector<2x1024xf32>,
    } else {
    }
    %c0 = arith.constant 0 : index
    %c0_1 = arith.constant 0 : index
    %c0_2 = arith.constant 0 : index
    %3 = vector.load %arg2[%c0, %c0_1, %c0_2] : memref<2x64x3xf32, #tpu.memory_space<vmem>>, vector<1x64x3xf32>
    %4 = vector.shape_cast %3 : vector<1x64x3xf32> to vector<64x3xf32>
    %c1 = arith.constant 1 : index
    %c0_3 = arith.constant 0 : index
    %c0_4 = arith.constant 0 : index
    %5 = vector.load %arg2[%c1, %c0_3, %c0_4] : memref<2x64x3xf32, #tpu.memory_space<vmem>>, vector<1x64x3xf32>
    %6 = vector.shape_cast %5 : vector<1x64x3xf32> to vector<64x3xf32>
    %7 = tpu.concatenate %4, %6 in 0 : vector<64x3xf32>, vector<64x3xf32> -> vector<128x3xf32>
    %c0_5 = arith.constant 0 : index
    %c0_6 = arith.constant 0 : index
    %8 = vector.load %arg3[%c0_5, %c0_6] : memref<3x64xbf16, #tpu.memory_space<vmem>>, vector<3x64xbf16>
    %9 = arith.extf %8 : vector<3x64xbf16> to vector<3x64xf32>
    %cst = arith.constant dense<0.000000e+00> : vector<128x64xf32>
    %10 = tpu.matmul %7, %9, %cst {dimension_numbers = #tpu.dot_dimension_numbers<[1], [0], [0], [1], [0, 0, 1, 1], [], []>} : vector<128x3xf32>, vector<3x64xf32>, vector<128x64xf32> -> vector<128x64xf32>
    %c0_7 = arith.constant 0 : index
    %c0_8 = arith.constant 0 : index
    %11 = vector.load %arg4[%c0_7, %c0_8] : memref<1x64xf32, #tpu.memory_space<vmem>>, vector<1x64xf32>
    %12 = vector.broadcast %11 : vector<1x64xf32> to vector<128x64xf32>
    %13 = arith.addf %10, %12 : vector<128x64xf32>
    %cst_9 = arith.constant 0.000000e+00 : f32
    %14 = vector.broadcast %cst_9 : f32 to vector<128x64xf32>
    %15 = arith.maximumf %13, %14 : vector<128x64xf32>
    %c0_10 = arith.constant 0 : index
    %c0_11 = arith.constant 0 : index
    %16 = vector.load %arg5[%c0_10, %c0_11] : memref<64x128xbf16, #tpu.memory_space<vmem>>, vector<64x128xbf16>
    %17 = arith.extf %16 : vector<64x128xbf16> to vector<64x128xf32>
    %cst_12 = arith.constant dense<0.000000e+00> : vector<128x128xf32>
    %18 = tpu.matmul %15, %17, %cst_12 {dimension_numbers = #tpu.dot_dimension_numbers<[1], [0], [0], [1], [0, 0, 1, 1], [], []>} : vector<128x64xf32>, vector<64x128xf32>, vector<128x128xf32> -> vector<128x128xf32>
    %c0_13 = arith.constant 0 : index
    %c0_14 = arith.constant 0 : index
    %19 = vector.load %arg6[%c0_13, %c0_14] : memref<1x128xf32, #tpu.memory_space<vmem>>, vector<1x128xf32>
    %20 = vector.broadcast %19 : vector<1x128xf32> to vector<128x128xf32>
    %21 = arith.addf %18, %20 : vector<128x128xf32>
    %cst_15 = arith.constant 0.000000e+00 : f32
    %22 = vector.broadcast %cst_15 : f32 to vector<128x128xf32>
    %23 = arith.maximumf %21, %22 : vector<128x128xf32>
    %c0_16 = arith.constant 0 : index
    %c0_17 = arith.constant 0 : index
    %24 = vector.load %arg7[%c0_16, %c0_17] : memref<128x1024xbf16, #tpu.memory_space<vmem>>, vector<128x1024xbf16>
    %25 = arith.extf %24 : vector<128x1024xbf16> to vector<128x1024xf32>
    %cst_18 = arith.constant dense<0.000000e+00> : vector<128x1024xf32>
    %26 = tpu.matmul %23, %25, %cst_18 {dimension_numbers = #tpu.dot_dimension_numbers<[1], [0], [0], [1], [0, 0, 1, 1], [], []>} : vector<128x128xf32>, vector<128x1024xf32>, vector<128x1024xf32> -> vector<128x1024xf32>
    %c0_19 = arith.constant 0 : index
    %c0_20 = arith.constant 0 : index
    %27 = vector.load %arg8[%c0_19, %c0_20] : memref<1x1024xf32, #tpu.memory_space<vmem>>, vector<1x1024xf32>
    %28 = vector.broadcast %27 : vector<1x1024xf32> to vector<128x1024xf32>
    %29 = arith.addf %26, %28 : vector<128x1024xf32>
    %cst_21 = arith.constant 0.000000e+00 : f32
    %30 = vector.broadcast %cst_21 : f32 to vector<128x1024xf32>
    %31 = arith.maximumf %29, %30 : vector<128x1024xf32>
    %c0_22 = arith.constant 0 : index
    %c0_23 = arith.constant 0 : index
    %32 = vector.load %arg16[%c0_22, %c0_23] : memref<2x1024xf32, #tpu.memory_space<vmem>>, vector<2x1024xf32>
    %33 = vector.extract_strided_slice %31 {offsets = [0, 0], sizes = [64, 1024], strides = [1, 1]} : vector<128x1024xf32> to vector<64x1024xf32>
    %cst_24 = arith.constant dense<0xFF800000> : vector<1024xf32>
    %34 = vector.multi_reduction <maximumf>, %33, %cst_24 [0] : vector<64x1024xf32> to vector<1024xf32>
    %35 = vector.shape_cast %34 : vector<1024xf32> to vector<1x1024xf32>
    %36 = vector.extract_strided_slice %31 {offsets = [64, 0], sizes = [64, 1024], strides = [1, 1]} : vector<128x1024xf32> to vector<64x1024xf32>
    %cst_25 = arith.constant dense<0xFF800000> : vector<1024xf32>
    %37 = vector.multi_reduction <maximumf>, %36, %cst_25 [0] : vector<64x1024xf32> to vector<1024xf32>
    %38 = vector.shape_cast %37 : vector<1024xf32> to vector<1x1024xf32>
    %39 = tpu.concatenate %35, %38 in 0 : vector<1x1024xf32>, vector<1x1024xf32> -> vector<2x1024xf32>
    %40 = arith.maximumf %32, %39 : vector<2x1024xf32>
    %c0_26 = arith.constant 0 : index
    %c0_27 = arith.constant 0 : index
    %41 = vector.load %arg16[%c0_26, %c0_27] : memref<2x1024xf32, #tpu.memory_space<vmem>>, vector<2x1024xf32>
    tpu.vector_store %arg16[%c0_26, %c0_27], %40 {strides = array<i32>} : memref<2x1024xf32, #tpu.memory_space<vmem>>, vector<2x1024xf32>,
    %c1_i32 = arith.constant 1 : i32
    %42 = arith.cmpi eq, %arg1, %c1_i32 : i32
    %43 = arith.extui %42 : i1 to i32
    %c0_i32_28 = arith.constant 0 : i32
    %44 = arith.cmpi ne, %43, %c0_i32_28 : i32
    scf.if %44 {
      %c0_29 = arith.constant 0 : index
      %c0_30 = arith.constant 0 : index
      %45 = vector.load %arg16[%c0_29, %c0_30] : memref<2x1024xf32, #tpu.memory_space<vmem>>, vector<2x1024xf32>
      %c0_31 = arith.constant 0 : index
      %c0_32 = arith.constant 0 : index
      %46 = vector.load %arg9[%c0_31, %c0_32] : memref<1024x512xbf16, #tpu.memory_space<vmem>>, vector<1024x512xbf16>
      %47 = arith.extf %46 : vector<1024x512xbf16> to vector<1024x512xf32>
      %cst_33 = arith.constant dense<0.000000e+00> : vector<2x512xf32>
      %48 = tpu.matmul %45, %47, %cst_33 {dimension_numbers = #tpu.dot_dimension_numbers<[1], [0], [0], [1], [0, 0, 1, 1], [], []>} : vector<2x1024xf32>, vector<1024x512xf32>, vector<2x512xf32> -> vector<2x512xf32>
      %c0_34 = arith.constant 0 : index
      %c0_35 = arith.constant 0 : index
      %49 = vector.load %arg10[%c0_34, %c0_35] : memref<1x512xf32, #tpu.memory_space<vmem>>, vector<1x512xf32>
      %50 = vector.broadcast %49 : vector<1x512xf32> to vector<2x512xf32>
      %51 = arith.addf %48, %50 : vector<2x512xf32>
      %cst_36 = arith.constant 0.000000e+00 : f32
      %52 = vector.broadcast %cst_36 : f32 to vector<2x512xf32>
      %53 = arith.maximumf %51, %52 : vector<2x512xf32>
      %c0_37 = arith.constant 0 : index
      %c0_38 = arith.constant 0 : index
      %54 = vector.load %arg11[%c0_37, %c0_38] : memref<512x256xbf16, #tpu.memory_space<vmem>>, vector<512x256xbf16>
      %55 = arith.extf %54 : vector<512x256xbf16> to vector<512x256xf32>
      %cst_39 = arith.constant dense<0.000000e+00> : vector<2x256xf32>
      %56 = tpu.matmul %53, %55, %cst_39 {dimension_numbers = #tpu.dot_dimension_numbers<[1], [0], [0], [1], [0, 0, 1, 1], [], []>} : vector<2x512xf32>, vector<512x256xf32>, vector<2x256xf32> -> vector<2x256xf32>
      %c0_40 = arith.constant 0 : index
      %c0_41 = arith.constant 0 : index
      %57 = vector.load %arg12[%c0_40, %c0_41] : memref<1x256xf32, #tpu.memory_space<vmem>>, vector<1x256xf32>
      %58 = vector.broadcast %57 : vector<1x256xf32> to vector<2x256xf32>
      %59 = arith.addf %56, %58 : vector<2x256xf32>
      %cst_42 = arith.constant 0.000000e+00 : f32
      %60 = vector.broadcast %cst_42 : f32 to vector<2x256xf32>
      %61 = arith.maximumf %59, %60 : vector<2x256xf32>
      %c0_43 = arith.constant 0 : index
      %c0_44 = arith.constant 0 : index
      %62 = vector.load %arg13[%c0_43, %c0_44] : memref<256x9xbf16, #tpu.memory_space<vmem>>, vector<256x9xbf16>
      %63 = arith.extf %62 : vector<256x9xbf16> to vector<256x9xf32>
      %cst_45 = arith.constant dense<0.000000e+00> : vector<2x9xf32>
      %64 = tpu.matmul %61, %63, %cst_45 {dimension_numbers = #tpu.dot_dimension_numbers<[1], [0], [0], [1], [0, 0, 1, 1], [], []>} : vector<2x256xf32>, vector<256x9xf32>, vector<2x9xf32> -> vector<2x9xf32>
      %c0_46 = arith.constant 0 : index
      %c0_47 = arith.constant 0 : index
      %65 = vector.load %arg14[%c0_46, %c0_47] : memref<1x9xf32, #tpu.memory_space<vmem>>, vector<1x9xf32>
      %66 = vector.broadcast %65 : vector<1x9xf32> to vector<2x9xf32>
      %67 = arith.addf %64, %66 : vector<2x9xf32>
      %c0_48 = arith.constant 0 : index
      %c0_49 = arith.constant 0 : index
      %68 = vector.load %arg15[%c0_48, %c0_49] : memref<2x9xf32, #tpu.memory_space<vmem>>, vector<2x9xf32>
      tpu.vector_store %arg15[%c0_48, %c0_49], %67 {strides = array<i32>} : memref<2x9xf32, #tpu.memory_space<vmem>>, vector<2x9xf32>,
    } else {
    }
    return
  }
  func.func @transform_0(%arg0: i32, %arg1: i32) -> (i32, i32, i32) {
    %c0_i32 = arith.constant 0 : i32
    %c0_i32_0 = arith.constant 0 : i32
    return %arg0, %arg1, %c0_i32 : i32, i32, i32
  }
  func.func @transform_1(%arg0: i32, %arg1: i32) -> (i32, i32) {
    %c0_i32 = arith.constant 0 : i32
    %c0_i32_0 = arith.constant 0 : i32
    %c0_i32_1 = arith.constant 0 : i32
    return %c0_i32, %c0_i32_0 : i32, i32
  }
  func.func @transform_2(%arg0: i32, %arg1: i32) -> (i32, i32) {
    %c0_i32 = arith.constant 0 : i32
    %c0_i32_0 = arith.constant 0 : i32
    %c0_i32_1 = arith.constant 0 : i32
    return %c0_i32, %c0_i32_0 : i32, i32
  }
  func.func @transform_3(%arg0: i32, %arg1: i32) -> (i32, i32) {
    %c0_i32 = arith.constant 0 : i32
    %c0_i32_0 = arith.constant 0 : i32
    %c0_i32_1 = arith.constant 0 : i32
    return %c0_i32, %c0_i32_0 : i32, i32
  }
  func.func @transform_4(%arg0: i32, %arg1: i32) -> (i32, i32) {
    %c0_i32 = arith.constant 0 : i32
    %c0_i32_0 = arith.constant 0 : i32
    %c0_i32_1 = arith.constant 0 : i32
    return %c0_i32, %c0_i32_0 : i32, i32
  }
  func.func @transform_5(%arg0: i32, %arg1: i32) -> (i32, i32) {
    %c0_i32 = arith.constant 0 : i32
    %c0_i32_0 = arith.constant 0 : i32
    %c0_i32_1 = arith.constant 0 : i32
    return %c0_i32, %c0_i32_0 : i32, i32
  }
  func.func @transform_6(%arg0: i32, %arg1: i32) -> (i32, i32) {
    %c0_i32 = arith.constant 0 : i32
    %c0_i32_0 = arith.constant 0 : i32
    %c0_i32_1 = arith.constant 0 : i32
    return %c0_i32, %c0_i32_0 : i32, i32
  }
  func.func @transform_7(%arg0: i32, %arg1: i32) -> (i32, i32) {
    %c0_i32 = arith.constant 0 : i32
    %c0_i32_0 = arith.constant 0 : i32
    %c0_i32_1 = arith.constant 0 : i32
    return %c0_i32, %c0_i32_0 : i32, i32
  }
  func.func @transform_8(%arg0: i32, %arg1: i32) -> (i32, i32) {
    %c0_i32 = arith.constant 0 : i32
    %c0_i32_0 = arith.constant 0 : i32
    %c0_i32_1 = arith.constant 0 : i32
    return %c0_i32, %c0_i32_0 : i32, i32
  }
  func.func @transform_9(%arg0: i32, %arg1: i32) -> (i32, i32) {
    %c0_i32 = arith.constant 0 : i32
    %c0_i32_0 = arith.constant 0 : i32
    %c0_i32_1 = arith.constant 0 : i32
    return %c0_i32, %c0_i32_0 : i32, i32
  }
  func.func @transform_10(%arg0: i32, %arg1: i32) -> (i32, i32) {
    %c0_i32 = arith.constant 0 : i32
    %c0_i32_0 = arith.constant 0 : i32
    %c0_i32_1 = arith.constant 0 : i32
    return %c0_i32, %c0_i32_0 : i32, i32
  }
  func.func @transform_11(%arg0: i32, %arg1: i32) -> (i32, i32) {
    %c0_i32 = arith.constant 0 : i32
    %c0_i32_0 = arith.constant 0 : i32
    %c0_i32_1 = arith.constant 0 : i32
    return %c0_i32, %c0_i32_0 : i32, i32
  }
  func.func @transform_12(%arg0: i32, %arg1: i32) -> (i32, i32) {
    %c0_i32 = arith.constant 0 : i32
    %c0_i32_0 = arith.constant 0 : i32
    %c0_i32_1 = arith.constant 0 : i32
    return %c0_i32, %c0_i32_0 : i32, i32
  }
  func.func @transform_13(%arg0: i32, %arg1: i32) -> (i32, i32) {
    %c0_i32 = arith.constant 0 : i32
    %c0_i32_0 = arith.constant 0 : i32
    return %arg0, %c0_i32 : i32, i32
  }
}

</mosaic_0001>

<llo_original>
// kernel: tpu_custom_call.1
$region0: #{tpu_custom_call.1}
  #allocation0 [shape = 'u32[]', space=smem, size = 0x4, offset = 0x4, fixed_abs, tag = 'smem constant byte address 0x4 - core index']
  #allocation1 [shape = 'u32[72,128]{1,0:T(1,128)}', space=vmem, size = 0x9000, scoped, tag = 'internal scratch']
  #allocation2 [shape = 'f32[2,1024]{1,0:T(2,128)}', space=vmem, size = 0x2000, scoped, tag = 'scratch operand']
  %s0 = inlined_call_operand.vmem [shape: f32[2,128,3], index: 0, kind: input, shape index: {}]
  %s1 = inlined_call_operand.vmem [shape: bf16[3,64], index: 1, kind: input, shape index: {}]
  %s2 = inlined_call_operand.vmem [shape: f32[1,64], index: 2, kind: input, shape index: {}]
  %s3 = inlined_call_operand.vmem [shape: bf16[64,128], index: 3, kind: input, shape index: {}]
  %s4 = inlined_call_operand.vmem [shape: f32[1,128], index: 4, kind: input, shape index: {}]
  %s5 = inlined_call_operand.hbm [shape: bf16[128,1024], index: 5, kind: input, shape index: {}]
  %s6 = inlined_call_operand.vmem [shape: f32[1,1024], index: 6, kind: input, shape index: {}]
  %s7 = inlined_call_operand.hbm [shape: bf16[1024,512], index: 7, kind: input, shape index: {}]
  %s8 = inlined_call_operand.vmem [shape: f32[1,512], index: 8, kind: input, shape index: {}]
  %s9 = inlined_call_operand.hbm [shape: bf16[512,256], index: 9, kind: input, shape index: {}]
  %s10 = inlined_call_operand.vmem [shape: f32[1,256], index: 10, kind: input, shape index: {}]
  %s11 = inlined_call_operand.vmem [shape: bf16[256,9], index: 11, kind: input, shape index: {}]
  %s12 = inlined_call_operand.vmem [shape: f32[1,9], index: 12, kind: input, shape index: {}]
  %s13 = inlined_call_operand.hbm [shape: f32[2,9], index: 13, kind: output, shape index: {}]
  %s14 = sld [smem:[#allocation0]]
  $region143: #{tpu_custom_call.1} parent=0
    _
  %s16 = ssub.s32 1, %s14
  %s17 = scalar_select 0, %s16, %s14
  $region1: #{tpu_custom_call.1} parent=0
    #allocation3 [shape = 'u8[131072]{0}', space=vmem, size = 0x20000, scoped, tag = 'input window, operand 0']
    #allocation4 [shape = 'u8[262144]{0}', space=vmem, size = 0x40000, scoped, tag = 'input window, operand 5, single buffered']
    #allocation5 [shape = 's32[2]{0}', space=sflag, size = 0x8, scoped, tag = 'scoped memory for tpu_custom_call.1']
    #allocation6 [shape = 's32[2]{0}', space=sflag, size = 0x8, scoped, tag = 'scoped memory for tpu_custom_call.1']
    #allocation7 [shape = 'u8[1048576]{0}', space=vmem, size = 0x100000, scoped, tag = 'input window, operand 7, single buffered']
    #allocation8 [shape = 's32[1]{0}', space=sflag, size = 0x4, scoped, tag = 'scoped memory for tpu_custom_call.1']
    #allocation9 [shape = 'u8[262144]{0}', space=vmem, size = 0x40000, scoped, tag = 'input window, operand 9, single buffered']
    #allocation10 [shape = 'u8[1024]{0}', space=vmem, size = 0x400, scoped, tag = 'output window, operand 0, single buffered']
    %18 = vsyncpa [#allocation5], 0
    %19 = vsyncpa [#allocation8], 0
    %20 = vsyncpa [#allocation6], 0
    loop: start=0, step=1, limit=4
    $region2: #{tpu_custom_call.1} parent=1 // loop_pre_header
      _
    $region3: #{tpu_custom_call.1} parent=1 // loop_header
      %s22 = sphi 0, %s26
      %p23 = scmp.ge.s32.totalorder %s22, 4
      %s29 = sphi 0, %s41
      %s30 = sphi 0, %s37
      %s31 = sphi 0, %s29
      %s32 = sphi 0, %s30
      %s33 = sphi 0, %s31
      %s34 = sphi 0, %s32
      %s46 = sphi 0, %s48
      %s49 = sphi 0, %s46
      %s50 = sphi 0, %s49
      %s66 = sphi 0, %s50
      %s70 = sphi 0, %s70
      %s72 = sphi 0, %s70
      %s73 = sphi 0, %s72
      %s87 = sphi 0, %s73
      %s91 = sphi 0, %s91
      %s93 = sphi 0, %s91
      %s94 = sphi 0, %s93
      %s108 = sphi 0, %s94
      %s112 = sphi 0, %s112
      %s114 = sphi 0, %s112
      %s115 = sphi 0, %s114
      %s129 = sphi 0, %s115
      %s133 = sphi 0, %s133
      %s135 = sphi 0, %s133
      %s136 = sphi 0, %s135
      %s150 = sphi 0, %s136
      %s154 = sphi 0, %s154
      %s156 = sphi 0, %s154
      %s157 = sphi 0, %s156
      %s171 = sphi 0, %s157
      %s175 = sphi 0, %s175
      %s177 = sphi 0, %s175
      %s178 = sphi 0, %s177
      %s192 = sphi 0, %s178
      %s196 = sphi 0, %s196
      %s198 = sphi 0, %s196
      %s199 = sphi 0, %s198
      %s213 = sphi 0, %s199
      %s217 = sphi 0, %s217
      %s219 = sphi 0, %s217
      %s220 = sphi 0, %s219
      %s234 = sphi 0, %s220
      %s238 = sphi 0, %s238
      %s240 = sphi 0, %s238
      %s241 = sphi 0, %s240
      %s255 = sphi 0, %s241
      %s259 = sphi 0, %s259
      %s261 = sphi 0, %s259
      %s262 = sphi 0, %s261
      %s276 = sphi 0, %s262
      %s280 = sphi 0, %s280
      %s282 = sphi 0, %s280
      %s283 = sphi 0, %s282
      %s297 = sphi 0, %s283
      %s301 = sphi 0, %s301
      %s303 = sphi 0, %s301
      %s304 = sphi 0, %s303
      %s318 = sphi 0, %s304
      %s324 = sphi 0, %s326
      %s327 = sphi 0, %s324
      %s328 = sphi 0, %s327
      %s344 = sphi 0, %s328
    $region4: #{tpu_custom_call.1} parent=1 // loop_header_branch
      %25 = sbr.rel (%p23) target = $region8
    $region5: #{tpu_custom_call.1} parent=1 // loop_body
      %s27 = ssub.s32 %s22, 1
      %s28 = ssub.s32 %s22, 2
      %s35 = sadd.s32 1, %s30
      %p36 = scmp.ge.s32.totalorder %s35, 2
      %s37 = scalar_select %p36, 0, %s35
      %s38 = sadd.s32 1, %s29
      %s39 = scalar_select %p36, %s38, %s29
      %p40 = scmp.ge.s32.totalorder %s39, 1
      %s41 = scalar_select %p40, 0, %s39
      %s42 = ssub.s32 %s29, %s41
      %s43 = ssub.s32 %s30, %s37
      %s44 = sor.u32 %s42, %s43
      %p45 = scmp.eq.s32.totalorder %s44, 0
      %s47 = sadd.s32 %s46, 1
      %s48 = scalar_select %p45, %s46, %s47
      %p51 = pneg %p45
      %p52 = scmp.eq.s32.totalorder %s22, 1
      %p53 = por %p51, %p52
      %p54 = scmp.ne.s32.totalorder %s46, %s49
      %p55 = scmp.eq.s32.totalorder %s22, 0
      %p56 = por %p54, %p55
      %p57 = scmp.ne.s32.totalorder %s46, %s49
      %p58 = scmp.eq.s32.totalorder %s27, 1
      %p59 = por %p57, %p58
      %p60 = scmp.ne.s32.totalorder %s49, %s50
      %p61 = scmp.eq.s32.totalorder %s27, 0
      %p62 = por %p60, %p61
      %p63 = scmp.ne.s32.totalorder %s49, %s50
      %p64 = scmp.eq.s32.totalorder %s28, 1
      %p65 = por %p63, %p64
      %p67 = scmp.ne.s32.totalorder %s50, %s66
      %p68 = scmp.eq.s32.totalorder %s28, 0
      %p69 = por %p67, %p68
      %s71 = sadd.s32 %s70, 1
      %p74 = scmp.eq.s32.totalorder %s22, 1
      %p75 = scmp.ne.s32.totalorder %s70, %s72
      %p76 = scmp.eq.s32.totalorder %s22, 0
      %p77 = por %p75, %p76
      %p78 = scmp.ne.s32.totalorder %s70, %s72
      %p79 = scmp.eq.s32.totalorder %s27, 1
      %p80 = por %p78, %p79
      %p81 = scmp.ne.s32.totalorder %s72, %s73
      %p82 = scmp.eq.s32.totalorder %s27, 0
      %p83 = por %p81, %p82
      %p84 = scmp.ne.s32.totalorder %s72, %s73
      %p85 = scmp.eq.s32.totalorder %s28, 1
      %p86 = por %p84, %p85
      %p88 = scmp.ne.s32.totalorder %s73, %s87
      %p89 = scmp.eq.s32.totalorder %s28, 0
      %p90 = por %p88, %p89
      %s92 = sadd.s32 %s91, 1
      %p95 = scmp.eq.s32.totalorder %s22, 1
      %p96 = scmp.ne.s32.totalorder %s91, %s93
      %p97 = scmp.eq.s32.totalorder %s22, 0
      %p98 = por %p96, %p97
      %p99 = scmp.ne.s32.totalorder %s91, %s93
      %p100 = scmp.eq.s32.totalorder %s27, 1
      %p101 = por %p99, %p100
      %p102 = scmp.ne.s32.totalorder %s93, %s94
      %p103 = scmp.eq.s32.totalorder %s27, 0
      %p104 = por %p102, %p103
      %p105 = scmp.ne.s32.totalorder %s93, %s94
      %p106 = scmp.eq.s32.totalorder %s28, 1
      %p107 = por %p105, %p106
      %p109 = scmp.ne.s32.totalorder %s94, %s108
      %p110 = scmp.eq.s32.totalorder %s28, 0
      %p111 = por %p109, %p110
      %s113 = sadd.s32 %s112, 1
      %p116 = scmp.eq.s32.totalorder %s22, 1
      %p117 = scmp.ne.s32.totalorder %s112, %s114
      %p118 = scmp.eq.s32.totalorder %s22, 0
      %p119 = por %p117, %p118
      %p120 = scmp.ne.s32.totalorder %s112, %s114
      %p121 = scmp.eq.s32.totalorder %s27, 1
      %p122 = por %p120, %p121
      %p123 = scmp.ne.s32.totalorder %s114, %s115
      %p124 = scmp.eq.s32.totalorder %s27, 0
      %p125 = por %p123, %p124
      %p126 = scmp.ne.s32.totalorder %s114, %s115
      %p127 = scmp.eq.s32.totalorder %s28, 1
      %p128 = por %p126, %p127
      %p130 = scmp.ne.s32.totalorder %s115, %s129
      %p131 = scmp.eq.s32.totalorder %s28, 0
      %p132 = por %p130, %p131
      %s134 = sadd.s32 %s133, 1
      %p137 = scmp.eq.s32.totalorder %s22, 1
      %p138 = scmp.ne.s32.totalorder %s133, %s135
      %p139 = scmp.eq.s32.totalorder %s22, 0
      %p140 = por %p138, %p139
      %p141 = scmp.ne.s32.totalorder %s133, %s135
      %p142 = scmp.eq.s32.totalorder %s27, 1
      %p143 = por %p141, %p142
      %p144 = scmp.ne.s32.totalorder %s135, %s136
      %p145 = scmp.eq.s32.totalorder %s27, 0
      %p146 = por %p144, %p145
      %p147 = scmp.ne.s32.totalorder %s135, %s136
      %p148 = scmp.eq.s32.totalorder %s28, 1
      %p149 = por %p147, %p148
      %p151 = scmp.ne.s32.totalorder %s136, %s150
      %p152 = scmp.eq.s32.totalorder %s28, 0
      %p153 = por %p151, %p152
      %s155 = sadd.s32 %s154, 1
      %p158 = scmp.eq.s32.totalorder %s22, 1
      %p159 = scmp.ne.s32.totalorder %s154, %s156
      %p160 = scmp.eq.s32.totalorder %s22, 0
      %p161 = por %p159, %p160
      %p162 = scmp.ne.s32.totalorder %s154, %s156
      %p163 = scmp.eq.s32.totalorder %s27, 1
      %p164 = por %p162, %p163
      %p165 = scmp.ne.s32.totalorder %s156, %s157
      %p166 = scmp.eq.s32.totalorder %s27, 0
      %p167 = por %p165, %p166
      %p168 = scmp.ne.s32.totalorder %s156, %s157
      %p169 = scmp.eq.s32.totalorder %s28, 1
      %p170 = por %p168, %p169
      %p172 = scmp.ne.s32.totalorder %s157, %s171
      %p173 = scmp.eq.s32.totalorder %s28, 0
      %p174 = por %p172, %p173
      %s176 = sadd.s32 %s175, 1
      %p179 = scmp.eq.s32.totalorder %s22, 1
      %p180 = scmp.ne.s32.totalorder %s175, %s177
      %p181 = scmp.eq.s32.totalorder %s22, 0
      %p182 = por %p180, %p181
      %p183 = scmp.ne.s32.totalorder %s175, %s177
      %p184 = scmp.eq.s32.totalorder %s27, 1
      %p185 = por %p183, %p184
      %p186 = scmp.ne.s32.totalorder %s177, %s178
      %p187 = scmp.eq.s32.totalorder %s27, 0
      %p188 = por %p186, %p187
      %p189 = scmp.ne.s32.totalorder %s177, %s178
      %p190 = scmp.eq.s32.totalorder %s28, 1
      %p191 = por %p189, %p190
      %p193 = scmp.ne.s32.totalorder %s178, %s192
      %p194 = scmp.eq.s32.totalorder %s28, 0
      %p195 = por %p193, %p194
      %s197 = sadd.s32 %s196, 1
      %p200 = scmp.eq.s32.totalorder %s22, 1
      %p201 = scmp.ne.s32.totalorder %s196, %s198
      %p202 = scmp.eq.s32.totalorder %s22, 0
      %p203 = por %p201, %p202
      %p204 = scmp.ne.s32.totalorder %s196, %s198
      %p205 = scmp.eq.s32.totalorder %s27, 1
      %p206 = por %p204, %p205
      %p207 = scmp.ne.s32.totalorder %s198, %s199
      %p208 = scmp.eq.s32.totalorder %s27, 0
      %p209 = por %p207, %p208
      %p210 = scmp.ne.s32.totalorder %s198, %s199
      %p211 = scmp.eq.s32.totalorder %s28, 1
      %p212 = por %p210, %p211
      %p214 = scmp.ne.s32.totalorder %s199, %s213
      %p215 = scmp.eq.s32.totalorder %s28, 0
      %p216 = por %p214, %p215
      %s218 = sadd.s32 %s217, 1
      %p221 = scmp.eq.s32.totalorder %s22, 1
      %p222 = scmp.ne.s32.totalorder %s217, %s219
      %p223 = scmp.eq.s32.totalorder %s22, 0
      %p224 = por %p222, %p223
      %p225 = scmp.ne.s32.totalorder %s217, %s219
      %p226 = scmp.eq.s32.totalorder %s27, 1
      %p227 = por %p225, %p226
      %p228 = scmp.ne.s32.totalorder %s219, %s220
      %p229 = scmp.eq.s32.totalorder %s27, 0
      %p230 = por %p228, %p229
      %p231 = scmp.ne.s32.totalorder %s219, %s220
      %p232 = scmp.eq.s32.totalorder %s28, 1
      %p233 = por %p231, %p232
      %p235 = scmp.ne.s32.totalorder %s220, %s234
      %p236 = scmp.eq.s32.totalorder %s28, 0
      %p237 = por %p235, %p236
      %s239 = sadd.s32 %s238, 1
      %p242 = scmp.eq.s32.totalorder %s22, 1
      %p243 = scmp.ne.s32.totalorder %s238, %s240
      %p244 = scmp.eq.s32.totalorder %s22, 0
      %p245 = por %p243, %p244
      %p246 = scmp.ne.s32.totalorder %s238, %s240
      %p247 = scmp.eq.s32.totalorder %s27, 1
      %p248 = por %p246, %p247
      %p249 = scmp.ne.s32.totalorder %s240, %s241
      %p250 = scmp.eq.s32.totalorder %s27, 0
      %p251 = por %p249, %p250
      %p252 = scmp.ne.s32.totalorder %s240, %s241
      %p253 = scmp.eq.s32.totalorder %s28, 1
      %p254 = por %p252, %p253
      %p256 = scmp.ne.s32.totalorder %s241, %s255
      %p257 = scmp.eq.s32.totalorder %s28, 0
      %p258 = por %p256, %p257
      %s260 = sadd.s32 %s259, 1
      %p263 = scmp.eq.s32.totalorder %s22, 1
      %p264 = scmp.ne.s32.totalorder %s259, %s261
      %p265 = scmp.eq.s32.totalorder %s22, 0
      %p266 = por %p264, %p265
      %p267 = scmp.ne.s32.totalorder %s259, %s261
      %p268 = scmp.eq.s32.totalorder %s27, 1
      %p269 = por %p267, %p268
      %p270 = scmp.ne.s32.totalorder %s261, %s262
      %p271 = scmp.eq.s32.totalorder %s27, 0
      %p272 = por %p270, %p271
      %p273 = scmp.ne.s32.totalorder %s261, %s262
      %p274 = scmp.eq.s32.totalorder %s28, 1
      %p275 = por %p273, %p274
      %p277 = scmp.ne.s32.totalorder %s262, %s276
      %p278 = scmp.eq.s32.totalorder %s28, 0
      %p279 = por %p277, %p278
      %s281 = sadd.s32 %s280, 1
      %p284 = scmp.eq.s32.totalorder %s22, 1
      %p285 = scmp.ne.s32.totalorder %s280, %s282
      %p286 = scmp.eq.s32.totalorder %s22, 0
      %p287 = por %p285, %p286
      %p288 = scmp.ne.s32.totalorder %s280, %s282
      %p289 = scmp.eq.s32.totalorder %s27, 1
      %p290 = por %p288, %p289
      %p291 = scmp.ne.s32.totalorder %s282, %s283
      %p292 = scmp.eq.s32.totalorder %s27, 0
      %p293 = por %p291, %p292
      %p294 = scmp.ne.s32.totalorder %s282, %s283
      %p295 = scmp.eq.s32.totalorder %s28, 1
      %p296 = por %p294, %p295
      %p298 = scmp.ne.s32.totalorder %s283, %s297
      %p299 = scmp.eq.s32.totalorder %s28, 0
      %p300 = por %p298, %p299
      %s302 = sadd.s32 %s301, 1
      %p305 = scmp.eq.s32.totalorder %s22, 1
      %p306 = scmp.ne.s32.totalorder %s301, %s303
      %p307 = scmp.eq.s32.totalorder %s22, 0
      %p308 = por %p306, %p307
      %p309 = scmp.ne.s32.totalorder %s301, %s303
      %p310 = scmp.eq.s32.totalorder %s27, 1
      %p311 = por %p309, %p310
      %p312 = scmp.ne.s32.totalorder %s303, %s304
      %p313 = scmp.eq.s32.totalorder %s27, 0
      %p314 = por %p312, %p313
      %p315 = scmp.ne.s32.totalorder %s303, %s304
      %p316 = scmp.eq.s32.totalorder %s28, 1
      %p317 = por %p315, %p316
      %p319 = scmp.ne.s32.totalorder %s304, %s318
      %p320 = scmp.eq.s32.totalorder %s28, 0
      %p321 = por %p319, %p320
      %s322 = ssub.s32 %s29, %s41
      %p323 = scmp.eq.s32.totalorder %s322, 0
      %s325 = sadd.s32 %s324, 1
      %s326 = scalar_select %p323, %s324, %s325
      %p329 = pneg %p323
      %p330 = scmp.eq.s32.totalorder %s22, 1
      %p331 = por %p329, %p330
      %p332 = scmp.ne.s32.totalorder %s324, %s327
      %p333 = scmp.eq.s32.totalorder %s22, 0
      %p334 = por %p332, %p333
      %p335 = scmp.ne.s32.totalorder %s324, %s327
      %p336 = scmp.eq.s32.totalorder %s27, 1
      %p337 = por %p335, %p336
      %p338 = scmp.ne.s32.totalorder %s327, %s328
      %p339 = scmp.eq.s32.totalorder %s27, 0
      %p340 = por %p338, %p339
      %p341 = scmp.ne.s32.totalorder %s327, %s328
      %p342 = scmp.eq.s32.totalorder %s28, 1
      %p343 = por %p341, %p342
      %p345 = scmp.ne.s32.totalorder %s328, %s344
      %p346 = scmp.eq.s32.totalorder %s28, 0
      %p347 = por %p345, %p346
      %p348 = scmp.le.s32.totalorder 1, %s22
      %p349 = scmp.lt.s32.totalorder %s22, 3
      %p350 = pnand %p348, %p349
      %p351 = pneg %p350
      // Predicated region
      $region9: #{tpu_custom_call.1} parent=5 // pred_check
        _
      $region10: #{tpu_custom_call.1} parent=5 // pred_check_branch
        %353 = sbr.rel (%p350) target = $region12
      $region11: #{tpu_custom_call.1} parent=5 // pred_region
        %s354 = ssub.s32 %s22, 1
        // Predicated region
        $region13: #{tpu_custom_call.1} parent=11 // pred_check
          %p355 = pneg %p83
        $region14: #{tpu_custom_call.1} parent=11 // pred_check_branch
          %357 = sbr.rel (%p355) target = $region16
        $region15: #{tpu_custom_call.1} parent=11 // pred_region
          _
        $region16: #{tpu_custom_call.1} parent=11 // pred_fallthru
          _
        // Predicated region
        $region17: #{tpu_custom_call.1} parent=11 // pred_check
          %p358 = pneg %p104
        $region18: #{tpu_custom_call.1} parent=11 // pred_check_branch
          %360 = sbr.rel (%p358) target = $region20
        $region19: #{tpu_custom_call.1} parent=11 // pred_region
          _
        $region20: #{tpu_custom_call.1} parent=11 // pred_fallthru
          _
        // Predicated region
        $region21: #{tpu_custom_call.1} parent=11 // pred_check
          %p361 = pneg %p125
        $region22: #{tpu_custom_call.1} parent=11 // pred_check_branch
          %363 = sbr.rel (%p361) target = $region24
        $region23: #{tpu_custom_call.1} parent=11 // pred_region
          _
        $region24: #{tpu_custom_call.1} parent=11 // pred_fallthru
          _
        // Predicated region
        $region25: #{tpu_custom_call.1} parent=11 // pred_check
          %p364 = pneg %p146
        $region26: #{tpu_custom_call.1} parent=11 // pred_check_branch
          %366 = sbr.rel (%p364) target = $region28
        $region27: #{tpu_custom_call.1} parent=11 // pred_region
          _
        $region28: #{tpu_custom_call.1} parent=11 // pred_fallthru
          _
        // Predicated region
        $region29: #{tpu_custom_call.1} parent=11 // pred_check
          %p367 = pneg %p167
        $region30: #{tpu_custom_call.1} parent=11 // pred_check_branch
          %369 = sbr.rel (%p367) target = $region32
        $region31: #{tpu_custom_call.1} parent=11 // pred_region
          %371 = vsyncadd [#allocation5], 0
          %s372 = sshll.u32 %s5, 4
          %s373 = int_to_ptr.hbm [resolvable:$true] %s372
          %s374 = sshll.u32 [#allocation4], 4
          %s375 = int_to_ptr.vmem [resolvable:$true] %s374
          %380 = dma.hbm_to_vmem [thread:$0]  %s373, 8192, %s375, [#allocation5], 512, 512, 32
        $region32: #{tpu_custom_call.1} parent=11 // pred_fallthru
          _
        // Predicated region
        $region33: #{tpu_custom_call.1} parent=11 // pred_check
          %p381 = pneg %p188
        $region34: #{tpu_custom_call.1} parent=11 // pred_check_branch
          %383 = sbr.rel (%p381) target = $region36
        $region35: #{tpu_custom_call.1} parent=11 // pred_region
          _
        $region36: #{tpu_custom_call.1} parent=11 // pred_fallthru
          _
        // Predicated region
        $region37: #{tpu_custom_call.1} parent=11 // pred_check
          %p384 = pneg %p209
        $region38: #{tpu_custom_call.1} parent=11 // pred_check_branch
          %386 = sbr.rel (%p384) target = $region40
        $region39: #{tpu_custom_call.1} parent=11 // pred_region
          %388 = vsyncadd [#allocation8], 0
          %s389 = sshll.u32 %s7, 4
          %s390 = int_to_ptr.hbm [resolvable:$true] %s389
          %s391 = sshll.u32 [#allocation7], 4
          %s392 = int_to_ptr.vmem [resolvable:$true] %s391
          %397 = dma.hbm_to_vmem [thread:$0]  %s390, 32768, %s392, [#allocation8], 256, 256, 16
        $region40: #{tpu_custom_call.1} parent=11 // pred_fallthru
          _
        // Predicated region
        $region41: #{tpu_custom_call.1} parent=11 // pred_check
          %p398 = pneg %p230
        $region42: #{tpu_custom_call.1} parent=11 // pred_check_branch
          %400 = sbr.rel (%p398) target = $region44
        $region43: #{tpu_custom_call.1} parent=11 // pred_region
          _
        $region44: #{tpu_custom_call.1} parent=11 // pred_fallthru
          _
        // Predicated region
        $region45: #{tpu_custom_call.1} parent=11 // pred_check
          %p401 = pneg %p251
        $region46: #{tpu_custom_call.1} parent=11 // pred_check_branch
          %403 = sbr.rel (%p401) target = $region48
        $region47: #{tpu_custom_call.1} parent=11 // pred_region
          %405 = vsyncadd [#allocation8], 0
          %s406 = sshll.u32 %s9, 4
          %s407 = int_to_ptr.hbm [resolvable:$true] %s406
          %s408 = sshll.u32 [#allocation9], 4
          %s409 = int_to_ptr.vmem [resolvable:$true] %s408
          %414 = dma.hbm_to_vmem [thread:$0]  %s407, 8192, %s409, [#allocation8], 128, 128, 8
        $region48: #{tpu_custom_call.1} parent=11 // pred_fallthru
          _
        // Predicated region
        $region49: #{tpu_custom_call.1} parent=11 // pred_check
          %p415 = pneg %p272
        $region50: #{tpu_custom_call.1} parent=11 // pred_check_branch
          %417 = sbr.rel (%p415) target = $region52
        $region51: #{tpu_custom_call.1} parent=11 // pred_region
          _
        $region52: #{tpu_custom_call.1} parent=11 // pred_fallthru
          _
        // Predicated region
        $region53: #{tpu_custom_call.1} parent=11 // pred_check
          %p418 = pneg %p293
        $region54: #{tpu_custom_call.1} parent=11 // pred_check_branch
          %420 = sbr.rel (%p418) target = $region56
        $region55: #{tpu_custom_call.1} parent=11 // pred_region
          _
        $region56: #{tpu_custom_call.1} parent=11 // pred_fallthru
          _
        // Predicated region
        $region57: #{tpu_custom_call.1} parent=11 // pred_check
          %p421 = pneg %p314
        $region58: #{tpu_custom_call.1} parent=11 // pred_check_branch
          %423 = sbr.rel (%p421) target = $region60
        $region59: #{tpu_custom_call.1} parent=11 // pred_region
          _
        $region60: #{tpu_custom_call.1} parent=11 // pred_fallthru
          _
      $region12: #{tpu_custom_call.1} parent=5 // pred_fallthru
        _
      %p424 = scmp.lt.s32.totalorder %s22, 2
      // Predicated region
      $region61: #{tpu_custom_call.1} parent=5 // pred_check
        %p425 = pneg %p424
      $region62: #{tpu_custom_call.1} parent=5 // pred_check_branch
        %427 = sbr.rel (%p425) target = $region64
      $region63: #{tpu_custom_call.1} parent=5 // pred_region
        // Predicated region
        $region65: #{tpu_custom_call.1} parent=63 // pred_check
          %p428 = pneg %p56
        $region66: #{tpu_custom_call.1} parent=63 // pred_check_branch
          %430 = sbr.rel (%p428) target = $region68
        $region67: #{tpu_custom_call.1} parent=63 // pred_region
          %s431 = sand.u32 %s46, 1
          %s432 = sand.u32 %s46, 1
          %s433 = smul.addr %s432, 128
          %s434 = scalar_lea.vmem [#allocation3], %s433
          %s435 = smul.u32 2, %s29
          %s436 = smul.u32 8, %s30
          %s437 = smul.addr %s435, 16
          %s438 = sadd.s32 %s436, %s437
          %s439 = smul.addr %s438, 8
          %s440 = scalar_lea.vmem %s0, %s439
          // Predicated region
          $region69: #{tpu_custom_call.1} parent=67 // pred_check
            _
          $region70: #{tpu_custom_call.1} parent=67 // pred_check_branch
            %442 = sbr.rel (0) target = $region72
          $region71: #{tpu_custom_call.1} parent=67 // pred_region
            // Predicated region
            $region73: #{tpu_custom_call.1} parent=71 // pred_check
              _
            $region74: #{tpu_custom_call.1} parent=71 // pred_check_branch
              %444 = sbr.rel (0) target = $region76
            $region75: #{tpu_custom_call.1} parent=71 // pred_region
              // Predicated region
              $region88: #{tpu_custom_call.1} parent=75 // pred_check
                _
              $region89: #{tpu_custom_call.1} parent=75 // pred_check_branch
                %490 = sbr.rel (0) target = $region91
              $region90: #{tpu_custom_call.1} parent=75 // pred_region
                loop: start=0, step=1, limit=1
                $region92: #{tpu_custom_call.1} parent=90 // loop_pre_header
                  _
                $region93: #{tpu_custom_call.1} parent=90 // loop_header
                  %s492 = sphi 0, %s496
                  %p493 = scmp.ge.s32.totalorder %s492, 1
                  %s497 = sphi %s440, %s440
                  %s498 = sphi %s434, %s434
                $region94: #{tpu_custom_call.1} parent=90 // loop_header_branch
                  %495 = sbr.rel (%p493) target = $region98
                $region95: #{tpu_custom_call.1} parent=90 // loop_body
                  %v499 = vld [vmem:[%s497] sm:$0xff]
                  %500 = vst [vmem:[%s498] sm:$0xff] %v499
                  %v501 = vld [vmem:[%s497 + $0x8] sm:$0xff]
                  %502 = vst [vmem:[%s498 + $0x8] sm:$0xff] %v501
                  %v503 = vld [vmem:[%s497 + $0x10] sm:$0xff]
                  %504 = vst [vmem:[%s498 + $0x10] sm:$0xff] %v503
                  %v505 = vld [vmem:[%s497 + $0x18] sm:$0xff]
                  %506 = vst [vmem:[%s498 + $0x18] sm:$0xff] %v505
                  %v507 = vld [vmem:[%s497 + $0x20] sm:$0xff]
                  %508 = vst [vmem:[%s498 + $0x20] sm:$0xff] %v507
                  %v509 = vld [vmem:[%s497 + $0x28] sm:$0xff]
                  %510 = vst [vmem:[%s498 + $0x28] sm:$0xff] %v509
                  %v511 = vld [vmem:[%s497 + $0x30] sm:$0xff]
                  %512 = vst [vmem:[%s498 + $0x30] sm:$0xff] %v511
                  %v513 = vld [vmem:[%s497 + $0x38] sm:$0xff]
                  %514 = vst [vmem:[%s498 + $0x38] sm:$0xff] %v513
                  %v515 = vld [vmem:[%s497 + $0x80] sm:$0xff]
                  %516 = vst [vmem:[%s498 + $0x40] sm:$0xff] %v515
                  %v517 = vld [vmem:[%s497 + $0x88] sm:$0xff]
                  %518 = vst [vmem:[%s498 + $0x48] sm:$0xff] %v517
                  %v519 = vld [vmem:[%s497 + $0x90] sm:$0xff]
                  %520 = vst [vmem:[%s498 + $0x50] sm:$0xff] %v519
                  %v521 = vld [vmem:[%s497 + $0x98] sm:$0xff]
                  %522 = vst [vmem:[%s498 + $0x58] sm:$0xff] %v521
                  %v523 = vld [vmem:[%s497 + $0xa0] sm:$0xff]
                  %524 = vst [vmem:[%s498 + $0x60] sm:$0xff] %v523
                  %v525 = vld [vmem:[%s497 + $0xa8] sm:$0xff]
                  %526 = vst [vmem:[%s498 + $0x68] sm:$0xff] %v525
                  %v527 = vld [vmem:[%s497 + $0xb0] sm:$0xff]
                  %528 = vst [vmem:[%s498 + $0x70] sm:$0xff] %v527
                  %v529 = vld [vmem:[%s497 + $0xb8] sm:$0xff]
                  %530 = vst [vmem:[%s498 + $0x78] sm:$0xff] %v529
                $region96: #{tpu_custom_call.1} parent=90 // loop_footer
                  %s496 = sadd.s32 1, %s492
                $region97: #{tpu_custom_call.1} parent=90 // loop_footer_branch
                  %491 = sbr.rel target = $region93
                $region98: #{tpu_custom_call.1} parent=90 // loop_exit
                  _
              $region91: #{tpu_custom_call.1} parent=75 // pred_fallthru
                _
              // Predicated region
              $region99: #{tpu_custom_call.1} parent=75 // pred_check
                _
              $region100: #{tpu_custom_call.1} parent=75 // pred_check_branch
                %532 = sbr.rel target = $region102
              $region101: #{tpu_custom_call.1} parent=75 // pred_region
                _
              $region102: #{tpu_custom_call.1} parent=75 // pred_fallthru
                _
            $region76: #{tpu_custom_call.1} parent=71 // pred_fallthru
              _
            // Predicated region
            $region77: #{tpu_custom_call.1} parent=71 // pred_check
              _
            $region78: #{tpu_custom_call.1} parent=71 // pred_check_branch
              %446 = sbr.rel target = $region80
            $region79: #{tpu_custom_call.1} parent=71 // pred_region
              %s448 = ssub.s32 256, 1
              loop: start=0, step=1, limit=1
              $region81: #{tpu_custom_call.1} parent=79 // loop_pre_header
                _
              $region82: #{tpu_custom_call.1} parent=79 // loop_header
                %s450 = sphi 0, %s454
                %p451 = scmp.ge.s32.totalorder %s450, 1
                %s455 = sphi %s440, %s440
                %s456 = sphi %s434, %s434
              $region83: #{tpu_custom_call.1} parent=79 // loop_header_branch
                %453 = sbr.rel (%p451) target = $region87
              $region84: #{tpu_custom_call.1} parent=79 // loop_body
                %v457 = vld [vmem:[%s455] sm:%s448]
                %458 = vst [vmem:[%s456] sm:%s448] %v457
                %v459 = vld [vmem:[%s455 + $0x8] sm:%s448]
                %460 = vst [vmem:[%s456 + $0x8] sm:%s448] %v459
                %v461 = vld [vmem:[%s455 + $0x10] sm:%s448]
                %462 = vst [vmem:[%s456 + $0x10] sm:%s448] %v461
                %v463 = vld [vmem:[%s455 + $0x18] sm:%s448]
                %464 = vst [vmem:[%s456 + $0x18] sm:%s448] %v463
                %v465 = vld [vmem:[%s455 + $0x20] sm:%s448]
                %466 = vst [vmem:[%s456 + $0x20] sm:%s448] %v465
                %v467 = vld [vmem:[%s455 + $0x28] sm:%s448]
                %468 = vst [vmem:[%s456 + $0x28] sm:%s448] %v467
                %v469 = vld [vmem:[%s455 + $0x30] sm:%s448]
                %470 = vst [vmem:[%s456 + $0x30] sm:%s448] %v469
                %v471 = vld [vmem:[%s455 + $0x38] sm:%s448]
                %472 = vst [vmem:[%s456 + $0x38] sm:%s448] %v471
                %v473 = vld [vmem:[%s455 + $0x80] sm:%s448]
                %474 = vst [vmem:[%s456 + $0x40] sm:%s448] %v473
                %v475 = vld [vmem:[%s455 + $0x88] sm:%s448]
                %476 = vst [vmem:[%s456 + $0x48] sm:%s448] %v475
                %v477 = vld [vmem:[%s455 + $0x90] sm:%s448]
                %478 = vst [vmem:[%s456 + $0x50] sm:%s448] %v477
                %v479 = vld [vmem:[%s455 + $0x98] sm:%s448]
                %480 = vst [vmem:[%s456 + $0x58] sm:%s448] %v479
                %v481 = vld [vmem:[%s455 + $0xa0] sm:%s448]
                %482 = vst [vmem:[%s456 + $0x60] sm:%s448] %v481
                %v483 = vld [vmem:[%s455 + $0xa8] sm:%s448]
                %484 = vst [vmem:[%s456 + $0x68] sm:%s448] %v483
                %v485 = vld [vmem:[%s455 + $0xb0] sm:%s448]
                %486 = vst [vmem:[%s456 + $0x70] sm:%s448] %v485
                %v487 = vld [vmem:[%s455 + $0xb8] sm:%s448]
                %488 = vst [vmem:[%s456 + $0x78] sm:%s448] %v487
              $region85: #{tpu_custom_call.1} parent=79 // loop_footer
                %s454 = sadd.s32 1, %s450
              $region86: #{tpu_custom_call.1} parent=79 // loop_footer_branch
                %449 = sbr.rel target = $region82
              $region87: #{tpu_custom_call.1} parent=79 // loop_exit
                _
            $region80: #{tpu_custom_call.1} parent=71 // pred_fallthru
              _
          $region72: #{tpu_custom_call.1} parent=67 // pred_fallthru
            _
          %533 = vnop
        $region68: #{tpu_custom_call.1} parent=63 // pred_fallthru
          _
      $region64: #{tpu_custom_call.1} parent=5 // pred_fallthru
        _
      %p534 = scmp.le.s32.totalorder 1, %s22
      %p535 = scmp.lt.s32.totalorder %s22, 3
      %p536 = pnand %p534, %p535
      %p537 = pneg %p536
      // Predicated region
      $region103: #{tpu_custom_call.1} parent=5 // pred_check
        _
      $region104: #{tpu_custom_call.1} parent=5 // pred_check_branch
        %539 = sbr.rel (%p536) target = $region106
      $region105: #{tpu_custom_call.1} parent=5 // pred_region
        %s540 = ssub.s32 %s22, 1
        %s541 = sand.u32 %s49, 1
        %s542 = sand.u32 %s49, 1
        %s543 = smul.addr %s542, 128
        %s544 = scalar_lea.vmem [#allocation3], %s543
        // Predicated region
        $region107: #{tpu_custom_call.1} parent=105 // pred_check
          %p545 = pneg %p62
        $region108: #{tpu_custom_call.1} parent=105 // pred_check_branch
          %547 = sbr.rel (%p545) target = $region110
        $region109: #{tpu_custom_call.1} parent=105 // pred_region
          _
        $region110: #{tpu_custom_call.1} parent=105 // pred_fallthru
          _
        // Predicated region
        $region111: #{tpu_custom_call.1} parent=105 // pred_check
          %p548 = pneg %p167
        $region112: #{tpu_custom_call.1} parent=105 // pred_check_branch
          %550 = sbr.rel (%p548) target = $region114
        $region113: #{tpu_custom_call.1} parent=105 // pred_region
          %552 = dma.done [#allocation5], 8192
        $region114: #{tpu_custom_call.1} parent=105 // pred_fallthru
          _
        // Predicated region
        $region115: #{tpu_custom_call.1} parent=105 // pred_check
          %p553 = pneg %p209
        $region116: #{tpu_custom_call.1} parent=105 // pred_check_branch
          %555 = sbr.rel (%p553) target = $region118
        $region117: #{tpu_custom_call.1} parent=105 // pred_region
          %557 = dma.done [#allocation8], 32768
        $region118: #{tpu_custom_call.1} parent=105 // pred_fallthru
          _
        // Predicated region
        $region119: #{tpu_custom_call.1} parent=105 // pred_check
          %p558 = pneg %p251
        $region120: #{tpu_custom_call.1} parent=105 // pred_check_branch
          %560 = sbr.rel (%p558) target = $region122
        $region121: #{tpu_custom_call.1} parent=105 // pred_region
          %562 = dma.done [#allocation8], 8192
        $region122: #{tpu_custom_call.1} parent=105 // pred_fallthru
          _
        %s563 = sand.u32 %s49, 1
        %s564 = sand.u32 %s49, 1
        %s565 = smul.addr %s564, 128
        %s566 = scalar_lea.vmem [#allocation3], %s565
        %p567 = pneg %p62
        %p568 = pneg %p59
        %p569 = pneg %p83
        %p570 = pneg %p80
        %p571 = pneg %p104
        %p572 = pneg %p101
        %p573 = pneg %p125
        %p574 = pneg %p122
        %p575 = pneg %p146
        %p576 = pneg %p143
        %p577 = pneg %p167
        %p578 = pneg %p164
        %p579 = pneg %p188
        %p580 = pneg %p185
        %p581 = pneg %p209
        %p582 = pneg %p206
        %p583 = pneg %p230
        %p584 = pneg %p227
        %p585 = pneg %p251
        %p586 = pneg %p248
        %p587 = pneg %p272
        %p588 = pneg %p269
        %p589 = pneg %p293
        %p590 = pneg %p290
        %p591 = pneg %p314
        %p592 = pneg %p311
        %p593 = pneg %p340
        %p594 = pneg %p337
        %s595 = smul.u32 2, %s31
        %s596 = smul.u32 8, %s32
        %p597 = scmp.eq.s32.totalorder %s32, 0
        // Predicated region
        $region123: #{tpu_custom_call.1} parent=105 // pred_check
          %p598 = pneg %p597
        $region124: #{tpu_custom_call.1} parent=105 // pred_check_branch
          %600 = sbr.rel (%p598) target = $region126
        $region125: #{tpu_custom_call.1} parent=105 // pred_region
          %601 = vst [vmem:[#allocation2] sm:$0xff] -inf
          %602 = vst [vmem:[#allocation2 + $0x8] sm:$0xff] -inf
        $region126: #{tpu_custom_call.1} parent=105 // pred_fallthru
          _
        %v603 = vld [vmem:[%s544] sm:$0xff]
        %v604 = vld [vmem:[%s544 + $0x8] sm:$0xff]
        %v605 = vld [vmem:[%s544 + $0x10] sm:$0xff]
        %v606 = vld [vmem:[%s544 + $0x18] sm:$0xff]
        %v607 = vld [vmem:[%s544 + $0x20] sm:$0xff]
        %v608 = vld [vmem:[%s544 + $0x28] sm:$0xff]
        %v609 = vld [vmem:[%s544 + $0x30] sm:$0xff]
        %v610 = vld [vmem:[%s544 + $0x38] sm:$0xff]
        %s611 = scalar_lea.vmem %s544, 64 [#allocation3]
        %v612 = vld [vmem:[%s611] sm:$0xff]
        %v613 = vld [vmem:[%s611 + $0x8] sm:$0xff]
        %v614 = vld [vmem:[%s611 + $0x10] sm:$0xff]
        %v615 = vld [vmem:[%s611 + $0x18] sm:$0xff]
        %v616 = vld [vmem:[%s611 + $0x20] sm:$0xff]
        %v617 = vld [vmem:[%s611 + $0x28] sm:$0xff]
        %v618 = vld [vmem:[%s611 + $0x30] sm:$0xff]
        %v619 = vld [vmem:[%s611 + $0x38] sm:$0xff]
        %v620 = vld [vmem:[%s1] sm:$0x3]
        %v621 = vunpack.c.l.bf16 %v620
        %v622 = vld [vmem:[%s2] sm:$0x1]
        %v624 = vperm.slane %v622, 0
        %vm626 = vcmask 23552
        %v628 = vsel %vm626, %v603, 0
        %v631 = vsel %vm626, %v604, 0
        %v634 = vsel %vm626, %v605, 0
        %v637 = vsel %vm626, %v606, 0
        %v640 = vsel %vm626, %v607, 0
        %v643 = vsel %vm626, %v608, 0
        %v646 = vsel %vm626, %v609, 0
        %v649 = vsel %vm626, %v610, 0
        %v652 = vsel %vm626, %v612, 0
        %v655 = vsel %vm626, %v613, 0
        %v658 = vsel %vm626, %v614, 0
        %v661 = vsel %vm626, %v615, 0
        %v664 = vsel %vm626, %v616, 0
        %v667 = vsel %vm626, %v617, 0
        %v670 = vsel %vm626, %v618, 0
        %v673 = vsel %vm626, %v619, 0
        %vm675 = vcmask 1042432
        %v677 = vsel %vm675, %v621, 0
        %679 = vmatpush.msra.mxu0 0.0
        %680 = vmatpush.msra.mxu0 0.0
        %681 = vmatpush.msra.mxu0 0.0
        %682 = vmatpush.msra.mxu0 0.0
        %683 = vmatpush.msra.mxu0 0.0
        %684 = vmatpush.msra.mxu0 0.0
        %685 = vmatpush.msra.mxu0 0.0
        %686 = vmatpush.msra.mxu0 0.0
        %687 = vmatpush.msra.mxu0 0.0
        %688 = vmatpush.msra.mxu0 0.0
        %689 = vmatpush.msra.mxu0 0.0
        %690 = vmatpush.msra.mxu0 0.0
        %691 = vmatpush.msra.mxu0 0.0
        %692 = vmatpush.msra.mxu0 0.0
        %693 = vmatpush.msra.mxu0 0.0
        %694 = vmatpush.msra.mxu0 %v677
        %695 = vmatmul.f32.gmra.mxu0 %v628
        %v696 = vpop.f32.mrf.mxu0
        %v697 = vadd.f32 %v624, %v696
        %698 = vmatmul.f32.gmra.mxu0 %v631
        %v699 = vpop.f32.mrf.mxu0
        %v700 = vadd.f32 %v624, %v699
        %701 = vmatmul.f32.gmra.mxu0 %v634
        %v702 = vpop.f32.mrf.mxu0
        %v703 = vadd.f32 %v624, %v702
        %704 = vmatmul.f32.gmra.mxu0 %v637
        %v705 = vpop.f32.mrf.mxu0
        %v706 = vadd.f32 %v624, %v705
        %707 = vmatmul.f32.gmra.mxu0 %v640
        %v708 = vpop.f32.mrf.mxu0
        %v709 = vadd.f32 %v624, %v708
        %710 = vmatmul.f32.gmra.mxu0 %v643
        %v711 = vpop.f32.mrf.mxu0
        %v712 = vadd.f32 %v624, %v711
        %713 = vmatmul.f32.gmra.mxu0 %v646
        %v714 = vpop.f32.mrf.mxu0
        %v715 = vadd.f32 %v624, %v714
        %716 = vmatmul.f32.gmra.mxu0 %v649
        %v717 = vpop.f32.mrf.mxu0
        %v718 = vadd.f32 %v624, %v717
        %719 = vmatmul.f32.gmra.mxu0 %v652
        %v720 = vpop.f32.mrf.mxu0
        %v721 = vadd.f32 %v624, %v720
        %722 = vmatmul.f32.gmra.mxu0 %v655
        %v723 = vpop.f32.mrf.mxu0
        %v724 = vadd.f32 %v624, %v723
        %725 = vmatmul.f32.gmra.mxu0 %v658
        %v726 = vpop.f32.mrf.mxu0
        %v727 = vadd.f32 %v624, %v726
        %728 = vmatmul.f32.gmra.mxu0 %v661
        %v729 = vpop.f32.mrf.mxu0
        %v730 = vadd.f32 %v624, %v729
        %731 = vmatmul.f32.gmra.mxu0 %v664
        %v732 = vpop.f32.mrf.mxu0
        %v733 = vadd.f32 %v624, %v732
        %734 = vmatmul.f32.gmra.mxu0 %v667
        %v735 = vpop.f32.mrf.mxu0
        %v736 = vadd.f32 %v624, %v735
        %737 = vmatmul.f32.gmra.mxu0 %v670
        %v738 = vpop.f32.mrf.mxu0
        %v739 = vadd.f32 %v624, %v738
        %740 = vmatmul.f32.gmra.mxu0 %v673
        %v741 = vpop.f32.mrf.mxu0
        %v742 = vadd.f32 %v624, %v741
        %743 = vdwg.mxu0
        %v744 = vmax.f32 %v697, 0.0
        %v745 = vmax.f32 %v700, 0.0
        %v746 = vmax.f32 %v703, 0.0
        %v747 = vmax.f32 %v706, 0.0
        %v748 = vmax.f32 %v709, 0.0
        %v749 = vmax.f32 %v712, 0.0
        %v750 = vmax.f32 %v715, 0.0
        %v751 = vmax.f32 %v718, 0.0
        %v752 = vmax.f32 %v721, 0.0
        %v753 = vmax.f32 %v724, 0.0
        %v754 = vmax.f32 %v727, 0.0
        %v755 = vmax.f32 %v730, 0.0
        %v756 = vmax.f32 %v733, 0.0
        %v757 = vmax.f32 %v736, 0.0
        %v758 = vmax.f32 %v739, 0.0
        %v759 = vmax.f32 %v742, 0.0
        %v760 = vld [vmem:[%s3] sm:$0xf]
        %v761 = vld [vmem:[%s3 + $0x4] sm:$0xf]
        %v762 = vld [vmem:[%s3 + $0x8] sm:$0xf]
        %v763 = vld [vmem:[%s3 + $0xc] sm:$0xf]
        %v764 = vld [vmem:[%s3 + $0x10] sm:$0xf]
        %v765 = vld [vmem:[%s3 + $0x14] sm:$0xf]
        %v766 = vld [vmem:[%s3 + $0x18] sm:$0xf]
        %v767 = vld [vmem:[%s3 + $0x1c] sm:$0xf]
        %v768 = vunpack.c.l.bf16 %v760
        %v769 = vunpack.c.l.bf16 %v761
        %v770 = vunpack.c.l.bf16 %v762
        %v771 = vunpack.c.l.bf16 %v763
        %v772 = vunpack.c.l.bf16 %v764
        %v773 = vunpack.c.l.bf16 %v765
        %v774 = vunpack.c.l.bf16 %v766
        %v775 = vunpack.c.l.bf16 %v767
        %v776 = vld [vmem:[%s4] sm:$0x1]
        %v778 = vperm.slane %v776, 0
        %vm780 = vcmask 523264
        %v782 = vsel %vm780, %v744, 0
        %v785 = vsel %vm780, %v745, 0
        %v788 = vsel %vm780, %v746, 0
        %v791 = vsel %vm780, %v747, 0
        %v794 = vsel %vm780, %v748, 0
        %v797 = vsel %vm780, %v749, 0
        %v800 = vsel %vm780, %v750, 0
        %v803 = vsel %vm780, %v751, 0
        %v806 = vsel %vm780, %v752, 0
        %v809 = vsel %vm780, %v753, 0
        %v812 = vsel %vm780, %v754, 0
        %v815 = vsel %vm780, %v755, 0
        %v818 = vsel %vm780, %v756, 0
        %v821 = vsel %vm780, %v757, 0
        %v824 = vsel %vm780, %v758, 0
        %v827 = vsel %vm780, %v759, 0
        %829 = vmatpush.msra.mxu0 0.0
        %830 = vmatpush.msra.mxu0 0.0
        %831 = vmatpush.msra.mxu0 0.0
        %832 = vmatpush.msra.mxu0 0.0
        %833 = vmatpush.msra.mxu0 0.0
        %834 = vmatpush.msra.mxu0 0.0
        %835 = vmatpush.msra.mxu0 0.0
        %836 = vmatpush.msra.mxu0 0.0
        %837 = vmatpush.msra.mxu0 %v775
        %838 = vmatpush.msra.mxu0 %v774
        %839 = vmatpush.msra.mxu0 %v773
        %840 = vmatpush.msra.mxu0 %v772
        %841 = vmatpush.msra.mxu0 %v771
        %842 = vmatpush.msra.mxu0 %v770
        %843 = vmatpush.msra.mxu0 %v769
        %844 = vmatpush.msra.mxu0 %v768
        %845 = vmatmul.f32.gmra.mxu0 %v782
        %v846 = vpop.f32.mrf.mxu0
        %v847 = vadd.f32 %v778, %v846
        %848 = vmatmul.f32.gmra.mxu0 %v785
        %v849 = vpop.f32.mrf.mxu0
        %v850 = vadd.f32 %v778, %v849
        %851 = vmatmul.f32.gmra.mxu0 %v788
        %v852 = vpop.f32.mrf.mxu0
        %v853 = vadd.f32 %v778, %v852
        %854 = vmatmul.f32.gmra.mxu0 %v791
        %v855 = vpop.f32.mrf.mxu0
        %v856 = vadd.f32 %v778, %v855
        %857 = vmatmul.f32.gmra.mxu0 %v794
        %v858 = vpop.f32.mrf.mxu0
        %v859 = vadd.f32 %v778, %v858
        %860 = vmatmul.f32.gmra.mxu0 %v797
        %v861 = vpop.f32.mrf.mxu0
        %v862 = vadd.f32 %v778, %v861
        %863 = vmatmul.f32.gmra.mxu0 %v800
        %v864 = vpop.f32.mrf.mxu0
        %v865 = vadd.f32 %v778, %v864
        %866 = vmatmul.f32.gmra.mxu0 %v803
        %v867 = vpop.f32.mrf.mxu0
        %v868 = vadd.f32 %v778, %v867
        %869 = vmatmul.f32.gmra.mxu0 %v806
        %v870 = vpop.f32.mrf.mxu0
        %v871 = vadd.f32 %v778, %v870
        %872 = vmatmul.f32.gmra.mxu0 %v809
        %v873 = vpop.f32.mrf.mxu0
        %v874 = vadd.f32 %v778, %v873
        %875 = vmatmul.f32.gmra.mxu0 %v812
        %v876 = vpop.f32.mrf.mxu0
        %v877 = vadd.f32 %v778, %v876
        %878 = vmatmul.f32.gmra.mxu0 %v815
        %v879 = vpop.f32.mrf.mxu0
        %v880 = vadd.f32 %v778, %v879
        %881 = vmatmul.f32.gmra.mxu0 %v818
        %v882 = vpop.f32.mrf.mxu0
        %v883 = vadd.f32 %v778, %v882
        %884 = vmatmul.f32.gmra.mxu0 %v821
        %v885 = vpop.f32.mrf.mxu0
        %v886 = vadd.f32 %v778, %v885
        %887 = vmatmul.f32.gmra.mxu0 %v824
        %v888 = vpop.f32.mrf.mxu0
        %v889 = vadd.f32 %v778, %v888
        %890 = vmatmul.f32.gmra.mxu0 %v827
        %v891 = vpop.f32.mrf.mxu0
        %v892 = vadd.f32 %v778, %v891
        %893 = vdwg.mxu0
        %v894 = vmax.f32 %v847, 0.0
        %v895 = vmax.f32 %v850, 0.0
        %v896 = vmax.f32 %v853, 0.0
        %v897 = vmax.f32 %v856, 0.0
        %v898 = vmax.f32 %v859, 0.0
        %v899 = vmax.f32 %v862, 0.0
        %v900 = vmax.f32 %v865, 0.0
        %v901 = vmax.f32 %v868, 0.0
        %v902 = vmax.f32 %v871, 0.0
        %v903 = vmax.f32 %v874, 0.0
        %v904 = vmax.f32 %v877, 0.0
        %v905 = vmax.f32 %v880, 0.0
        %v906 = vmax.f32 %v883, 0.0
        %v907 = vmax.f32 %v886, 0.0
        %v908 = vmax.f32 %v889, 0.0
        %v909 = vmax.f32 %v892, 0.0
        %v910 = vld [vmem:[#allocation4] sm:$0xff]
        %v911 = vld [vmem:[#allocation4 + $0x8] sm:$0xff]
        %v912 = vld [vmem:[#allocation4 + $0x10] sm:$0xff]
        %v913 = vld [vmem:[#allocation4 + $0x18] sm:$0xff]
        %v914 = vld [vmem:[#allocation4 + $0x20] sm:$0xff]
        %v915 = vld [vmem:[#allocation4 + $0x28] sm:$0xff]
        %v916 = vld [vmem:[#allocation4 + $0x30] sm:$0xff]
        %v917 = vld [vmem:[#allocation4 + $0x38] sm:$0xff]
        %v918 = vld [vmem:[#allocation4 + $0x40] sm:$0xff]
        %v919 = vld [vmem:[#allocation4 + $0x48] sm:$0xff]
        %v920 = vld [vmem:[#allocation4 + $0x50] sm:$0xff]
        %v921 = vld [vmem:[#allocation4 + $0x58] sm:$0xff]
        %v922 = vld [vmem:[#allocation4 + $0x60] sm:$0xff]
        %v923 = vld [vmem:[#allocation4 + $0x68] sm:$0xff]
        %v924 = vld [vmem:[#allocation4 + $0x70] sm:$0xff]
        %v925 = vld [vmem:[#allocation4 + $0x78] sm:$0xff]
        %v926 = vld [vmem:[#allocation4 + $0x80] sm:$0xff]
        %v927 = vld [vmem:[#allocation4 + $0x88] sm:$0xff]
        %v928 = vld [vmem:[#allocation4 + $0x90] sm:$0xff]
        %v929 = vld [vmem:[#allocation4 + $0x98] sm:$0xff]
        %v930 = vld [vmem:[#allocation4 + $0xa0] sm:$0xff]
        %v931 = vld [vmem:[#allocation4 + $0xa8] sm:$0xff]
        %v932 = vld [vmem:[#allocation4 + $0xb0] sm:$0xff]
        %v933 = vld [vmem:[#allocation4 + $0xb8] sm:$0xff]
        %v934 = vld [vmem:[#allocation4 + $0xc0] sm:$0xff]
        %v935 = vld [vmem:[#allocation4 + $0xc8] sm:$0xff]
        %v936 = vld [vmem:[#allocation4 + $0xd0] sm:$0xff]
        %v937 = vld [vmem:[#allocation4 + $0xd8] sm:$0xff]
        %v938 = vld [vmem:[#allocation4 + $0xe0] sm:$0xff]
        %v939 = vld [vmem:[#allocation4 + $0xe8] sm:$0xff]
        %v940 = vld [vmem:[#allocation4 + $0xf0] sm:$0xff]
        %v941 = vld [vmem:[#allocation4 + $0xf8] sm:$0xff]
        %v942 = vld [vmem:[#allocation4 + $0x100] sm:$0xff]
        %v943 = vld [vmem:[#allocation4 + $0x108] sm:$0xff]
        %v944 = vld [vmem:[#allocation4 + $0x110] sm:$0xff]
        %v945 = vld [vmem:[#allocation4 + $0x118] sm:$0xff]
        %v946 = vld [vmem:[#allocation4 + $0x120] sm:$0xff]
        %v947 = vld [vmem:[#allocation4 + $0x128] sm:$0xff]
        %v948 = vld [vmem:[#allocation4 + $0x130] sm:$0xff]
        %v949 = vld [vmem:[#allocation4 + $0x138] sm:$0xff]
        %v950 = vld [vmem:[#allocation4 + $0x140] sm:$0xff]
        %v951 = vld [vmem:[#allocation4 + $0x148] sm:$0xff]
        %v952 = vld [vmem:[#allocation4 + $0x150] sm:$0xff]
        %v953 = vld [vmem:[#allocation4 + $0x158] sm:$0xff]
        %v954 = vld [vmem:[#allocation4 + $0x160] sm:$0xff]
        %v955 = vld [vmem:[#allocation4 + $0x168] sm:$0xff]
        %v956 = vld [vmem:[#allocation4 + $0x170] sm:$0xff]
        %v957 = vld [vmem:[#allocation4 + $0x178] sm:$0xff]
        %v958 = vld [vmem:[#allocation4 + $0x180] sm:$0xff]
        %v959 = vld [vmem:[#allocation4 + $0x188] sm:$0xff]
        %v960 = vld [vmem:[#allocation4 + $0x190] sm:$0xff]
        %v961 = vld [vmem:[#allocation4 + $0x198] sm:$0xff]
        %v962 = vld [vmem:[#allocation4 + $0x1a0] sm:$0xff]
        %v963 = vld [vmem:[#allocation4 + $0x1a8] sm:$0xff]
        %v964 = vld [vmem:[#allocation4 + $0x1b0] sm:$0xff]
        %v965 = vld [vmem:[#allocation4 + $0x1b8] sm:$0xff]
        %v966 = vld [vmem:[#allocation4 + $0x1c0] sm:$0xff]
        %v967 = vld [vmem:[#allocation4 + $0x1c8] sm:$0xff]
        %v968 = vld [vmem:[#allocation4 + $0x1d0] sm:$0xff]
        %v969 = vld [vmem:[#allocation4 + $0x1d8] sm:$0xff]
        %v970 = vld [vmem:[#allocation4 + $0x1e0] sm:$0xff]
        %v971 = vld [vmem:[#allocation4 + $0x1e8] sm:$0xff]
        %v972 = vld [vmem:[#allocation4 + $0x1f0] sm:$0xff]
        %v973 = vld [vmem:[#allocation4 + $0x1f8] sm:$0xff]
        %v974 = vunpack.c.l.bf16 %v910
        %v975 = vunpack.c.h.bf16 %v910
        %v976 = vunpack.c.l.bf16 %v911
        %v977 = vunpack.c.h.bf16 %v911
        %v978 = vunpack.c.l.bf16 %v912
        %v979 = vunpack.c.h.bf16 %v912
        %v980 = vunpack.c.l.bf16 %v913
        %v981 = vunpack.c.h.bf16 %v913
        %v982 = vunpack.c.l.bf16 %v914
        %v983 = vunpack.c.h.bf16 %v914
        %v984 = vunpack.c.l.bf16 %v915
        %v985 = vunpack.c.h.bf16 %v915
        %v986 = vunpack.c.l.bf16 %v916
        %v987 = vunpack.c.h.bf16 %v916
        %v988 = vunpack.c.l.bf16 %v917
        %v989 = vunpack.c.h.bf16 %v917
        %v990 = vunpack.c.l.bf16 %v918
        %v991 = vunpack.c.h.bf16 %v918
        %v992 = vunpack.c.l.bf16 %v919
        %v993 = vunpack.c.h.bf16 %v919
        %v994 = vunpack.c.l.bf16 %v920
        %v995 = vunpack.c.h.bf16 %v920
        %v996 = vunpack.c.l.bf16 %v921
        %v997 = vunpack.c.h.bf16 %v921
        %v998 = vunpack.c.l.bf16 %v922
        %v999 = vunpack.c.h.bf16 %v922
        %v1000 = vunpack.c.l.bf16 %v923
        %v1001 = vunpack.c.h.bf16 %v923
        %v1002 = vunpack.c.l.bf16 %v924
        %v1003 = vunpack.c.h.bf16 %v924
        %v1004 = vunpack.c.l.bf16 %v925
        %v1005 = vunpack.c.h.bf16 %v925
        %v1006 = vunpack.c.l.bf16 %v926
        %v1007 = vunpack.c.h.bf16 %v926
        %v1008 = vunpack.c.l.bf16 %v927
        %v1009 = vunpack.c.h.bf16 %v927
        %v1010 = vunpack.c.l.bf16 %v928
        %v1011 = vunpack.c.h.bf16 %v928
        %v1012 = vunpack.c.l.bf16 %v929
        %v1013 = vunpack.c.h.bf16 %v929
        %v1014 = vunpack.c.l.bf16 %v930
        %v1015 = vunpack.c.h.bf16 %v930
        %v1016 = vunpack.c.l.bf16 %v931
        %v1017 = vunpack.c.h.bf16 %v931
        %v1018 = vunpack.c.l.bf16 %v932
        %v1019 = vunpack.c.h.bf16 %v932
        %v1020 = vunpack.c.l.bf16 %v933
        %v1021 = vunpack.c.h.bf16 %v933
        %v1022 = vunpack.c.l.bf16 %v934
        %v1023 = vunpack.c.h.bf16 %v934
        %v1024 = vunpack.c.l.bf16 %v935
        %v1025 = vunpack.c.h.bf16 %v935
        %v1026 = vunpack.c.l.bf16 %v936
        %v1027 = vunpack.c.h.bf16 %v936
        %v1028 = vunpack.c.l.bf16 %v937
        %v1029 = vunpack.c.h.bf16 %v937
        %v1030 = vunpack.c.l.bf16 %v938
        %v1031 = vunpack.c.h.bf16 %v938
        %v1032 = vunpack.c.l.bf16 %v939
        %v1033 = vunpack.c.h.bf16 %v939
        %v1034 = vunpack.c.l.bf16 %v940
        %v1035 = vunpack.c.h.bf16 %v940
        %v1036 = vunpack.c.l.bf16 %v941
        %v1037 = vunpack.c.h.bf16 %v941
        %v1038 = vunpack.c.l.bf16 %v942
        %v1039 = vunpack.c.h.bf16 %v942
        %v1040 = vunpack.c.l.bf16 %v943
        %v1041 = vunpack.c.h.bf16 %v943
        %v1042 = vunpack.c.l.bf16 %v944
        %v1043 = vunpack.c.h.bf16 %v944
        %v1044 = vunpack.c.l.bf16 %v945
        %v1045 = vunpack.c.h.bf16 %v945
        %v1046 = vunpack.c.l.bf16 %v946
        %v1047 = vunpack.c.h.bf16 %v946
        %v1048 = vunpack.c.l.bf16 %v947
        %v1049 = vunpack.c.h.bf16 %v947
        %v1050 = vunpack.c.l.bf16 %v948
        %v1051 = vunpack.c.h.bf16 %v948
        %v1052 = vunpack.c.l.bf16 %v949
        %v1053 = vunpack.c.h.bf16 %v949
        %v1054 = vunpack.c.l.bf16 %v950
        %v1055 = vunpack.c.h.bf16 %v950
        %v1056 = vunpack.c.l.bf16 %v951
        %v1057 = vunpack.c.h.bf16 %v951
        %v1058 = vunpack.c.l.bf16 %v952
        %v1059 = vunpack.c.h.bf16 %v952
        %v1060 = vunpack.c.l.bf16 %v953
        %v1061 = vunpack.c.h.bf16 %v953
        %v1062 = vunpack.c.l.bf16 %v954
        %v1063 = vunpack.c.h.bf16 %v954
        %v1064 = vunpack.c.l.bf16 %v955
        %v1065 = vunpack.c.h.bf16 %v955
        %v1066 = vunpack.c.l.bf16 %v956
        %v1067 = vunpack.c.h.bf16 %v956
        %v1068 = vunpack.c.l.bf16 %v957
        %v1069 = vunpack.c.h.bf16 %v957
        %v1070 = vunpack.c.l.bf16 %v958
        %v1071 = vunpack.c.h.bf16 %v958
        %v1072 = vunpack.c.l.bf16 %v959
        %v1073 = vunpack.c.h.bf16 %v959
        %v1074 = vunpack.c.l.bf16 %v960
        %v1075 = vunpack.c.h.bf16 %v960
        %v1076 = vunpack.c.l.bf16 %v961
        %v1077 = vunpack.c.h.bf16 %v961
        %v1078 = vunpack.c.l.bf16 %v962
        %v1079 = vunpack.c.h.bf16 %v962
        %v1080 = vunpack.c.l.bf16 %v963
        %v1081 = vunpack.c.h.bf16 %v963
        %v1082 = vunpack.c.l.bf16 %v964
        %v1083 = vunpack.c.h.bf16 %v964
        %v1084 = vunpack.c.l.bf16 %v965
        %v1085 = vunpack.c.h.bf16 %v965
        %v1086 = vunpack.c.l.bf16 %v966
        %v1087 = vunpack.c.h.bf16 %v966
        %v1088 = vunpack.c.l.bf16 %v967
        %v1089 = vunpack.c.h.bf16 %v967
        %v1090 = vunpack.c.l.bf16 %v968
        %v1091 = vunpack.c.h.bf16 %v968
        %v1092 = vunpack.c.l.bf16 %v969
        %v1093 = vunpack.c.h.bf16 %v969
        %v1094 = vunpack.c.l.bf16 %v970
        %v1095 = vunpack.c.h.bf16 %v970
        %v1096 = vunpack.c.l.bf16 %v971
        %v1097 = vunpack.c.h.bf16 %v971
        %v1098 = vunpack.c.l.bf16 %v972
        %v1099 = vunpack.c.h.bf16 %v972
        %v1100 = vunpack.c.l.bf16 %v973
        %v1101 = vunpack.c.h.bf16 %v973
        %v1102 = vld [vmem:[%s6] sm:$0xff]
        %v1104 = vperm.slane %v1102, 0
        %v1105 = vperm.slane %v1102, 1
        %v1106 = vperm.slane %v1102, 2
        %v1107 = vperm.slane %v1102, 3
        %v1108 = vperm.slane %v1102, 4
        %v1109 = vperm.slane %v1102, 5
        %v1110 = vperm.slane %v1102, 6
        %v1111 = vperm.slane %v1102, 7
        %1120 = vmatpush.msra.mxu0 %v1094
        %1121 = vmatpush.msra.mxu0 %v1086
        %1122 = vmatpush.msra.mxu0 %v1078
        %1123 = vmatpush.msra.mxu0 %v1070
        %1124 = vmatpush.msra.mxu0 %v1062
        %1125 = vmatpush.msra.mxu0 %v1054
        %1126 = vmatpush.msra.mxu0 %v1046
        %1127 = vmatpush.msra.mxu0 %v1038
        %1128 = vmatpush.msra.mxu0 %v1030
        %1129 = vmatpush.msra.mxu0 %v1022
        %1130 = vmatpush.msra.mxu0 %v1014
        %1131 = vmatpush.msra.mxu0 %v1006
        %1132 = vmatpush.msra.mxu0 %v998
        %1133 = vmatpush.msra.mxu0 %v990
        %1134 = vmatpush.msra.mxu0 %v982
        %1135 = vmatpush.msra.mxu0 %v974
        %1136 = vmatmul.f32.gmra.mxu0 %v894
        %v1137 = vpop.f32.mrf.mxu0
        %v1138 = vadd.f32 %v1104, %v1137
        %1139 = vmatmul.f32.gmra.mxu0 %v895
        %v1140 = vpop.f32.mrf.mxu0
        %v1141 = vadd.f32 %v1104, %v1140
        %1142 = vmatmul.f32.gmra.mxu0 %v896
        %v1143 = vpop.f32.mrf.mxu0
        %v1144 = vadd.f32 %v1104, %v1143
        %1145 = vmatmul.f32.gmra.mxu0 %v897
        %v1146 = vpop.f32.mrf.mxu0
        %v1147 = vadd.f32 %v1104, %v1146
        %1148 = vmatmul.f32.gmra.mxu0 %v898
        %v1149 = vpop.f32.mrf.mxu0
        %v1150 = vadd.f32 %v1104, %v1149
        %1151 = vmatmul.f32.gmra.mxu0 %v899
        %v1152 = vpop.f32.mrf.mxu0
        %v1153 = vadd.f32 %v1104, %v1152
        %1154 = vmatmul.f32.gmra.mxu0 %v900
        %v1155 = vpop.f32.mrf.mxu0
        %v1156 = vadd.f32 %v1104, %v1155
        %1157 = vmatmul.f32.gmra.mxu0 %v901
        %v1158 = vpop.f32.mrf.mxu0
        %v1159 = vadd.f32 %v1104, %v1158
        %1160 = vmatmul.f32.gmra.mxu0 %v902
        %v1161 = vpop.f32.mrf.mxu0
        %v1162 = vadd.f32 %v1104, %v1161
        %1163 = vmatmul.f32.gmra.mxu0 %v903
        %v1164 = vpop.f32.mrf.mxu0
        %v1165 = vadd.f32 %v1104, %v1164
        %1166 = vmatmul.f32.gmra.mxu0 %v904
        %v1167 = vpop.f32.mrf.mxu0
        %v1168 = vadd.f32 %v1104, %v1167
        %1169 = vmatmul.f32.gmra.mxu0 %v905
        %v1170 = vpop.f32.mrf.mxu0
        %v1171 = vadd.f32 %v1104, %v1170
        %1172 = vmatmul.f32.gmra.mxu0 %v906
        %v1173 = vpop.f32.mrf.mxu0
        %v1174 = vadd.f32 %v1104, %v1173
        %1175 = vmatmul.f32.gmra.mxu0 %v907
        %v1176 = vpop.f32.mrf.mxu0
        %v1177 = vadd.f32 %v1104, %v1176
        %1178 = vmatmul.f32.gmra.mxu0 %v908
        %v1179 = vpop.f32.mrf.mxu0
        %v1180 = vadd.f32 %v1104, %v1179
        %1181 = vmatmul.f32.gmra.mxu0 %v909
        %v1182 = vpop.f32.mrf.mxu0
        %v1183 = vadd.f32 %v1104, %v1182
        %1184 = vdwg.mxu0
        %1185 = vmatpush.msra.mxu0 %v1095
        %1186 = vmatpush.msra.mxu0 %v1087
        %1187 = vmatpush.msra.mxu0 %v1079
        %1188 = vmatpush.msra.mxu0 %v1071
        %1189 = vmatpush.msra.mxu0 %v1063
        %1190 = vmatpush.msra.mxu0 %v1055
        %1191 = vmatpush.msra.mxu0 %v1047
        %1192 = vmatpush.msra.mxu0 %v1039
        %1193 = vmatpush.msra.mxu0 %v1031
        %1194 = vmatpush.msra.mxu0 %v1023
        %1195 = vmatpush.msra.mxu0 %v1015
        %1196 = vmatpush.msra.mxu0 %v1007
        %1197 = vmatpush.msra.mxu0 %v999
        %1198 = vmatpush.msra.mxu0 %v991
        %1199 = vmatpush.msra.mxu0 %v983
        %1200 = vmatpush.msra.mxu0 %v975
        %1201 = vmatmul.f32.gmra.mxu0 %v894
        %v1202 = vpop.f32.mrf.mxu0
        %v1203 = vadd.f32 %v1105, %v1202
        %1204 = vmatmul.f32.gmra.mxu0 %v895
        %v1205 = vpop.f32.mrf.mxu0
        %v1206 = vadd.f32 %v1105, %v1205
        %1207 = vmatmul.f32.gmra.mxu0 %v896
        %v1208 = vpop.f32.mrf.mxu0
        %v1209 = vadd.f32 %v1105, %v1208
        %1210 = vmatmul.f32.gmra.mxu0 %v897
        %v1211 = vpop.f32.mrf.mxu0
        %v1212 = vadd.f32 %v1105, %v1211
        %1213 = vmatmul.f32.gmra.mxu0 %v898
        %v1214 = vpop.f32.mrf.mxu0
        %v1215 = vadd.f32 %v1105, %v1214
        %1216 = vmatmul.f32.gmra.mxu0 %v899
        %v1217 = vpop.f32.mrf.mxu0
        %v1218 = vadd.f32 %v1105, %v1217
        %1219 = vmatmul.f32.gmra.mxu0 %v900
        %v1220 = vpop.f32.mrf.mxu0
        %v1221 = vadd.f32 %v1105, %v1220
        %1222 = vmatmul.f32.gmra.mxu0 %v901
        %v1223 = vpop.f32.mrf.mxu0
        %v1224 = vadd.f32 %v1105, %v1223
        %1225 = vmatmul.f32.gmra.mxu0 %v902
        %v1226 = vpop.f32.mrf.mxu0
        %v1227 = vadd.f32 %v1105, %v1226
        %1228 = vmatmul.f32.gmra.mxu0 %v903
        %v1229 = vpop.f32.mrf.mxu0
        %v1230 = vadd.f32 %v1105, %v1229
        %1231 = vmatmul.f32.gmra.mxu0 %v904
        %v1232 = vpop.f32.mrf.mxu0
        %v1233 = vadd.f32 %v1105, %v1232
        %1234 = vmatmul.f32.gmra.mxu0 %v905
        %v1235 = vpop.f32.mrf.mxu0
        %v1236 = vadd.f32 %v1105, %v1235
        %1237 = vmatmul.f32.gmra.mxu0 %v906
        %v1238 = vpop.f32.mrf.mxu0
        %v1239 = vadd.f32 %v1105, %v1238
        %1240 = vmatmul.f32.gmra.mxu0 %v907
        %v1241 = vpop.f32.mrf.mxu0
        %v1242 = vadd.f32 %v1105, %v1241
        %1243 = vmatmul.f32.gmra.mxu0 %v908
        %v1244 = vpop.f32.mrf.mxu0
        %v1245 = vadd.f32 %v1105, %v1244
        %1246 = vmatmul.f32.gmra.mxu0 %v909
        %v1247 = vpop.f32.mrf.mxu0
        %v1248 = vadd.f32 %v1105, %v1247
        %1249 = vdwg.mxu0
        %1250 = vmatpush.msra.mxu0 %v1096
        %1251 = vmatpush.msra.mxu0 %v1088
        %1252 = vmatpush.msra.mxu0 %v1080
        %1253 = vmatpush.msra.mxu0 %v1072
        %1254 = vmatpush.msra.mxu0 %v1064
        %1255 = vmatpush.msra.mxu0 %v1056
        %1256 = vmatpush.msra.mxu0 %v1048
        %1257 = vmatpush.msra.mxu0 %v1040
        %1258 = vmatpush.msra.mxu0 %v1032
        %1259 = vmatpush.msra.mxu0 %v1024
        %1260 = vmatpush.msra.mxu0 %v1016
        %1261 = vmatpush.msra.mxu0 %v1008
        %1262 = vmatpush.msra.mxu0 %v1000
        %1263 = vmatpush.msra.mxu0 %v992
        %1264 = vmatpush.msra.mxu0 %v984
        %1265 = vmatpush.msra.mxu0 %v976
        %1266 = vmatmul.f32.gmra.mxu0 %v894
        %v1267 = vpop.f32.mrf.mxu0
        %v1268 = vadd.f32 %v1106, %v1267
        %1269 = vmatmul.f32.gmra.mxu0 %v895
        %v1270 = vpop.f32.mrf.mxu0
        %v1271 = vadd.f32 %v1106, %v1270
        %1272 = vmatmul.f32.gmra.mxu0 %v896
        %v1273 = vpop.f32.mrf.mxu0
        %v1274 = vadd.f32 %v1106, %v1273
        %1275 = vmatmul.f32.gmra.mxu0 %v897
        %v1276 = vpop.f32.mrf.mxu0
        %v1277 = vadd.f32 %v1106, %v1276
        %1278 = vmatmul.f32.gmra.mxu0 %v898
        %v1279 = vpop.f32.mrf.mxu0
        %v1280 = vadd.f32 %v1106, %v1279
        %1281 = vmatmul.f32.gmra.mxu0 %v899
        %v1282 = vpop.f32.mrf.mxu0
        %v1283 = vadd.f32 %v1106, %v1282
        %1284 = vmatmul.f32.gmra.mxu0 %v900
        %v1285 = vpop.f32.mrf.mxu0
        %v1286 = vadd.f32 %v1106, %v1285
        %1287 = vmatmul.f32.gmra.mxu0 %v901
        %v1288 = vpop.f32.mrf.mxu0
        %v1289 = vadd.f32 %v1106, %v1288
        %1290 = vmatmul.f32.gmra.mxu0 %v902
        %v1291 = vpop.f32.mrf.mxu0
        %v1292 = vadd.f32 %v1106, %v1291
        %1293 = vmatmul.f32.gmra.mxu0 %v903
        %v1294 = vpop.f32.mrf.mxu0
        %v1295 = vadd.f32 %v1106, %v1294
        %1296 = vmatmul.f32.gmra.mxu0 %v904
        %v1297 = vpop.f32.mrf.mxu0
        %v1298 = vadd.f32 %v1106, %v1297
        %1299 = vmatmul.f32.gmra.mxu0 %v905
        %v1300 = vpop.f32.mrf.mxu0
        %v1301 = vadd.f32 %v1106, %v1300
        %1302 = vmatmul.f32.gmra.mxu0 %v906
        %v1303 = vpop.f32.mrf.mxu0
        %v1304 = vadd.f32 %v1106, %v1303
        %1305 = vmatmul.f32.gmra.mxu0 %v907
        %v1306 = vpop.f32.mrf.mxu0
        %v1307 = vadd.f32 %v1106, %v1306
        %1308 = vmatmul.f32.gmra.mxu0 %v908
        %v1309 = vpop.f32.mrf.mxu0
        %v1310 = vadd.f32 %v1106, %v1309
        %1311 = vmatmul.f32.gmra.mxu0 %v909
        %v1312 = vpop.f32.mrf.mxu0
        %v1313 = vadd.f32 %v1106, %v1312
        %1314 = vdwg.mxu0
        %1315 = vmatpush.msra.mxu0 %v1097
        %1316 = vmatpush.msra.mxu0 %v1089
        %1317 = vmatpush.msra.mxu0 %v1081
        %1318 = vmatpush.msra.mxu0 %v1073
        %1319 = vmatpush.msra.mxu0 %v1065
        %1320 = vmatpush.msra.mxu0 %v1057
        %1321 = vmatpush.msra.mxu0 %v1049
        %1322 = vmatpush.msra.mxu0 %v1041
        %1323 = vmatpush.msra.mxu0 %v1033
        %1324 = vmatpush.msra.mxu0 %v1025
        %1325 = vmatpush.msra.mxu0 %v1017
        %1326 = vmatpush.msra.mxu0 %v1009
        %1327 = vmatpush.msra.mxu0 %v1001
        %1328 = vmatpush.msra.mxu0 %v993
        %1329 = vmatpush.msra.mxu0 %v985
        %1330 = vmatpush.msra.mxu0 %v977
        %1331 = vmatmul.f32.gmra.mxu0 %v894
        %v1332 = vpop.f32.mrf.mxu0
        %v1333 = vadd.f32 %v1107, %v1332
        %1334 = vmatmul.f32.gmra.mxu0 %v895
        %v1335 = vpop.f32.mrf.mxu0
        %v1336 = vadd.f32 %v1107, %v1335
        %1337 = vmatmul.f32.gmra.mxu0 %v896
        %v1338 = vpop.f32.mrf.mxu0
        %v1339 = vadd.f32 %v1107, %v1338
        %1340 = vmatmul.f32.gmra.mxu0 %v897
        %v1341 = vpop.f32.mrf.mxu0
        %v1342 = vadd.f32 %v1107, %v1341
        %1343 = vmatmul.f32.gmra.mxu0 %v898
        %v1344 = vpop.f32.mrf.mxu0
        %v1345 = vadd.f32 %v1107, %v1344
        %1346 = vmatmul.f32.gmra.mxu0 %v899
        %v1347 = vpop.f32.mrf.mxu0
        %v1348 = vadd.f32 %v1107, %v1347
        %1349 = vmatmul.f32.gmra.mxu0 %v900
        %v1350 = vpop.f32.mrf.mxu0
        %v1351 = vadd.f32 %v1107, %v1350
        %1352 = vmatmul.f32.gmra.mxu0 %v901
        %v1353 = vpop.f32.mrf.mxu0
        %v1354 = vadd.f32 %v1107, %v1353
        %1355 = vmatmul.f32.gmra.mxu0 %v902
        %v1356 = vpop.f32.mrf.mxu0
        %v1357 = vadd.f32 %v1107, %v1356
        %1358 = vmatmul.f32.gmra.mxu0 %v903
        %v1359 = vpop.f32.mrf.mxu0
        %v1360 = vadd.f32 %v1107, %v1359
        %1361 = vmatmul.f32.gmra.mxu0 %v904
        %v1362 = vpop.f32.mrf.mxu0
        %v1363 = vadd.f32 %v1107, %v1362
        %1364 = vmatmul.f32.gmra.mxu0 %v905
        %v1365 = vpop.f32.mrf.mxu0
        %v1366 = vadd.f32 %v1107, %v1365
        %1367 = vmatmul.f32.gmra.mxu0 %v906
        %v1368 = vpop.f32.mrf.mxu0
        %v1369 = vadd.f32 %v1107, %v1368
        %1370 = vmatmul.f32.gmra.mxu0 %v907
        %v1371 = vpop.f32.mrf.mxu0
        %v1372 = vadd.f32 %v1107, %v1371
        %1373 = vmatmul.f32.gmra.mxu0 %v908
        %v1374 = vpop.f32.mrf.mxu0
        %v1375 = vadd.f32 %v1107, %v1374
        %1376 = vmatmul.f32.gmra.mxu0 %v909
        %v1377 = vpop.f32.mrf.mxu0
        %v1378 = vadd.f32 %v1107, %v1377
        %1379 = vdwg.mxu0
        %1380 = vmatpush.msra.mxu0 %v1098
        %1381 = vmatpush.msra.mxu0 %v1090
        %1382 = vmatpush.msra.mxu0 %v1082
        %1383 = vmatpush.msra.mxu0 %v1074
        %1384 = vmatpush.msra.mxu0 %v1066
        %1385 = vmatpush.msra.mxu0 %v1058
        %1386 = vmatpush.msra.mxu0 %v1050
        %1387 = vmatpush.msra.mxu0 %v1042
        %1388 = vmatpush.msra.mxu0 %v1034
        %1389 = vmatpush.msra.mxu0 %v1026
        %1390 = vmatpush.msra.mxu0 %v1018
        %1391 = vmatpush.msra.mxu0 %v1010
        %1392 = vmatpush.msra.mxu0 %v1002
        %1393 = vmatpush.msra.mxu0 %v994
        %1394 = vmatpush.msra.mxu0 %v986
        %1395 = vmatpush.msra.mxu0 %v978
        %1396 = vmatmul.f32.gmra.mxu0 %v894
        %v1397 = vpop.f32.mrf.mxu0
        %v1398 = vadd.f32 %v1108, %v1397
        %1399 = vmatmul.f32.gmra.mxu0 %v895
        %v1400 = vpop.f32.mrf.mxu0
        %v1401 = vadd.f32 %v1108, %v1400
        %1402 = vmatmul.f32.gmra.mxu0 %v896
        %v1403 = vpop.f32.mrf.mxu0
        %v1404 = vadd.f32 %v1108, %v1403
        %1405 = vmatmul.f32.gmra.mxu0 %v897
        %v1406 = vpop.f32.mrf.mxu0
        %v1407 = vadd.f32 %v1108, %v1406
        %1408 = vmatmul.f32.gmra.mxu0 %v898
        %v1409 = vpop.f32.mrf.mxu0
        %v1410 = vadd.f32 %v1108, %v1409
        %1411 = vmatmul.f32.gmra.mxu0 %v899
        %v1412 = vpop.f32.mrf.mxu0
        %v1413 = vadd.f32 %v1108, %v1412
        %1414 = vmatmul.f32.gmra.mxu0 %v900
        %v1415 = vpop.f32.mrf.mxu0
        %v1416 = vadd.f32 %v1108, %v1415
        %1417 = vmatmul.f32.gmra.mxu0 %v901
        %v1418 = vpop.f32.mrf.mxu0
        %v1419 = vadd.f32 %v1108, %v1418
        %1420 = vmatmul.f32.gmra.mxu0 %v902
        %v1421 = vpop.f32.mrf.mxu0
        %v1422 = vadd.f32 %v1108, %v1421
        %1423 = vmatmul.f32.gmra.mxu0 %v903
        %v1424 = vpop.f32.mrf.mxu0
        %v1425 = vadd.f32 %v1108, %v1424
        %1426 = vmatmul.f32.gmra.mxu0 %v904
        %v1427 = vpop.f32.mrf.mxu0
        %v1428 = vadd.f32 %v1108, %v1427
        %1429 = vmatmul.f32.gmra.mxu0 %v905
        %v1430 = vpop.f32.mrf.mxu0
        %v1431 = vadd.f32 %v1108, %v1430
        %1432 = vmatmul.f32.gmra.mxu0 %v906
        %v1433 = vpop.f32.mrf.mxu0
        %v1434 = vadd.f32 %v1108, %v1433
        %1435 = vmatmul.f32.gmra.mxu0 %v907
        %v1436 = vpop.f32.mrf.mxu0
        %v1437 = vadd.f32 %v1108, %v1436
        %1438 = vmatmul.f32.gmra.mxu0 %v908
        %v1439 = vpop.f32.mrf.mxu0
        %v1440 = vadd.f32 %v1108, %v1439
        %1441 = vmatmul.f32.gmra.mxu0 %v909
        %v1442 = vpop.f32.mrf.mxu0
        %v1443 = vadd.f32 %v1108, %v1442
        %1444 = vdwg.mxu0
        %1445 = vmatpush.msra.mxu0 %v1099
        %1446 = vmatpush.msra.mxu0 %v1091
        %1447 = vmatpush.msra.mxu0 %v1083
        %1448 = vmatpush.msra.mxu0 %v1075
        %1449 = vmatpush.msra.mxu0 %v1067
        %1450 = vmatpush.msra.mxu0 %v1059
        %1451 = vmatpush.msra.mxu0 %v1051
        %1452 = vmatpush.msra.mxu0 %v1043
        %1453 = vmatpush.msra.mxu0 %v1035
        %1454 = vmatpush.msra.mxu0 %v1027
        %1455 = vmatpush.msra.mxu0 %v1019
        %1456 = vmatpush.msra.mxu0 %v1011
        %1457 = vmatpush.msra.mxu0 %v1003
        %1458 = vmatpush.msra.mxu0 %v995
        %1459 = vmatpush.msra.mxu0 %v987
        %1460 = vmatpush.msra.mxu0 %v979
        %1461 = vmatmul.f32.gmra.mxu0 %v894
        %v1462 = vpop.f32.mrf.mxu0
        %v1463 = vadd.f32 %v1109, %v1462
        %1464 = vmatmul.f32.gmra.mxu0 %v895
        %v1465 = vpop.f32.mrf.mxu0
        %v1466 = vadd.f32 %v1109, %v1465
        %1467 = vmatmul.f32.gmra.mxu0 %v896
        %v1468 = vpop.f32.mrf.mxu0
        %v1469 = vadd.f32 %v1109, %v1468
        %1470 = vmatmul.f32.gmra.mxu0 %v897
        %v1471 = vpop.f32.mrf.mxu0
        %v1472 = vadd.f32 %v1109, %v1471
        %1473 = vmatmul.f32.gmra.mxu0 %v898
        %v1474 = vpop.f32.mrf.mxu0
        %v1475 = vadd.f32 %v1109, %v1474
        %1476 = vmatmul.f32.gmra.mxu0 %v899
        %v1477 = vpop.f32.mrf.mxu0
        %v1478 = vadd.f32 %v1109, %v1477
        %1479 = vmatmul.f32.gmra.mxu0 %v900
        %v1480 = vpop.f32.mrf.mxu0
        %v1481 = vadd.f32 %v1109, %v1480
        %1482 = vmatmul.f32.gmra.mxu0 %v901
        %v1483 = vpop.f32.mrf.mxu0
        %v1484 = vadd.f32 %v1109, %v1483
        %1485 = vmatmul.f32.gmra.mxu0 %v902
        %v1486 = vpop.f32.mrf.mxu0
        %v1487 = vadd.f32 %v1109, %v1486
        %1488 = vmatmul.f32.gmra.mxu0 %v903
        %v1489 = vpop.f32.mrf.mxu0
        %v1490 = vadd.f32 %v1109, %v1489
        %1491 = vmatmul.f32.gmra.mxu0 %v904
        %v1492 = vpop.f32.mrf.mxu0
        %v1493 = vadd.f32 %v1109, %v1492
        %1494 = vmatmul.f32.gmra.mxu0 %v905
        %v1495 = vpop.f32.mrf.mxu0
        %v1496 = vadd.f32 %v1109, %v1495
        %1497 = vmatmul.f32.gmra.mxu0 %v906
        %v1498 = vpop.f32.mrf.mxu0
        %v1499 = vadd.f32 %v1109, %v1498
        %1500 = vmatmul.f32.gmra.mxu0 %v907
        %v1501 = vpop.f32.mrf.mxu0
        %v1502 = vadd.f32 %v1109, %v1501
        %1503 = vmatmul.f32.gmra.mxu0 %v908
        %v1504 = vpop.f32.mrf.mxu0
        %v1505 = vadd.f32 %v1109, %v1504
        %1506 = vmatmul.f32.gmra.mxu0 %v909
        %v1507 = vpop.f32.mrf.mxu0
        %v1508 = vadd.f32 %v1109, %v1507
        %1509 = vdwg.mxu0
        %1510 = vmatpush.msra.mxu0 %v1100
        %1511 = vmatpush.msra.mxu0 %v1092
        %1512 = vmatpush.msra.mxu0 %v1084
        %1513 = vmatpush.msra.mxu0 %v1076
        %1514 = vmatpush.msra.mxu0 %v1068
        %1515 = vmatpush.msra.mxu0 %v1060
        %1516 = vmatpush.msra.mxu0 %v1052
        %1517 = vmatpush.msra.mxu0 %v1044
        %1518 = vmatpush.msra.mxu0 %v1036
        %1519 = vmatpush.msra.mxu0 %v1028
        %1520 = vmatpush.msra.mxu0 %v1020
        %1521 = vmatpush.msra.mxu0 %v1012
        %1522 = vmatpush.msra.mxu0 %v1004
        %1523 = vmatpush.msra.mxu0 %v996
        %1524 = vmatpush.msra.mxu0 %v988
        %1525 = vmatpush.msra.mxu0 %v980
        %1526 = vmatmul.f32.gmra.mxu0 %v894
        %v1527 = vpop.f32.mrf.mxu0
        %v1528 = vadd.f32 %v1110, %v1527
        %1529 = vmatmul.f32.gmra.mxu0 %v895
        %v1530 = vpop.f32.mrf.mxu0
        %v1531 = vadd.f32 %v1110, %v1530
        %1532 = vmatmul.f32.gmra.mxu0 %v896
        %v1533 = vpop.f32.mrf.mxu0
        %v1534 = vadd.f32 %v1110, %v1533
        %1535 = vmatmul.f32.gmra.mxu0 %v897
        %v1536 = vpop.f32.mrf.mxu0
        %v1537 = vadd.f32 %v1110, %v1536
        %1538 = vmatmul.f32.gmra.mxu0 %v898
        %v1539 = vpop.f32.mrf.mxu0
        %v1540 = vadd.f32 %v1110, %v1539
        %1541 = vmatmul.f32.gmra.mxu0 %v899
        %v1542 = vpop.f32.mrf.mxu0
        %v1543 = vadd.f32 %v1110, %v1542
        %1544 = vmatmul.f32.gmra.mxu0 %v900
        %v1545 = vpop.f32.mrf.mxu0
        %v1546 = vadd.f32 %v1110, %v1545
        %1547 = vmatmul.f32.gmra.mxu0 %v901
        %v1548 = vpop.f32.mrf.mxu0
        %v1549 = vadd.f32 %v1110, %v1548
        %1550 = vmatmul.f32.gmra.mxu0 %v902
        %v1551 = vpop.f32.mrf.mxu0
        %v1552 = vadd.f32 %v1110, %v1551
        %1553 = vmatmul.f32.gmra.mxu0 %v903
        %v1554 = vpop.f32.mrf.mxu0
        %v1555 = vadd.f32 %v1110, %v1554
        %1556 = vmatmul.f32.gmra.mxu0 %v904
        %v1557 = vpop.f32.mrf.mxu0
        %v1558 = vadd.f32 %v1110, %v1557
        %1559 = vmatmul.f32.gmra.mxu0 %v905
        %v1560 = vpop.f32.mrf.mxu0
        %v1561 = vadd.f32 %v1110, %v1560
        %1562 = vmatmul.f32.gmra.mxu0 %v906
        %v1563 = vpop.f32.mrf.mxu0
        %v1564 = vadd.f32 %v1110, %v1563
        %1565 = vmatmul.f32.gmra.mxu0 %v907
        %v1566 = vpop.f32.mrf.mxu0
        %v1567 = vadd.f32 %v1110, %v1566
        %1568 = vmatmul.f32.gmra.mxu0 %v908
        %v1569 = vpop.f32.mrf.mxu0
        %v1570 = vadd.f32 %v1110, %v1569
        %1571 = vmatmul.f32.gmra.mxu0 %v909
        %v1572 = vpop.f32.mrf.mxu0
        %v1573 = vadd.f32 %v1110, %v1572
        %1574 = vdwg.mxu0
        %1575 = vmatpush.msra.mxu0 %v1101
        %1576 = vmatpush.msra.mxu0 %v1093
        %1577 = vmatpush.msra.mxu0 %v1085
        %1578 = vmatpush.msra.mxu0 %v1077
        %1579 = vmatpush.msra.mxu0 %v1069
        %1580 = vmatpush.msra.mxu0 %v1061
        %1581 = vmatpush.msra.mxu0 %v1053
        %1582 = vmatpush.msra.mxu0 %v1045
        %1583 = vmatpush.msra.mxu0 %v1037
        %1584 = vmatpush.msra.mxu0 %v1029
        %1585 = vmatpush.msra.mxu0 %v1021
        %1586 = vmatpush.msra.mxu0 %v1013
        %1587 = vmatpush.msra.mxu0 %v1005
        %1588 = vmatpush.msra.mxu0 %v997
        %1589 = vmatpush.msra.mxu0 %v989
        %1590 = vmatpush.msra.mxu0 %v981
        %1591 = vmatmul.f32.gmra.mxu0 %v894
        %v1592 = vpop.f32.mrf.mxu0
        %v1593 = vadd.f32 %v1111, %v1592
        %1594 = vmatmul.f32.gmra.mxu0 %v895
        %v1595 = vpop.f32.mrf.mxu0
        %v1596 = vadd.f32 %v1111, %v1595
        %1597 = vmatmul.f32.gmra.mxu0 %v896
        %v1598 = vpop.f32.mrf.mxu0
        %v1599 = vadd.f32 %v1111, %v1598
        %1600 = vmatmul.f32.gmra.mxu0 %v897
        %v1601 = vpop.f32.mrf.mxu0
        %v1602 = vadd.f32 %v1111, %v1601
        %1603 = vmatmul.f32.gmra.mxu0 %v898
        %v1604 = vpop.f32.mrf.mxu0
        %v1605 = vadd.f32 %v1111, %v1604
        %1606 = vmatmul.f32.gmra.mxu0 %v899
        %v1607 = vpop.f32.mrf.mxu0
        %v1608 = vadd.f32 %v1111, %v1607
        %1609 = vmatmul.f32.gmra.mxu0 %v900
        %v1610 = vpop.f32.mrf.mxu0
        %v1611 = vadd.f32 %v1111, %v1610
        %1612 = vmatmul.f32.gmra.mxu0 %v901
        %v1613 = vpop.f32.mrf.mxu0
        %v1614 = vadd.f32 %v1111, %v1613
        %1615 = vmatmul.f32.gmra.mxu0 %v902
        %v1616 = vpop.f32.mrf.mxu0
        %v1617 = vadd.f32 %v1111, %v1616
        %1618 = vmatmul.f32.gmra.mxu0 %v903
        %v1619 = vpop.f32.mrf.mxu0
        %v1620 = vadd.f32 %v1111, %v1619
        %1621 = vmatmul.f32.gmra.mxu0 %v904
        %v1622 = vpop.f32.mrf.mxu0
        %v1623 = vadd.f32 %v1111, %v1622
        %1624 = vmatmul.f32.gmra.mxu0 %v905
        %v1625 = vpop.f32.mrf.mxu0
        %v1626 = vadd.f32 %v1111, %v1625
        %1627 = vmatmul.f32.gmra.mxu0 %v906
        %v1628 = vpop.f32.mrf.mxu0
        %v1629 = vadd.f32 %v1111, %v1628
        %1630 = vmatmul.f32.gmra.mxu0 %v907
        %v1631 = vpop.f32.mrf.mxu0
        %v1632 = vadd.f32 %v1111, %v1631
        %1633 = vmatmul.f32.gmra.mxu0 %v908
        %v1634 = vpop.f32.mrf.mxu0
        %v1635 = vadd.f32 %v1111, %v1634
        %1636 = vmatmul.f32.gmra.mxu0 %v909
        %v1637 = vpop.f32.mrf.mxu0
        %v1638 = vadd.f32 %v1111, %v1637
        %1639 = vdwg.mxu0
        %v1640 = vmax.f32 %v1138, 0.0
        %v1641 = vmax.f32 %v1203, 0.0
        %v1642 = vmax.f32 %v1268, 0.0
        %v1643 = vmax.f32 %v1333, 0.0
        %v1644 = vmax.f32 %v1398, 0.0
        %v1645 = vmax.f32 %v1463, 0.0
        %v1646 = vmax.f32 %v1528, 0.0
        %v1647 = vmax.f32 %v1593, 0.0
        %v1648 = vmax.f32 %v1141, 0.0
        %v1649 = vmax.f32 %v1206, 0.0
        %v1650 = vmax.f32 %v1271, 0.0
        %v1651 = vmax.f32 %v1336, 0.0
        %v1652 = vmax.f32 %v1401, 0.0
        %v1653 = vmax.f32 %v1466, 0.0
        %v1654 = vmax.f32 %v1531, 0.0
        %v1655 = vmax.f32 %v1596, 0.0
        %v1656 = vmax.f32 %v1144, 0.0
        %v1657 = vmax.f32 %v1209, 0.0
        %v1658 = vmax.f32 %v1274, 0.0
        %v1659 = vmax.f32 %v1339, 0.0
        %v1660 = vmax.f32 %v1404, 0.0
        %v1661 = vmax.f32 %v1469, 0.0
        %v1662 = vmax.f32 %v1534, 0.0
        %v1663 = vmax.f32 %v1599, 0.0
        %v1664 = vmax.f32 %v1147, 0.0
        %v1665 = vmax.f32 %v1212, 0.0
        %v1666 = vmax.f32 %v1277, 0.0
        %v1667 = vmax.f32 %v1342, 0.0
        %v1668 = vmax.f32 %v1407, 0.0
        %v1669 = vmax.f32 %v1472, 0.0
        %v1670 = vmax.f32 %v1537, 0.0
        %v1671 = vmax.f32 %v1602, 0.0
        %v1672 = vmax.f32 %v1150, 0.0
        %v1673 = vmax.f32 %v1215, 0.0
        %v1674 = vmax.f32 %v1280, 0.0
        %v1675 = vmax.f32 %v1345, 0.0
        %v1676 = vmax.f32 %v1410, 0.0
        %v1677 = vmax.f32 %v1475, 0.0
        %v1678 = vmax.f32 %v1540, 0.0
        %v1679 = vmax.f32 %v1605, 0.0
        %v1680 = vmax.f32 %v1153, 0.0
        %v1681 = vmax.f32 %v1218, 0.0
        %v1682 = vmax.f32 %v1283, 0.0
        %v1683 = vmax.f32 %v1348, 0.0
        %v1684 = vmax.f32 %v1413, 0.0
        %v1685 = vmax.f32 %v1478, 0.0
        %v1686 = vmax.f32 %v1543, 0.0
        %v1687 = vmax.f32 %v1608, 0.0
        %v1688 = vmax.f32 %v1156, 0.0
        %v1689 = vmax.f32 %v1221, 0.0
        %v1690 = vmax.f32 %v1286, 0.0
        %v1691 = vmax.f32 %v1351, 0.0
        %v1692 = vmax.f32 %v1416, 0.0
        %v1693 = vmax.f32 %v1481, 0.0
        %v1694 = vmax.f32 %v1546, 0.0
        %v1695 = vmax.f32 %v1611, 0.0
        %v1696 = vmax.f32 %v1159, 0.0
        %v1697 = vmax.f32 %v1224, 0.0
        %v1698 = vmax.f32 %v1289, 0.0
        %v1699 = vmax.f32 %v1354, 0.0
        %v1700 = vmax.f32 %v1419, 0.0
        %v1701 = vmax.f32 %v1484, 0.0
        %v1702 = vmax.f32 %v1549, 0.0
        %v1703 = vmax.f32 %v1614, 0.0
        %v1704 = vmax.f32 %v1162, 0.0
        %v1705 = vmax.f32 %v1227, 0.0
        %v1706 = vmax.f32 %v1292, 0.0
        %v1707 = vmax.f32 %v1357, 0.0
        %v1708 = vmax.f32 %v1422, 0.0
        %v1709 = vmax.f32 %v1487, 0.0
        %v1710 = vmax.f32 %v1552, 0.0
        %v1711 = vmax.f32 %v1617, 0.0
        %v1712 = vmax.f32 %v1165, 0.0
        %v1713 = vmax.f32 %v1230, 0.0
        %v1714 = vmax.f32 %v1295, 0.0
        %v1715 = vmax.f32 %v1360, 0.0
        %v1716 = vmax.f32 %v1425, 0.0
        %v1717 = vmax.f32 %v1490, 0.0
        %v1718 = vmax.f32 %v1555, 0.0
        %v1719 = vmax.f32 %v1620, 0.0
        %v1720 = vmax.f32 %v1168, 0.0
        %v1721 = vmax.f32 %v1233, 0.0
        %v1722 = vmax.f32 %v1298, 0.0
        %v1723 = vmax.f32 %v1363, 0.0
        %v1724 = vmax.f32 %v1428, 0.0
        %v1725 = vmax.f32 %v1493, 0.0
        %v1726 = vmax.f32 %v1558, 0.0
        %v1727 = vmax.f32 %v1623, 0.0
        %v1728 = vmax.f32 %v1171, 0.0
        %v1729 = vmax.f32 %v1236, 0.0
        %v1730 = vmax.f32 %v1301, 0.0
        %v1731 = vmax.f32 %v1366, 0.0
        %v1732 = vmax.f32 %v1431, 0.0
        %v1733 = vmax.f32 %v1496, 0.0
        %v1734 = vmax.f32 %v1561, 0.0
        %v1735 = vmax.f32 %v1626, 0.0
        %v1736 = vmax.f32 %v1174, 0.0
        %v1737 = vmax.f32 %v1239, 0.0
        %v1738 = vmax.f32 %v1304, 0.0
        %v1739 = vmax.f32 %v1369, 0.0
        %v1740 = vmax.f32 %v1434, 0.0
        %v1741 = vmax.f32 %v1499, 0.0
        %v1742 = vmax.f32 %v1564, 0.0
        %v1743 = vmax.f32 %v1629, 0.0
        %v1744 = vmax.f32 %v1177, 0.0
        %v1745 = vmax.f32 %v1242, 0.0
        %v1746 = vmax.f32 %v1307, 0.0
        %v1747 = vmax.f32 %v1372, 0.0
        %v1748 = vmax.f32 %v1437, 0.0
        %v1749 = vmax.f32 %v1502, 0.0
        %v1750 = vmax.f32 %v1567, 0.0
        %v1751 = vmax.f32 %v1632, 0.0
        %v1752 = vmax.f32 %v1180, 0.0
        %v1753 = vmax.f32 %v1245, 0.0
        %v1754 = vmax.f32 %v1310, 0.0
        %v1755 = vmax.f32 %v1375, 0.0
        %v1756 = vmax.f32 %v1440, 0.0
        %v1757 = vmax.f32 %v1505, 0.0
        %v1758 = vmax.f32 %v1570, 0.0
        %v1759 = vmax.f32 %v1635, 0.0
        %v1760 = vmax.f32 %v1183, 0.0
        %v1761 = vmax.f32 %v1248, 0.0
        %v1762 = vmax.f32 %v1313, 0.0
        %v1763 = vmax.f32 %v1378, 0.0
        %v1764 = vmax.f32 %v1443, 0.0
        %v1765 = vmax.f32 %v1508, 0.0
        %v1766 = vmax.f32 %v1573, 0.0
        %v1767 = vmax.f32 %v1638, 0.0
        %v1768 = vld [vmem:[#allocation2] sm:$0xff]
        %v1769 = vld [vmem:[#allocation2 + $0x8] sm:$0xff]
        %v1770 = vmax.f32 %v1640, %v1648
        %v1771 = vmax.f32 %v1770, %v1656
        %v1772 = vmax.f32 %v1771, %v1664
        %v1773 = vmax.f32 %v1772, %v1672
        %v1774 = vmax.f32 %v1773, %v1680
        %v1775 = vmax.f32 %v1774, %v1688
        %v1776 = vmax.f32 %v1775, %v1696
        %v1777 = vrot.slane %v1776, 4
        %v1778 = vmax.f32 %v1776, %v1777
        %v1779 = vrot.slane %v1778, 2
        %v1780 = vmax.f32 %v1778, %v1779
        %v1781 = vrot.slane %v1780, 1
        %v1782 = vmax.f32 %v1780, %v1781
        %v1783 = vmax.f32 %v1641, %v1649
        %v1784 = vmax.f32 %v1783, %v1657
        %v1785 = vmax.f32 %v1784, %v1665
        %v1786 = vmax.f32 %v1785, %v1673
        %v1787 = vmax.f32 %v1786, %v1681
        %v1788 = vmax.f32 %v1787, %v1689
        %v1789 = vmax.f32 %v1788, %v1697
        %v1790 = vrot.slane %v1789, 4
        %v1791 = vmax.f32 %v1789, %v1790
        %v1792 = vrot.slane %v1791, 2
        %v1793 = vmax.f32 %v1791, %v1792
        %v1794 = vrot.slane %v1793, 1
        %v1795 = vmax.f32 %v1793, %v1794
        %v1796 = vmax.f32 %v1642, %v1650
        %v1797 = vmax.f32 %v1796, %v1658
        %v1798 = vmax.f32 %v1797, %v1666
        %v1799 = vmax.f32 %v1798, %v1674
        %v1800 = vmax.f32 %v1799, %v1682
        %v1801 = vmax.f32 %v1800, %v1690
        %v1802 = vmax.f32 %v1801, %v1698
        %v1803 = vrot.slane %v1802, 4
        %v1804 = vmax.f32 %v1802, %v1803
        %v1805 = vrot.slane %v1804, 2
        %v1806 = vmax.f32 %v1804, %v1805
        %v1807 = vrot.slane %v1806, 1
        %v1808 = vmax.f32 %v1806, %v1807
        %v1809 = vmax.f32 %v1643, %v1651
        %v1810 = vmax.f32 %v1809, %v1659
        %v1811 = vmax.f32 %v1810, %v1667
        %v1812 = vmax.f32 %v1811, %v1675
        %v1813 = vmax.f32 %v1812, %v1683
        %v1814 = vmax.f32 %v1813, %v1691
        %v1815 = vmax.f32 %v1814, %v1699
        %v1816 = vrot.slane %v1815, 4
        %v1817 = vmax.f32 %v1815, %v1816
        %v1818 = vrot.slane %v1817, 2
        %v1819 = vmax.f32 %v1817, %v1818
        %v1820 = vrot.slane %v1819, 1
        %v1821 = vmax.f32 %v1819, %v1820
        %v1822 = vmax.f32 %v1644, %v1652
        %v1823 = vmax.f32 %v1822, %v1660
        %v1824 = vmax.f32 %v1823, %v1668
        %v1825 = vmax.f32 %v1824, %v1676
        %v1826 = vmax.f32 %v1825, %v1684
        %v1827 = vmax.f32 %v1826, %v1692
        %v1828 = vmax.f32 %v1827, %v1700
        %v1829 = vrot.slane %v1828, 4
        %v1830 = vmax.f32 %v1828, %v1829
        %v1831 = vrot.slane %v1830, 2
        %v1832 = vmax.f32 %v1830, %v1831
        %v1833 = vrot.slane %v1832, 1
        %v1834 = vmax.f32 %v1832, %v1833
        %v1835 = vmax.f32 %v1645, %v1653
        %v1836 = vmax.f32 %v1835, %v1661
        %v1837 = vmax.f32 %v1836, %v1669
        %v1838 = vmax.f32 %v1837, %v1677
        %v1839 = vmax.f32 %v1838, %v1685
        %v1840 = vmax.f32 %v1839, %v1693
        %v1841 = vmax.f32 %v1840, %v1701
        %v1842 = vrot.slane %v1841, 4
        %v1843 = vmax.f32 %v1841, %v1842
        %v1844 = vrot.slane %v1843, 2
        %v1845 = vmax.f32 %v1843, %v1844
        %v1846 = vrot.slane %v1845, 1
        %v1847 = vmax.f32 %v1845, %v1846
        %v1848 = vmax.f32 %v1646, %v1654
        %v1849 = vmax.f32 %v1848, %v1662
        %v1850 = vmax.f32 %v1849, %v1670
        %v1851 = vmax.f32 %v1850, %v1678
        %v1852 = vmax.f32 %v1851, %v1686
        %v1853 = vmax.f32 %v1852, %v1694
        %v1854 = vmax.f32 %v1853, %v1702
        %v1855 = vrot.slane %v1854, 4
        %v1856 = vmax.f32 %v1854, %v1855
        %v1857 = vrot.slane %v1856, 2
        %v1858 = vmax.f32 %v1856, %v1857
        %v1859 = vrot.slane %v1858, 1
        %v1860 = vmax.f32 %v1858, %v1859
        %v1861 = vmax.f32 %v1647, %v1655
        %v1862 = vmax.f32 %v1861, %v1663
        %v1863 = vmax.f32 %v1862, %v1671
        %v1864 = vmax.f32 %v1863, %v1679
        %v1865 = vmax.f32 %v1864, %v1687
        %v1866 = vmax.f32 %v1865, %v1695
        %v1867 = vmax.f32 %v1866, %v1703
        %v1868 = vrot.slane %v1867, 4
        %v1869 = vmax.f32 %v1867, %v1868
        %v1870 = vrot.slane %v1869, 2
        %v1871 = vmax.f32 %v1869, %v1870
        %v1872 = vrot.slane %v1871, 1
        %v1873 = vmax.f32 %v1871, %v1872
        %v1874 = vmax.f32 %v1704, %v1712
        %v1875 = vmax.f32 %v1874, %v1720
        %v1876 = vmax.f32 %v1875, %v1728
        %v1877 = vmax.f32 %v1876, %v1736
        %v1878 = vmax.f32 %v1877, %v1744
        %v1879 = vmax.f32 %v1878, %v1752
        %v1880 = vmax.f32 %v1879, %v1760
        %v1881 = vrot.slane %v1880, 4
        %v1882 = vmax.f32 %v1880, %v1881
        %v1883 = vrot.slane %v1882, 2
        %v1884 = vmax.f32 %v1882, %v1883
        %v1885 = vrot.slane %v1884, 1
        %v1886 = vmax.f32 %v1884, %v1885
        %v1887 = vmax.f32 %v1705, %v1713
        %v1888 = vmax.f32 %v1887, %v1721
        %v1889 = vmax.f32 %v1888, %v1729
        %v1890 = vmax.f32 %v1889, %v1737
        %v1891 = vmax.f32 %v1890, %v1745
        %v1892 = vmax.f32 %v1891, %v1753
        %v1893 = vmax.f32 %v1892, %v1761
        %v1894 = vrot.slane %v1893, 4
        %v1895 = vmax.f32 %v1893, %v1894
        %v1896 = vrot.slane %v1895, 2
        %v1897 = vmax.f32 %v1895, %v1896
        %v1898 = vrot.slane %v1897, 1
        %v1899 = vmax.f32 %v1897, %v1898
        %v1900 = vmax.f32 %v1706, %v1714
        %v1901 = vmax.f32 %v1900, %v1722
        %v1902 = vmax.f32 %v1901, %v1730
        %v1903 = vmax.f32 %v1902, %v1738
        %v1904 = vmax.f32 %v1903, %v1746
        %v1905 = vmax.f32 %v1904, %v1754
        %v1906 = vmax.f32 %v1905, %v1762
        %v1907 = vrot.slane %v1906, 4
        %v1908 = vmax.f32 %v1906, %v1907
        %v1909 = vrot.slane %v1908, 2
        %v1910 = vmax.f32 %v1908, %v1909
        %v1911 = vrot.slane %v1910, 1
        %v1912 = vmax.f32 %v1910, %v1911
        %v1913 = vmax.f32 %v1707, %v1715
        %v1914 = vmax.f32 %v1913, %v1723
        %v1915 = vmax.f32 %v1914, %v1731
        %v1916 = vmax.f32 %v1915, %v1739
        %v1917 = vmax.f32 %v1916, %v1747
        %v1918 = vmax.f32 %v1917, %v1755
        %v1919 = vmax.f32 %v1918, %v1763
        %v1920 = vrot.slane %v1919, 4
        %v1921 = vmax.f32 %v1919, %v1920
        %v1922 = vrot.slane %v1921, 2
        %v1923 = vmax.f32 %v1921, %v1922
        %v1924 = vrot.slane %v1923, 1
        %v1925 = vmax.f32 %v1923, %v1924
        %v1926 = vmax.f32 %v1708, %v1716
        %v1927 = vmax.f32 %v1926, %v1724
        %v1928 = vmax.f32 %v1927, %v1732
        %v1929 = vmax.f32 %v1928, %v1740
        %v1930 = vmax.f32 %v1929, %v1748
        %v1931 = vmax.f32 %v1930, %v1756
        %v1932 = vmax.f32 %v1931, %v1764
        %v1933 = vrot.slane %v1932, 4
        %v1934 = vmax.f32 %v1932, %v1933
        %v1935 = vrot.slane %v1934, 2
        %v1936 = vmax.f32 %v1934, %v1935
        %v1937 = vrot.slane %v1936, 1
        %v1938 = vmax.f32 %v1936, %v1937
        %v1939 = vmax.f32 %v1709, %v1717
        %v1940 = vmax.f32 %v1939, %v1725
        %v1941 = vmax.f32 %v1940, %v1733
        %v1942 = vmax.f32 %v1941, %v1741
        %v1943 = vmax.f32 %v1942, %v1749
        %v1944 = vmax.f32 %v1943, %v1757
        %v1945 = vmax.f32 %v1944, %v1765
        %v1946 = vrot.slane %v1945, 4
        %v1947 = vmax.f32 %v1945, %v1946
        %v1948 = vrot.slane %v1947, 2
        %v1949 = vmax.f32 %v1947, %v1948
        %v1950 = vrot.slane %v1949, 1
        %v1951 = vmax.f32 %v1949, %v1950
        %v1952 = vmax.f32 %v1710, %v1718
        %v1953 = vmax.f32 %v1952, %v1726
        %v1954 = vmax.f32 %v1953, %v1734
        %v1955 = vmax.f32 %v1954, %v1742
        %v1956 = vmax.f32 %v1955, %v1750
        %v1957 = vmax.f32 %v1956, %v1758
        %v1958 = vmax.f32 %v1957, %v1766
        %v1959 = vrot.slane %v1958, 4
        %v1960 = vmax.f32 %v1958, %v1959
        %v1961 = vrot.slane %v1960, 2
        %v1962 = vmax.f32 %v1960, %v1961
        %v1963 = vrot.slane %v1962, 1
        %v1964 = vmax.f32 %v1962, %v1963
        %v1965 = vmax.f32 %v1711, %v1719
        %v1966 = vmax.f32 %v1965, %v1727
        %v1967 = vmax.f32 %v1966, %v1735
        %v1968 = vmax.f32 %v1967, %v1743
        %v1969 = vmax.f32 %v1968, %v1751
        %v1970 = vmax.f32 %v1969, %v1759
        %v1971 = vmax.f32 %v1970, %v1767
        %v1972 = vrot.slane %v1971, 4
        %v1973 = vmax.f32 %v1971, %v1972
        %v1974 = vrot.slane %v1973, 2
        %v1975 = vmax.f32 %v1973, %v1974
        %v1976 = vrot.slane %v1975, 1
        %v1977 = vmax.f32 %v1975, %v1976
        %vm1978 = vcmask 1040384
        %v1979 = vsel %vm1978, %v1782, %v1886
        %v1980 = vsel %vm1978, %v1795, %v1899
        %v1981 = vsel %vm1978, %v1808, %v1912
        %v1982 = vsel %vm1978, %v1821, %v1925
        %v1983 = vsel %vm1978, %v1834, %v1938
        %v1984 = vsel %vm1978, %v1847, %v1951
        %v1985 = vsel %vm1978, %v1860, %v1964
        %v1986 = vsel %vm1978, %v1873, %v1977
        %v1995 = vrot.slane %v1980, 6
        %v1996 = vrot.slane %v1981, 4
        %v1997 = vrot.slane %v1982, 2
        %v1998 = vrot.slane %v1984, 6
        %v1999 = vrot.slane %v1985, 4
        %v2000 = vrot.slane %v1986, 2
        %vm2001 = vcmask 1041408
        %v2002 = vsel %vm2001, %v1979, %v1995
        %vm2003 = vcmask 1045508
        %v2004 = vsel %vm2003, %v1996, %v1997
        %vm2005 = vcmask 1043456
        %v2006 = vsel %vm2005, %v2002, %v2004
        %v2007 = vsel %vm2001, %v1983, %v1998
        %v2008 = vsel %vm2003, %v1999, %v2000
        %v2009 = vsel %vm2005, %v2007, %v2008
        %v2012 = vmax.f32 %v1768, %v2006
        %v2013 = vmax.f32 %v1769, %v2009
        %2014 = vst [vmem:[#allocation2] sm:$0xff] %v2012
        %2015 = vst [vmem:[#allocation2 + $0x8] sm:$0xff] %v2013
        %p2016 = scmp.eq.s32.totalorder %s32, 1
        // Predicated region
        $region127: #{tpu_custom_call.1} parent=105 // pred_check
          %p2017 = pneg %p2016
        $region128: #{tpu_custom_call.1} parent=105 // pred_check_branch
          %2019 = sbr.rel (%p2017) target = $region130
        $region129: #{tpu_custom_call.1} parent=105 // pred_region
          %v2020 = vld [vmem:[#allocation2] sm:$0xff]
          %v2021 = vld [vmem:[#allocation2 + $0x8] sm:$0xff]
          %v2022 = vld [vmem:[#allocation7] sm:$0xff]
          %v2023 = vld [vmem:[#allocation7 + $0x8] sm:$0xff]
          %v2024 = vld [vmem:[#allocation7 + $0x10] sm:$0xff]
          %v2025 = vld [vmem:[#allocation7 + $0x18] sm:$0xff]
          %v2026 = vld [vmem:[#allocation7 + $0x20] sm:$0xff]
          %v2027 = vld [vmem:[#allocation7 + $0x28] sm:$0xff]
          %v2028 = vld [vmem:[#allocation7 + $0x30] sm:$0xff]
          %v2029 = vld [vmem:[#allocation7 + $0x38] sm:$0xff]
          %v2030 = vld [vmem:[#allocation7 + $0x40] sm:$0xff]
          %v2031 = vld [vmem:[#allocation7 + $0x48] sm:$0xff]
          %v2032 = vld [vmem:[#allocation7 + $0x50] sm:$0xff]
          %v2033 = vld [vmem:[#allocation7 + $0x58] sm:$0xff]
          %v2034 = vld [vmem:[#allocation7 + $0x60] sm:$0xff]
          %v2035 = vld [vmem:[#allocation7 + $0x68] sm:$0xff]
          %v2036 = vld [vmem:[#allocation7 + $0x70] sm:$0xff]
          %v2037 = vld [vmem:[#allocation7 + $0x78] sm:$0xff]
          %v2038 = vld [vmem:[#allocation7 + $0x80] sm:$0xff]
          %v2039 = vld [vmem:[#allocation7 + $0x88] sm:$0xff]
          %v2040 = vld [vmem:[#allocation7 + $0x90] sm:$0xff]
          %v2041 = vld [vmem:[#allocation7 + $0x98] sm:$0xff]
          %v2042 = vld [vmem:[#allocation7 + $0xa0] sm:$0xff]
          %v2043 = vld [vmem:[#allocation7 + $0xa8] sm:$0xff]
          %v2044 = vld [vmem:[#allocation7 + $0xb0] sm:$0xff]
          %v2045 = vld [vmem:[#allocation7 + $0xb8] sm:$0xff]
          %v2046 = vld [vmem:[#allocation7 + $0xc0] sm:$0xff]
          %v2047 = vld [vmem:[#allocation7 + $0xc8] sm:$0xff]
          %v2048 = vld [vmem:[#allocation7 + $0xd0] sm:$0xff]
          %v2049 = vld [vmem:[#allocation7 + $0xd8] sm:$0xff]
          %v2050 = vld [vmem:[#allocation7 + $0xe0] sm:$0xff]
          %v2051 = vld [vmem:[#allocation7 + $0xe8] sm:$0xff]
          %v2052 = vld [vmem:[#allocation7 + $0xf0] sm:$0xff]
          %v2053 = vld [vmem:[#allocation7 + $0xf8] sm:$0xff]
          %v2054 = vld [vmem:[#allocation7 + $0x100] sm:$0xff]
          %v2055 = vld [vmem:[#allocation7 + $0x108] sm:$0xff]
          %v2056 = vld [vmem:[#allocation7 + $0x110] sm:$0xff]
          %v2057 = vld [vmem:[#allocation7 + $0x118] sm:$0xff]
          %v2058 = vld [vmem:[#allocation7 + $0x120] sm:$0xff]
          %v2059 = vld [vmem:[#allocation7 + $0x128] sm:$0xff]
          %v2060 = vld [vmem:[#allocation7 + $0x130] sm:$0xff]
          %v2061 = vld [vmem:[#allocation7 + $0x138] sm:$0xff]
          %v2062 = vld [vmem:[#allocation7 + $0x140] sm:$0xff]
          %v2063 = vld [vmem:[#allocation7 + $0x148] sm:$0xff]
          %v2064 = vld [vmem:[#allocation7 + $0x150] sm:$0xff]
          %v2065 = vld [vmem:[#allocation7 + $0x158] sm:$0xff]
          %v2066 = vld [vmem:[#allocation7 + $0x160] sm:$0xff]
          %v2067 = vld [vmem:[#allocation7 + $0x168] sm:$0xff]
          %v2068 = vld [vmem:[#allocation7 + $0x170] sm:$0xff]
          %v2069 = vld [vmem:[#allocation7 + $0x178] sm:$0xff]
          %v2070 = vld [vmem:[#allocation7 + $0x180] sm:$0xff]
          %v2071 = vld [vmem:[#allocation7 + $0x188] sm:$0xff]
          %v2072 = vld [vmem:[#allocation7 + $0x190] sm:$0xff]
          %v2073 = vld [vmem:[#allocation7 + $0x198] sm:$0xff]
          %v2074 = vld [vmem:[#allocation7 + $0x1a0] sm:$0xff]
          %v2075 = vld [vmem:[#allocation7 + $0x1a8] sm:$0xff]
          %v2076 = vld [vmem:[#allocation7 + $0x1b0] sm:$0xff]
          %v2077 = vld [vmem:[#allocation7 + $0x1b8] sm:$0xff]
          %v2078 = vld [vmem:[#allocation7 + $0x1c0] sm:$0xff]
          %v2079 = vld [vmem:[#allocation7 + $0x1c8] sm:$0xff]
          %v2080 = vld [vmem:[#allocation7 + $0x1d0] sm:$0xff]
          %v2081 = vld [vmem:[#allocation7 + $0x1d8] sm:$0xff]
          %v2082 = vld [vmem:[#allocation7 + $0x1e0] sm:$0xff]
          %v2083 = vld [vmem:[#allocation7 + $0x1e8] sm:$0xff]
          %v2084 = vld [vmem:[#allocation7 + $0x1f0] sm:$0xff]
          %v2085 = vld [vmem:[#allocation7 + $0x1f8] sm:$0xff]
          %v2086 = vld [vmem:[#allocation7 + $0x200] sm:$0xff]
          %v2087 = vld [vmem:[#allocation7 + $0x208] sm:$0xff]
          %v2088 = vld [vmem:[#allocation7 + $0x210] sm:$0xff]
          %v2089 = vld [vmem:[#allocation7 + $0x218] sm:$0xff]
          %v2090 = vld [vmem:[#allocation7 + $0x220] sm:$0xff]
          %v2091 = vld [vmem:[#allocation7 + $0x228] sm:$0xff]
          %v2092 = vld [vmem:[#allocation7 + $0x230] sm:$0xff]
          %v2093 = vld [vmem:[#allocation7 + $0x238] sm:$0xff]
          %v2094 = vld [vmem:[#allocation7 + $0x240] sm:$0xff]
          %v2095 = vld [vmem:[#allocation7 + $0x248] sm:$0xff]
          %v2096 = vld [vmem:[#allocation7 + $0x250] sm:$0xff]
          %v2097 = vld [vmem:[#allocation7 + $0x258] sm:$0xff]
          %v2098 = vld [vmem:[#allocation7 + $0x260] sm:$0xff]
          %v2099 = vld [vmem:[#allocation7 + $0x268] sm:$0xff]
          %v2100 = vld [vmem:[#allocation7 + $0x270] sm:$0xff]
          %v2101 = vld [vmem:[#allocation7 + $0x278] sm:$0xff]
          %v2102 = vld [vmem:[#allocation7 + $0x280] sm:$0xff]
          %v2103 = vld [vmem:[#allocation7 + $0x288] sm:$0xff]
          %v2104 = vld [vmem:[#allocation7 + $0x290] sm:$0xff]
          %v2105 = vld [vmem:[#allocation7 + $0x298] sm:$0xff]
          %v2106 = vld [vmem:[#allocation7 + $0x2a0] sm:$0xff]
          %v2107 = vld [vmem:[#allocation7 + $0x2a8] sm:$0xff]
          %v2108 = vld [vmem:[#allocation7 + $0x2b0] sm:$0xff]
          %v2109 = vld [vmem:[#allocation7 + $0x2b8] sm:$0xff]
          %v2110 = vld [vmem:[#allocation7 + $0x2c0] sm:$0xff]
          %v2111 = vld [vmem:[#allocation7 + $0x2c8] sm:$0xff]
          %v2112 = vld [vmem:[#allocation7 + $0x2d0] sm:$0xff]
          %v2113 = vld [vmem:[#allocation7 + $0x2d8] sm:$0xff]
          %v2114 = vld [vmem:[#allocation7 + $0x2e0] sm:$0xff]
          %v2115 = vld [vmem:[#allocation7 + $0x2e8] sm:$0xff]
          %v2116 = vld [vmem:[#allocation7 + $0x2f0] sm:$0xff]
          %v2117 = vld [vmem:[#allocation7 + $0x2f8] sm:$0xff]
          %v2118 = vld [vmem:[#allocation7 + $0x300] sm:$0xff]
          %v2119 = vld [vmem:[#allocation7 + $0x308] sm:$0xff]
          %v2120 = vld [vmem:[#allocation7 + $0x310] sm:$0xff]
          %v2121 = vld [vmem:[#allocation7 + $0x318] sm:$0xff]
          %v2122 = vld [vmem:[#allocation7 + $0x320] sm:$0xff]
          %v2123 = vld [vmem:[#allocation7 + $0x328] sm:$0xff]
          %v2124 = vld [vmem:[#allocation7 + $0x330] sm:$0xff]
          %v2125 = vld [vmem:[#allocation7 + $0x338] sm:$0xff]
          %v2126 = vld [vmem:[#allocation7 + $0x340] sm:$0xff]
          %v2127 = vld [vmem:[#allocation7 + $0x348] sm:$0xff]
          %v2128 = vld [vmem:[#allocation7 + $0x350] sm:$0xff]
          %v2129 = vld [vmem:[#allocation7 + $0x358] sm:$0xff]
          %v2130 = vld [vmem:[#allocation7 + $0x360] sm:$0xff]
          %v2131 = vld [vmem:[#allocation7 + $0x368] sm:$0xff]
          %v2132 = vld [vmem:[#allocation7 + $0x370] sm:$0xff]
          %v2133 = vld [vmem:[#allocation7 + $0x378] sm:$0xff]
          %v2134 = vld [vmem:[#allocation7 + $0x380] sm:$0xff]
          %v2135 = vld [vmem:[#allocation7 + $0x388] sm:$0xff]
          %v2136 = vld [vmem:[#allocation7 + $0x390] sm:$0xff]
          %v2137 = vld [vmem:[#allocation7 + $0x398] sm:$0xff]
          %v2138 = vld [vmem:[#allocation7 + $0x3a0] sm:$0xff]
          %v2139 = vld [vmem:[#allocation7 + $0x3a8] sm:$0xff]
          %v2140 = vld [vmem:[#allocation7 + $0x3b0] sm:$0xff]
          %v2141 = vld [vmem:[#allocation7 + $0x3b8] sm:$0xff]
          %v2142 = vld [vmem:[#allocation7 + $0x3c0] sm:$0xff]
          %v2143 = vld [vmem:[#allocation7 + $0x3c8] sm:$0xff]
          %v2144 = vld [vmem:[#allocation7 + $0x3d0] sm:$0xff]
          %v2145 = vld [vmem:[#allocation7 + $0x3d8] sm:$0xff]
          %v2146 = vld [vmem:[#allocation7 + $0x3e0] sm:$0xff]
          %v2147 = vld [vmem:[#allocation7 + $0x3e8] sm:$0xff]
          %v2148 = vld [vmem:[#allocation7 + $0x3f0] sm:$0xff]
          %v2149 = vld [vmem:[#allocation7 + $0x3f8] sm:$0xff]
          %v2150 = vld [vmem:[#allocation7 + $0x400] sm:$0xff]
          %v2151 = vld [vmem:[#allocation7 + $0x408] sm:$0xff]
          %v2152 = vld [vmem:[#allocation7 + $0x410] sm:$0xff]
          %v2153 = vld [vmem:[#allocation7 + $0x418] sm:$0xff]
          %v2154 = vld [vmem:[#allocation7 + $0x420] sm:$0xff]
          %v2155 = vld [vmem:[#allocation7 + $0x428] sm:$0xff]
          %v2156 = vld [vmem:[#allocation7 + $0x430] sm:$0xff]
          %v2157 = vld [vmem:[#allocation7 + $0x438] sm:$0xff]
          %v2158 = vld [vmem:[#allocation7 + $0x440] sm:$0xff]
          %v2159 = vld [vmem:[#allocation7 + $0x448] sm:$0xff]
          %v2160 = vld [vmem:[#allocation7 + $0x450] sm:$0xff]
          %v2161 = vld [vmem:[#allocation7 + $0x458] sm:$0xff]
          %v2162 = vld [vmem:[#allocation7 + $0x460] sm:$0xff]
          %v2163 = vld [vmem:[#allocation7 + $0x468] sm:$0xff]
          %v2164 = vld [vmem:[#allocation7 + $0x470] sm:$0xff]
          %v2165 = vld [vmem:[#allocation7 + $0x478] sm:$0xff]
          %v2166 = vld [vmem:[#allocation7 + $0x480] sm:$0xff]
          %v2167 = vld [vmem:[#allocation7 + $0x488] sm:$0xff]
          %v2168 = vld [vmem:[#allocation7 + $0x490] sm:$0xff]
          %v2169 = vld [vmem:[#allocation7 + $0x498] sm:$0xff]
          %v2170 = vld [vmem:[#allocation7 + $0x4a0] sm:$0xff]
          %v2171 = vld [vmem:[#allocation7 + $0x4a8] sm:$0xff]
          %v2172 = vld [vmem:[#allocation7 + $0x4b0] sm:$0xff]
          %v2173 = vld [vmem:[#allocation7 + $0x4b8] sm:$0xff]
          %v2174 = vld [vmem:[#allocation7 + $0x4c0] sm:$0xff]
          %v2175 = vld [vmem:[#allocation7 + $0x4c8] sm:$0xff]
          %v2176 = vld [vmem:[#allocation7 + $0x4d0] sm:$0xff]
          %v2177 = vld [vmem:[#allocation7 + $0x4d8] sm:$0xff]
          %v2178 = vld [vmem:[#allocation7 + $0x4e0] sm:$0xff]
          %v2179 = vld [vmem:[#allocation7 + $0x4e8] sm:$0xff]
          %v2180 = vld [vmem:[#allocation7 + $0x4f0] sm:$0xff]
          %v2181 = vld [vmem:[#allocation7 + $0x4f8] sm:$0xff]
          %v2182 = vld [vmem:[#allocation7 + $0x500] sm:$0xff]
          %v2183 = vld [vmem:[#allocation7 + $0x508] sm:$0xff]
          %v2184 = vld [vmem:[#allocation7 + $0x510] sm:$0xff]
          %v2185 = vld [vmem:[#allocation7 + $0x518] sm:$0xff]
          %v2186 = vld [vmem:[#allocation7 + $0x520] sm:$0xff]
          %v2187 = vld [vmem:[#allocation7 + $0x528] sm:$0xff]
          %v2188 = vld [vmem:[#allocation7 + $0x530] sm:$0xff]
          %v2189 = vld [vmem:[#allocation7 + $0x538] sm:$0xff]
          %v2190 = vld [vmem:[#allocation7 + $0x540] sm:$0xff]
          %v2191 = vld [vmem:[#allocation7 + $0x548] sm:$0xff]
          %v2192 = vld [vmem:[#allocation7 + $0x550] sm:$0xff]
          %v2193 = vld [vmem:[#allocation7 + $0x558] sm:$0xff]
          %v2194 = vld [vmem:[#allocation7 + $0x560] sm:$0xff]
          %v2195 = vld [vmem:[#allocation7 + $0x568] sm:$0xff]
          %v2196 = vld [vmem:[#allocation7 + $0x570] sm:$0xff]
          %v2197 = vld [vmem:[#allocation7 + $0x578] sm:$0xff]
          %v2198 = vld [vmem:[#allocation7 + $0x580] sm:$0xff]
          %v2199 = vld [vmem:[#allocation7 + $0x588] sm:$0xff]
          %v2200 = vld [vmem:[#allocation7 + $0x590] sm:$0xff]
          %v2201 = vld [vmem:[#allocation7 + $0x598] sm:$0xff]
          %v2202 = vld [vmem:[#allocation7 + $0x5a0] sm:$0xff]
          %v2203 = vld [vmem:[#allocation7 + $0x5a8] sm:$0xff]
          %v2204 = vld [vmem:[#allocation7 + $0x5b0] sm:$0xff]
          %v2205 = vld [vmem:[#allocation7 + $0x5b8] sm:$0xff]
          %v2206 = vld [vmem:[#allocation7 + $0x5c0] sm:$0xff]
          %v2207 = vld [vmem:[#allocation7 + $0x5c8] sm:$0xff]
          %v2208 = vld [vmem:[#allocation7 + $0x5d0] sm:$0xff]
          %v2209 = vld [vmem:[#allocation7 + $0x5d8] sm:$0xff]
          %v2210 = vld [vmem:[#allocation7 + $0x5e0] sm:$0xff]
          %v2211 = vld [vmem:[#allocation7 + $0x5e8] sm:$0xff]
          %v2212 = vld [vmem:[#allocation7 + $0x5f0] sm:$0xff]
          %v2213 = vld [vmem:[#allocation7 + $0x5f8] sm:$0xff]
          %v2214 = vld [vmem:[#allocation7 + $0x600] sm:$0xff]
          %v2215 = vld [vmem:[#allocation7 + $0x608] sm:$0xff]
          %v2216 = vld [vmem:[#allocation7 + $0x610] sm:$0xff]
          %v2217 = vld [vmem:[#allocation7 + $0x618] sm:$0xff]
          %v2218 = vld [vmem:[#allocation7 + $0x620] sm:$0xff]
          %v2219 = vld [vmem:[#allocation7 + $0x628] sm:$0xff]
          %v2220 = vld [vmem:[#allocation7 + $0x630] sm:$0xff]
          %v2221 = vld [vmem:[#allocation7 + $0x638] sm:$0xff]
          %v2222 = vld [vmem:[#allocation7 + $0x640] sm:$0xff]
          %v2223 = vld [vmem:[#allocation7 + $0x648] sm:$0xff]
          %v2224 = vld [vmem:[#allocation7 + $0x650] sm:$0xff]
          %v2225 = vld [vmem:[#allocation7 + $0x658] sm:$0xff]
          %v2226 = vld [vmem:[#allocation7 + $0x660] sm:$0xff]
          %v2227 = vld [vmem:[#allocation7 + $0x668] sm:$0xff]
          %v2228 = vld [vmem:[#allocation7 + $0x670] sm:$0xff]
          %v2229 = vld [vmem:[#allocation7 + $0x678] sm:$0xff]
          %v2230 = vld [vmem:[#allocation7 + $0x680] sm:$0xff]
          %v2231 = vld [vmem:[#allocation7 + $0x688] sm:$0xff]
          %v2232 = vld [vmem:[#allocation7 + $0x690] sm:$0xff]
          %v2233 = vld [vmem:[#allocation7 + $0x698] sm:$0xff]
          %v2234 = vld [vmem:[#allocation7 + $0x6a0] sm:$0xff]
          %v2235 = vld [vmem:[#allocation7 + $0x6a8] sm:$0xff]
          %v2236 = vld [vmem:[#allocation7 + $0x6b0] sm:$0xff]
          %v2237 = vld [vmem:[#allocation7 + $0x6b8] sm:$0xff]
          %v2238 = vld [vmem:[#allocation7 + $0x6c0] sm:$0xff]
          %v2239 = vld [vmem:[#allocation7 + $0x6c8] sm:$0xff]
          %v2240 = vld [vmem:[#allocation7 + $0x6d0] sm:$0xff]
          %v2241 = vld [vmem:[#allocation7 + $0x6d8] sm:$0xff]
          %v2242 = vld [vmem:[#allocation7 + $0x6e0] sm:$0xff]
          %v2243 = vld [vmem:[#allocation7 + $0x6e8] sm:$0xff]
          %v2244 = vld [vmem:[#allocation7 + $0x6f0] sm:$0xff]
          %v2245 = vld [vmem:[#allocation7 + $0x6f8] sm:$0xff]
          %v2246 = vld [vmem:[#allocation7 + $0x700] sm:$0xff]
          %v2247 = vld [vmem:[#allocation7 + $0x708] sm:$0xff]
          %v2248 = vld [vmem:[#allocation7 + $0x710] sm:$0xff]
          %v2249 = vld [vmem:[#allocation7 + $0x718] sm:$0xff]
          %v2250 = vld [vmem:[#allocation7 + $0x720] sm:$0xff]
          %v2251 = vld [vmem:[#allocation7 + $0x728] sm:$0xff]
          %v2252 = vld [vmem:[#allocation7 + $0x730] sm:$0xff]
          %v2253 = vld [vmem:[#allocation7 + $0x738] sm:$0xff]
          %v2254 = vld [vmem:[#allocation7 + $0x740] sm:$0xff]
          %v2255 = vld [vmem:[#allocation7 + $0x748] sm:$0xff]
          %v2256 = vld [vmem:[#allocation7 + $0x750] sm:$0xff]
          %v2257 = vld [vmem:[#allocation7 + $0x758] sm:$0xff]
          %v2258 = vld [vmem:[#allocation7 + $0x760] sm:$0xff]
          %v2259 = vld [vmem:[#allocation7 + $0x768] sm:$0xff]
          %v2260 = vld [vmem:[#allocation7 + $0x770] sm:$0xff]
          %v2261 = vld [vmem:[#allocation7 + $0x778] sm:$0xff]
          %v2262 = vld [vmem:[#allocation7 + $0x780] sm:$0xff]
          %v2263 = vld [vmem:[#allocation7 + $0x788] sm:$0xff]
          %v2264 = vld [vmem:[#allocation7 + $0x790] sm:$0xff]
          %v2265 = vld [vmem:[#allocation7 + $0x798] sm:$0xff]
          %v2266 = vld [vmem:[#allocation7 + $0x7a0] sm:$0xff]
          %v2267 = vld [vmem:[#allocation7 + $0x7a8] sm:$0xff]
          %v2268 = vld [vmem:[#allocation7 + $0x7b0] sm:$0xff]
          %v2269 = vld [vmem:[#allocation7 + $0x7b8] sm:$0xff]
          %v2270 = vld [vmem:[#allocation7 + $0x7c0] sm:$0xff]
          %v2271 = vld [vmem:[#allocation7 + $0x7c8] sm:$0xff]
          %v2272 = vld [vmem:[#allocation7 + $0x7d0] sm:$0xff]
          %v2273 = vld [vmem:[#allocation7 + $0x7d8] sm:$0xff]
          %v2274 = vld [vmem:[#allocation7 + $0x7e0] sm:$0xff]
          %v2275 = vld [vmem:[#allocation7 + $0x7e8] sm:$0xff]
          %v2276 = vld [vmem:[#allocation7 + $0x7f0] sm:$0xff]
          %v2277 = vld [vmem:[#allocation7 + $0x7f8] sm:$0xff]
          %v2278 = vunpack.c.l.bf16 %v2022
          %v2279 = vunpack.c.h.bf16 %v2022
          %v2280 = vunpack.c.l.bf16 %v2023
          %v2281 = vunpack.c.h.bf16 %v2023
          %v2282 = vunpack.c.l.bf16 %v2024
          %v2283 = vunpack.c.h.bf16 %v2024
          %v2284 = vunpack.c.l.bf16 %v2025
          %v2285 = vunpack.c.h.bf16 %v2025
          %v2286 = vunpack.c.l.bf16 %v2026
          %v2287 = vunpack.c.h.bf16 %v2026
          %v2288 = vunpack.c.l.bf16 %v2027
          %v2289 = vunpack.c.h.bf16 %v2027
          %v2290 = vunpack.c.l.bf16 %v2028
          %v2291 = vunpack.c.h.bf16 %v2028
          %v2292 = vunpack.c.l.bf16 %v2029
          %v2293 = vunpack.c.h.bf16 %v2029
          %v2294 = vunpack.c.l.bf16 %v2030
          %v2295 = vunpack.c.h.bf16 %v2030
          %v2296 = vunpack.c.l.bf16 %v2031
          %v2297 = vunpack.c.h.bf16 %v2031
          %v2298 = vunpack.c.l.bf16 %v2032
          %v2299 = vunpack.c.h.bf16 %v2032
          %v2300 = vunpack.c.l.bf16 %v2033
          %v2301 = vunpack.c.h.bf16 %v2033
          %v2302 = vunpack.c.l.bf16 %v2034
          %v2303 = vunpack.c.h.bf16 %v2034
          %v2304 = vunpack.c.l.bf16 %v2035
          %v2305 = vunpack.c.h.bf16 %v2035
          %v2306 = vunpack.c.l.bf16 %v2036
          %v2307 = vunpack.c.h.bf16 %v2036
          %v2308 = vunpack.c.l.bf16 %v2037
          %v2309 = vunpack.c.h.bf16 %v2037
          %v2310 = vunpack.c.l.bf16 %v2038
          %v2311 = vunpack.c.h.bf16 %v2038
          %v2312 = vunpack.c.l.bf16 %v2039
          %v2313 = vunpack.c.h.bf16 %v2039
          %v2314 = vunpack.c.l.bf16 %v2040
          %v2315 = vunpack.c.h.bf16 %v2040
          %v2316 = vunpack.c.l.bf16 %v2041
          %v2317 = vunpack.c.h.bf16 %v2041
          %v2318 = vunpack.c.l.bf16 %v2042
          %v2319 = vunpack.c.h.bf16 %v2042
          %v2320 = vunpack.c.l.bf16 %v2043
          %v2321 = vunpack.c.h.bf16 %v2043
          %v2322 = vunpack.c.l.bf16 %v2044
          %v2323 = vunpack.c.h.bf16 %v2044
          %v2324 = vunpack.c.l.bf16 %v2045
          %v2325 = vunpack.c.h.bf16 %v2045
          %v2326 = vunpack.c.l.bf16 %v2046
          %v2327 = vunpack.c.h.bf16 %v2046
          %v2328 = vunpack.c.l.bf16 %v2047
          %v2329 = vunpack.c.h.bf16 %v2047
          %v2330 = vunpack.c.l.bf16 %v2048
          %v2331 = vunpack.c.h.bf16 %v2048
          %v2332 = vunpack.c.l.bf16 %v2049
          %v2333 = vunpack.c.h.bf16 %v2049
          %v2334 = vunpack.c.l.bf16 %v2050
          %v2335 = vunpack.c.h.bf16 %v2050
          %v2336 = vunpack.c.l.bf16 %v2051
          %v2337 = vunpack.c.h.bf16 %v2051
          %v2338 = vunpack.c.l.bf16 %v2052
          %v2339 = vunpack.c.h.bf16 %v2052
          %v2340 = vunpack.c.l.bf16 %v2053
          %v2341 = vunpack.c.h.bf16 %v2053
          %v2342 = vunpack.c.l.bf16 %v2054
          %v2343 = vunpack.c.h.bf16 %v2054
          %v2344 = vunpack.c.l.bf16 %v2055
          %v2345 = vunpack.c.h.bf16 %v2055
          %v2346 = vunpack.c.l.bf16 %v2056
          %v2347 = vunpack.c.h.bf16 %v2056
          %v2348 = vunpack.c.l.bf16 %v2057
          %v2349 = vunpack.c.h.bf16 %v2057
          %v2350 = vunpack.c.l.bf16 %v2058
          %v2351 = vunpack.c.h.bf16 %v2058
          %v2352 = vunpack.c.l.bf16 %v2059
          %v2353 = vunpack.c.h.bf16 %v2059
          %v2354 = vunpack.c.l.bf16 %v2060
          %v2355 = vunpack.c.h.bf16 %v2060
          %v2356 = vunpack.c.l.bf16 %v2061
          %v2357 = vunpack.c.h.bf16 %v2061
          %v2358 = vunpack.c.l.bf16 %v2062
          %v2359 = vunpack.c.h.bf16 %v2062
          %v2360 = vunpack.c.l.bf16 %v2063
          %v2361 = vunpack.c.h.bf16 %v2063
          %v2362 = vunpack.c.l.bf16 %v2064
          %v2363 = vunpack.c.h.bf16 %v2064
          %v2364 = vunpack.c.l.bf16 %v2065
          %v2365 = vunpack.c.h.bf16 %v2065
          %v2366 = vunpack.c.l.bf16 %v2066
          %v2367 = vunpack.c.h.bf16 %v2066
          %v2368 = vunpack.c.l.bf16 %v2067
          %v2369 = vunpack.c.h.bf16 %v2067
          %v2370 = vunpack.c.l.bf16 %v2068
          %v2371 = vunpack.c.h.bf16 %v2068
          %v2372 = vunpack.c.l.bf16 %v2069
          %v2373 = vunpack.c.h.bf16 %v2069
          %v2374 = vunpack.c.l.bf16 %v2070
          %v2375 = vunpack.c.h.bf16 %v2070
          %v2376 = vunpack.c.l.bf16 %v2071
          %v2377 = vunpack.c.h.bf16 %v2071
          %v2378 = vunpack.c.l.bf16 %v2072
          %v2379 = vunpack.c.h.bf16 %v2072
          %v2380 = vunpack.c.l.bf16 %v2073
          %v2381 = vunpack.c.h.bf16 %v2073
          %v2382 = vunpack.c.l.bf16 %v2074
          %v2383 = vunpack.c.h.bf16 %v2074
          %v2384 = vunpack.c.l.bf16 %v2075
          %v2385 = vunpack.c.h.bf16 %v2075
          %v2386 = vunpack.c.l.bf16 %v2076
          %v2387 = vunpack.c.h.bf16 %v2076
          %v2388 = vunpack.c.l.bf16 %v2077
          %v2389 = vunpack.c.h.bf16 %v2077
          %v2390 = vunpack.c.l.bf16 %v2078
          %v2391 = vunpack.c.h.bf16 %v2078
          %v2392 = vunpack.c.l.bf16 %v2079
          %v2393 = vunpack.c.h.bf16 %v2079
          %v2394 = vunpack.c.l.bf16 %v2080
          %v2395 = vunpack.c.h.bf16 %v2080
          %v2396 = vunpack.c.l.bf16 %v2081
          %v2397 = vunpack.c.h.bf16 %v2081
          %v2398 = vunpack.c.l.bf16 %v2082
          %v2399 = vunpack.c.h.bf16 %v2082
          %v2400 = vunpack.c.l.bf16 %v2083
          %v2401 = vunpack.c.h.bf16 %v2083
          %v2402 = vunpack.c.l.bf16 %v2084
          %v2403 = vunpack.c.h.bf16 %v2084
          %v2404 = vunpack.c.l.bf16 %v2085
          %v2405 = vunpack.c.h.bf16 %v2085
          %v2406 = vunpack.c.l.bf16 %v2086
          %v2407 = vunpack.c.h.bf16 %v2086
          %v2408 = vunpack.c.l.bf16 %v2087
          %v2409 = vunpack.c.h.bf16 %v2087
          %v2410 = vunpack.c.l.bf16 %v2088
          %v2411 = vunpack.c.h.bf16 %v2088
          %v2412 = vunpack.c.l.bf16 %v2089
          %v2413 = vunpack.c.h.bf16 %v2089
          %v2414 = vunpack.c.l.bf16 %v2090
          %v2415 = vunpack.c.h.bf16 %v2090
          %v2416 = vunpack.c.l.bf16 %v2091
          %v2417 = vunpack.c.h.bf16 %v2091
          %v2418 = vunpack.c.l.bf16 %v2092
          %v2419 = vunpack.c.h.bf16 %v2092
          %v2420 = vunpack.c.l.bf16 %v2093
          %v2421 = vunpack.c.h.bf16 %v2093
          %v2422 = vunpack.c.l.bf16 %v2094
          %v2423 = vunpack.c.h.bf16 %v2094
          %v2424 = vunpack.c.l.bf16 %v2095
          %v2425 = vunpack.c.h.bf16 %v2095
          %v2426 = vunpack.c.l.bf16 %v2096
          %v2427 = vunpack.c.h.bf16 %v2096
          %v2428 = vunpack.c.l.bf16 %v2097
          %v2429 = vunpack.c.h.bf16 %v2097
          %v2430 = vunpack.c.l.bf16 %v2098
          %v2431 = vunpack.c.h.bf16 %v2098
          %v2432 = vunpack.c.l.bf16 %v2099
          %v2433 = vunpack.c.h.bf16 %v2099
          %v2434 = vunpack.c.l.bf16 %v2100
          %v2435 = vunpack.c.h.bf16 %v2100
          %v2436 = vunpack.c.l.bf16 %v2101
          %v2437 = vunpack.c.h.bf16 %v2101
          %v2438 = vunpack.c.l.bf16 %v2102
          %v2439 = vunpack.c.h.bf16 %v2102
          %v2440 = vunpack.c.l.bf16 %v2103
          %v2441 = vunpack.c.h.bf16 %v2103
          %v2442 = vunpack.c.l.bf16 %v2104
          %v2443 = vunpack.c.h.bf16 %v2104
          %v2444 = vunpack.c.l.bf16 %v2105
          %v2445 = vunpack.c.h.bf16 %v2105
          %v2446 = vunpack.c.l.bf16 %v2106
          %v2447 = vunpack.c.h.bf16 %v2106
          %v2448 = vunpack.c.l.bf16 %v2107
          %v2449 = vunpack.c.h.bf16 %v2107
          %v2450 = vunpack.c.l.bf16 %v2108
          %v2451 = vunpack.c.h.bf16 %v2108
          %v2452 = vunpack.c.l.bf16 %v2109
          %v2453 = vunpack.c.h.bf16 %v2109
          %v2454 = vunpack.c.l.bf16 %v2110
          %v2455 = vunpack.c.h.bf16 %v2110
          %v2456 = vunpack.c.l.bf16 %v2111
          %v2457 = vunpack.c.h.bf16 %v2111
          %v2458 = vunpack.c.l.bf16 %v2112
          %v2459 = vunpack.c.h.bf16 %v2112
          %v2460 = vunpack.c.l.bf16 %v2113
          %v2461 = vunpack.c.h.bf16 %v2113
          %v2462 = vunpack.c.l.bf16 %v2114
          %v2463 = vunpack.c.h.bf16 %v2114
          %v2464 = vunpack.c.l.bf16 %v2115
          %v2465 = vunpack.c.h.bf16 %v2115
          %v2466 = vunpack.c.l.bf16 %v2116
          %v2467 = vunpack.c.h.bf16 %v2116
          %v2468 = vunpack.c.l.bf16 %v2117
          %v2469 = vunpack.c.h.bf16 %v2117
          %v2470 = vunpack.c.l.bf16 %v2118
          %v2471 = vunpack.c.h.bf16 %v2118
          %v2472 = vunpack.c.l.bf16 %v2119
          %v2473 = vunpack.c.h.bf16 %v2119
          %v2474 = vunpack.c.l.bf16 %v2120
          %v2475 = vunpack.c.h.bf16 %v2120
          %v2476 = vunpack.c.l.bf16 %v2121
          %v2477 = vunpack.c.h.bf16 %v2121
          %v2478 = vunpack.c.l.bf16 %v2122
          %v2479 = vunpack.c.h.bf16 %v2122
          %v2480 = vunpack.c.l.bf16 %v2123
          %v2481 = vunpack.c.h.bf16 %v2123
          %v2482 = vunpack.c.l.bf16 %v2124
          %v2483 = vunpack.c.h.bf16 %v2124
          %v2484 = vunpack.c.l.bf16 %v2125
          %v2485 = vunpack.c.h.bf16 %v2125
          %v2486 = vunpack.c.l.bf16 %v2126
          %v2487 = vunpack.c.h.bf16 %v2126
          %v2488 = vunpack.c.l.bf16 %v2127
          %v2489 = vunpack.c.h.bf16 %v2127
          %v2490 = vunpack.c.l.bf16 %v2128
          %v2491 = vunpack.c.h.bf16 %v2128
          %v2492 = vunpack.c.l.bf16 %v2129
          %v2493 = vunpack.c.h.bf16 %v2129
          %v2494 = vunpack.c.l.bf16 %v2130
          %v2495 = vunpack.c.h.bf16 %v2130
          %v2496 = vunpack.c.l.bf16 %v2131
          %v2497 = vunpack.c.h.bf16 %v2131
          %v2498 = vunpack.c.l.bf16 %v2132
          %v2499 = vunpack.c.h.bf16 %v2132
          %v2500 = vunpack.c.l.bf16 %v2133
          %v2501 = vunpack.c.h.bf16 %v2133
          %v2502 = vunpack.c.l.bf16 %v2134
          %v2503 = vunpack.c.h.bf16 %v2134
          %v2504 = vunpack.c.l.bf16 %v2135
          %v2505 = vunpack.c.h.bf16 %v2135
          %v2506 = vunpack.c.l.bf16 %v2136
          %v2507 = vunpack.c.h.bf16 %v2136
          %v2508 = vunpack.c.l.bf16 %v2137
          %v2509 = vunpack.c.h.bf16 %v2137
          %v2510 = vunpack.c.l.bf16 %v2138
          %v2511 = vunpack.c.h.bf16 %v2138
          %v2512 = vunpack.c.l.bf16 %v2139
          %v2513 = vunpack.c.h.bf16 %v2139
          %v2514 = vunpack.c.l.bf16 %v2140
          %v2515 = vunpack.c.h.bf16 %v2140
          %v2516 = vunpack.c.l.bf16 %v2141
          %v2517 = vunpack.c.h.bf16 %v2141
          %v2518 = vunpack.c.l.bf16 %v2142
          %v2519 = vunpack.c.h.bf16 %v2142
          %v2520 = vunpack.c.l.bf16 %v2143
          %v2521 = vunpack.c.h.bf16 %v2143
          %v2522 = vunpack.c.l.bf16 %v2144
          %v2523 = vunpack.c.h.bf16 %v2144
          %v2524 = vunpack.c.l.bf16 %v2145
          %v2525 = vunpack.c.h.bf16 %v2145
          %v2526 = vunpack.c.l.bf16 %v2146
          %v2527 = vunpack.c.h.bf16 %v2146
          %v2528 = vunpack.c.l.bf16 %v2147
          %v2529 = vunpack.c.h.bf16 %v2147
          %v2530 = vunpack.c.l.bf16 %v2148
          %v2531 = vunpack.c.h.bf16 %v2148
          %v2532 = vunpack.c.l.bf16 %v2149
          %v2533 = vunpack.c.h.bf16 %v2149
          %v2534 = vunpack.c.l.bf16 %v2150
          %v2535 = vunpack.c.h.bf16 %v2150
          %v2536 = vunpack.c.l.bf16 %v2151
          %v2537 = vunpack.c.h.bf16 %v2151
          %v2538 = vunpack.c.l.bf16 %v2152
          %v2539 = vunpack.c.h.bf16 %v2152
          %v2540 = vunpack.c.l.bf16 %v2153
          %v2541 = vunpack.c.h.bf16 %v2153
          %v2542 = vunpack.c.l.bf16 %v2154
          %v2543 = vunpack.c.h.bf16 %v2154
          %v2544 = vunpack.c.l.bf16 %v2155
          %v2545 = vunpack.c.h.bf16 %v2155
          %v2546 = vunpack.c.l.bf16 %v2156
          %v2547 = vunpack.c.h.bf16 %v2156
          %v2548 = vunpack.c.l.bf16 %v2157
          %v2549 = vunpack.c.h.bf16 %v2157
          %v2550 = vunpack.c.l.bf16 %v2158
          %v2551 = vunpack.c.h.bf16 %v2158
          %v2552 = vunpack.c.l.bf16 %v2159
          %v2553 = vunpack.c.h.bf16 %v2159
          %v2554 = vunpack.c.l.bf16 %v2160
          %v2555 = vunpack.c.h.bf16 %v2160
          %v2556 = vunpack.c.l.bf16 %v2161
          %v2557 = vunpack.c.h.bf16 %v2161
          %v2558 = vunpack.c.l.bf16 %v2162
          %v2559 = vunpack.c.h.bf16 %v2162
          %v2560 = vunpack.c.l.bf16 %v2163
          %v2561 = vunpack.c.h.bf16 %v2163
          %v2562 = vunpack.c.l.bf16 %v2164
          %v2563 = vunpack.c.h.bf16 %v2164
          %v2564 = vunpack.c.l.bf16 %v2165
          %v2565 = vunpack.c.h.bf16 %v2165
          %v2566 = vunpack.c.l.bf16 %v2166
          %v2567 = vunpack.c.h.bf16 %v2166
          %v2568 = vunpack.c.l.bf16 %v2167
          %v2569 = vunpack.c.h.bf16 %v2167
          %v2570 = vunpack.c.l.bf16 %v2168
          %v2571 = vunpack.c.h.bf16 %v2168
          %v2572 = vunpack.c.l.bf16 %v2169
          %v2573 = vunpack.c.h.bf16 %v2169
          %v2574 = vunpack.c.l.bf16 %v2170
          %v2575 = vunpack.c.h.bf16 %v2170
          %v2576 = vunpack.c.l.bf16 %v2171
          %v2577 = vunpack.c.h.bf16 %v2171
          %v2578 = vunpack.c.l.bf16 %v2172
          %v2579 = vunpack.c.h.bf16 %v2172
          %v2580 = vunpack.c.l.bf16 %v2173
          %v2581 = vunpack.c.h.bf16 %v2173
          %v2582 = vunpack.c.l.bf16 %v2174
          %v2583 = vunpack.c.h.bf16 %v2174
          %v2584 = vunpack.c.l.bf16 %v2175
          %v2585 = vunpack.c.h.bf16 %v2175
          %v2586 = vunpack.c.l.bf16 %v2176
          %v2587 = vunpack.c.h.bf16 %v2176
          %v2588 = vunpack.c.l.bf16 %v2177
          %v2589 = vunpack.c.h.bf16 %v2177
          %v2590 = vunpack.c.l.bf16 %v2178
          %v2591 = vunpack.c.h.bf16 %v2178
          %v2592 = vunpack.c.l.bf16 %v2179
          %v2593 = vunpack.c.h.bf16 %v2179
          %v2594 = vunpack.c.l.bf16 %v2180
          %v2595 = vunpack.c.h.bf16 %v2180
          %v2596 = vunpack.c.l.bf16 %v2181
          %v2597 = vunpack.c.h.bf16 %v2181
          %v2598 = vunpack.c.l.bf16 %v2182
          %v2599 = vunpack.c.h.bf16 %v2182
          %v2600 = vunpack.c.l.bf16 %v2183
          %v2601 = vunpack.c.h.bf16 %v2183
          %v2602 = vunpack.c.l.bf16 %v2184
          %v2603 = vunpack.c.h.bf16 %v2184
          %v2604 = vunpack.c.l.bf16 %v2185
          %v2605 = vunpack.c.h.bf16 %v2185
          %v2606 = vunpack.c.l.bf16 %v2186
          %v2607 = vunpack.c.h.bf16 %v2186
          %v2608 = vunpack.c.l.bf16 %v2187
          %v2609 = vunpack.c.h.bf16 %v2187
          %v2610 = vunpack.c.l.bf16 %v2188
          %v2611 = vunpack.c.h.bf16 %v2188
          %v2612 = vunpack.c.l.bf16 %v2189
          %v2613 = vunpack.c.h.bf16 %v2189
          %v2614 = vunpack.c.l.bf16 %v2190
          %v2615 = vunpack.c.h.bf16 %v2190
          %v2616 = vunpack.c.l.bf16 %v2191
          %v2617 = vunpack.c.h.bf16 %v2191
          %v2618 = vunpack.c.l.bf16 %v2192
          %v2619 = vunpack.c.h.bf16 %v2192
          %v2620 = vunpack.c.l.bf16 %v2193
          %v2621 = vunpack.c.h.bf16 %v2193
          %v2622 = vunpack.c.l.bf16 %v2194
          %v2623 = vunpack.c.h.bf16 %v2194
          %v2624 = vunpack.c.l.bf16 %v2195
          %v2625 = vunpack.c.h.bf16 %v2195
          %v2626 = vunpack.c.l.bf16 %v2196
          %v2627 = vunpack.c.h.bf16 %v2196
          %v2628 = vunpack.c.l.bf16 %v2197
          %v2629 = vunpack.c.h.bf16 %v2197
          %v2630 = vunpack.c.l.bf16 %v2198
          %v2631 = vunpack.c.h.bf16 %v2198
          %v2632 = vunpack.c.l.bf16 %v2199
          %v2633 = vunpack.c.h.bf16 %v2199
          %v2634 = vunpack.c.l.bf16 %v2200
          %v2635 = vunpack.c.h.bf16 %v2200
          %v2636 = vunpack.c.l.bf16 %v2201
          %v2637 = vunpack.c.h.bf16 %v2201
          %v2638 = vunpack.c.l.bf16 %v2202
          %v2639 = vunpack.c.h.bf16 %v2202
          %v2640 = vunpack.c.l.bf16 %v2203
          %v2641 = vunpack.c.h.bf16 %v2203
          %v2642 = vunpack.c.l.bf16 %v2204
          %v2643 = vunpack.c.h.bf16 %v2204
          %v2644 = vunpack.c.l.bf16 %v2205
          %v2645 = vunpack.c.h.bf16 %v2205
          %v2646 = vunpack.c.l.bf16 %v2206
          %v2647 = vunpack.c.h.bf16 %v2206
          %v2648 = vunpack.c.l.bf16 %v2207
          %v2649 = vunpack.c.h.bf16 %v2207
          %v2650 = vunpack.c.l.bf16 %v2208
          %v2651 = vunpack.c.h.bf16 %v2208
          %v2652 = vunpack.c.l.bf16 %v2209
          %v2653 = vunpack.c.h.bf16 %v2209
          %v2654 = vunpack.c.l.bf16 %v2210
          %v2655 = vunpack.c.h.bf16 %v2210
          %v2656 = vunpack.c.l.bf16 %v2211
          %v2657 = vunpack.c.h.bf16 %v2211
          %v2658 = vunpack.c.l.bf16 %v2212
          %v2659 = vunpack.c.h.bf16 %v2212
          %v2660 = vunpack.c.l.bf16 %v2213
          %v2661 = vunpack.c.h.bf16 %v2213
          %v2662 = vunpack.c.l.bf16 %v2214
          %v2663 = vunpack.c.h.bf16 %v2214
          %v2664 = vunpack.c.l.bf16 %v2215
          %v2665 = vunpack.c.h.bf16 %v2215
          %v2666 = vunpack.c.l.bf16 %v2216
          %v2667 = vunpack.c.h.bf16 %v2216
          %v2668 = vunpack.c.l.bf16 %v2217
          %v2669 = vunpack.c.h.bf16 %v2217
          %v2670 = vunpack.c.l.bf16 %v2218
          %v2671 = vunpack.c.h.bf16 %v2218
          %v2672 = vunpack.c.l.bf16 %v2219
          %v2673 = vunpack.c.h.bf16 %v2219
          %v2674 = vunpack.c.l.bf16 %v2220
          %v2675 = vunpack.c.h.bf16 %v2220
          %v2676 = vunpack.c.l.bf16 %v2221
          %v2677 = vunpack.c.h.bf16 %v2221
          %v2678 = vunpack.c.l.bf16 %v2222
          %v2679 = vunpack.c.h.bf16 %v2222
          %v2680 = vunpack.c.l.bf16 %v2223
          %v2681 = vunpack.c.h.bf16 %v2223
          %v2682 = vunpack.c.l.bf16 %v2224
          %v2683 = vunpack.c.h.bf16 %v2224
          %v2684 = vunpack.c.l.bf16 %v2225
          %v2685 = vunpack.c.h.bf16 %v2225
          %v2686 = vunpack.c.l.bf16 %v2226
          %v2687 = vunpack.c.h.bf16 %v2226
          %v2688 = vunpack.c.l.bf16 %v2227
          %v2689 = vunpack.c.h.bf16 %v2227
          %v2690 = vunpack.c.l.bf16 %v2228
          %v2691 = vunpack.c.h.bf16 %v2228
          %v2692 = vunpack.c.l.bf16 %v2229
          %v2693 = vunpack.c.h.bf16 %v2229
          %v2694 = vunpack.c.l.bf16 %v2230
          %v2695 = vunpack.c.h.bf16 %v2230
          %v2696 = vunpack.c.l.bf16 %v2231
          %v2697 = vunpack.c.h.bf16 %v2231
          %v2698 = vunpack.c.l.bf16 %v2232
          %v2699 = vunpack.c.h.bf16 %v2232
          %v2700 = vunpack.c.l.bf16 %v2233
          %v2701 = vunpack.c.h.bf16 %v2233
          %v2702 = vunpack.c.l.bf16 %v2234
          %v2703 = vunpack.c.h.bf16 %v2234
          %v2704 = vunpack.c.l.bf16 %v2235
          %v2705 = vunpack.c.h.bf16 %v2235
          %v2706 = vunpack.c.l.bf16 %v2236
          %v2707 = vunpack.c.h.bf16 %v2236
          %v2708 = vunpack.c.l.bf16 %v2237
          %v2709 = vunpack.c.h.bf16 %v2237
          %v2710 = vunpack.c.l.bf16 %v2238
          %v2711 = vunpack.c.h.bf16 %v2238
          %v2712 = vunpack.c.l.bf16 %v2239
          %v2713 = vunpack.c.h.bf16 %v2239
          %v2714 = vunpack.c.l.bf16 %v2240
          %v2715 = vunpack.c.h.bf16 %v2240
          %v2716 = vunpack.c.l.bf16 %v2241
          %v2717 = vunpack.c.h.bf16 %v2241
          %v2718 = vunpack.c.l.bf16 %v2242
          %v2719 = vunpack.c.h.bf16 %v2242
          %v2720 = vunpack.c.l.bf16 %v2243
          %v2721 = vunpack.c.h.bf16 %v2243
          %v2722 = vunpack.c.l.bf16 %v2244
          %v2723 = vunpack.c.h.bf16 %v2244
          %v2724 = vunpack.c.l.bf16 %v2245
          %v2725 = vunpack.c.h.bf16 %v2245
          %v2726 = vunpack.c.l.bf16 %v2246
          %v2727 = vunpack.c.h.bf16 %v2246
          %v2728 = vunpack.c.l.bf16 %v2247
          %v2729 = vunpack.c.h.bf16 %v2247
          %v2730 = vunpack.c.l.bf16 %v2248
          %v2731 = vunpack.c.h.bf16 %v2248
          %v2732 = vunpack.c.l.bf16 %v2249
          %v2733 = vunpack.c.h.bf16 %v2249
          %v2734 = vunpack.c.l.bf16 %v2250
          %v2735 = vunpack.c.h.bf16 %v2250
          %v2736 = vunpack.c.l.bf16 %v2251
          %v2737 = vunpack.c.h.bf16 %v2251
          %v2738 = vunpack.c.l.bf16 %v2252
          %v2739 = vunpack.c.h.bf16 %v2252
          %v2740 = vunpack.c.l.bf16 %v2253
          %v2741 = vunpack.c.h.bf16 %v2253
          %v2742 = vunpack.c.l.bf16 %v2254
          %v2743 = vunpack.c.h.bf16 %v2254
          %v2744 = vunpack.c.l.bf16 %v2255
          %v2745 = vunpack.c.h.bf16 %v2255
          %v2746 = vunpack.c.l.bf16 %v2256
          %v2747 = vunpack.c.h.bf16 %v2256
          %v2748 = vunpack.c.l.bf16 %v2257
          %v2749 = vunpack.c.h.bf16 %v2257
          %v2750 = vunpack.c.l.bf16 %v2258
          %v2751 = vunpack.c.h.bf16 %v2258
          %v2752 = vunpack.c.l.bf16 %v2259
          %v2753 = vunpack.c.h.bf16 %v2259
          %v2754 = vunpack.c.l.bf16 %v2260
          %v2755 = vunpack.c.h.bf16 %v2260
          %v2756 = vunpack.c.l.bf16 %v2261
          %v2757 = vunpack.c.h.bf16 %v2261
          %v2758 = vunpack.c.l.bf16 %v2262
          %v2759 = vunpack.c.h.bf16 %v2262
          %v2760 = vunpack.c.l.bf16 %v2263
          %v2761 = vunpack.c.h.bf16 %v2263
          %v2762 = vunpack.c.l.bf16 %v2264
          %v2763 = vunpack.c.h.bf16 %v2264
          %v2764 = vunpack.c.l.bf16 %v2265
          %v2765 = vunpack.c.h.bf16 %v2265
          %v2766 = vunpack.c.l.bf16 %v2266
          %v2767 = vunpack.c.h.bf16 %v2266
          %v2768 = vunpack.c.l.bf16 %v2267
          %v2769 = vunpack.c.h.bf16 %v2267
          %v2770 = vunpack.c.l.bf16 %v2268
          %v2771 = vunpack.c.h.bf16 %v2268
          %v2772 = vunpack.c.l.bf16 %v2269
          %v2773 = vunpack.c.h.bf16 %v2269
          %v2774 = vunpack.c.l.bf16 %v2270
          %v2775 = vunpack.c.h.bf16 %v2270
          %v2776 = vunpack.c.l.bf16 %v2271
          %v2777 = vunpack.c.h.bf16 %v2271
          %v2778 = vunpack.c.l.bf16 %v2272
          %v2779 = vunpack.c.h.bf16 %v2272
          %v2780 = vunpack.c.l.bf16 %v2273
          %v2781 = vunpack.c.h.bf16 %v2273
          %v2782 = vunpack.c.l.bf16 %v2274
          %v2783 = vunpack.c.h.bf16 %v2274
          %v2784 = vunpack.c.l.bf16 %v2275
          %v2785 = vunpack.c.h.bf16 %v2275
          %v2786 = vunpack.c.l.bf16 %v2276
          %v2787 = vunpack.c.h.bf16 %v2276
          %v2788 = vunpack.c.l.bf16 %v2277
          %v2789 = vunpack.c.h.bf16 %v2277
          %v2790 = vld [vmem:[%s8] sm:$0xf]
          %v2792 = vperm.slane %v2790, 0
          %v2793 = vperm.slane %v2790, 1
          %v2794 = vperm.slane %v2790, 2
          %v2795 = vperm.slane %v2790, 3
          %2802 = vst [vmem:[#allocation1] ss:$4 sm:$0xff] %v2020
          %s2803 = scalar_lea.vmem [#allocation1], 32
          %2804 = vst [vmem:[%s2803] ss:$4 sm:$0xff] %v2021
          %v2805 = vld.sshfl [vmem:[#allocation1] sm:$0xff pattern:$0x73625140]
          %v2806 = vld.sshfl [vmem:[#allocation1 + $0x8] sm:$0xff pattern:$0x73625140]
          %v2807 = vld.sshfl [vmem:[#allocation1 + $0x10] sm:$0xff pattern:$0x73625140]
          %v2808 = vld.sshfl [vmem:[#allocation1 + $0x18] sm:$0xff pattern:$0x73625140]
          %v2809 = vld.sshfl [vmem:[#allocation1 + $0x20] sm:$0xff pattern:$0x73625140]
          %v2810 = vld.sshfl [vmem:[#allocation1 + $0x28] sm:$0xff pattern:$0x73625140]
          %v2811 = vld.sshfl [vmem:[#allocation1 + $0x30] sm:$0xff pattern:$0x73625140]
          %v2812 = vld.sshfl [vmem:[#allocation1 + $0x38] sm:$0xff pattern:$0x73625140]
          %2821 = vmatpush.msra.mxu0 %v2338
          %2822 = vmatpush.msra.mxu0 %v2334
          %2823 = vmatpush.msra.mxu0 %v2330
          %2824 = vmatpush.msra.mxu0 %v2326
          %2825 = vmatpush.msra.mxu0 %v2322
          %2826 = vmatpush.msra.mxu0 %v2318
          %2827 = vmatpush.msra.mxu0 %v2314
          %2828 = vmatpush.msra.mxu0 %v2310
          %2829 = vmatpush.msra.mxu0 %v2306
          %2830 = vmatpush.msra.mxu0 %v2302
          %2831 = vmatpush.msra.mxu0 %v2298
          %2832 = vmatpush.msra.mxu0 %v2294
          %2833 = vmatpush.msra.mxu0 %v2290
          %2834 = vmatpush.msra.mxu0 %v2286
          %2835 = vmatpush.msra.mxu0 %v2282
          %2836 = vmatpush.msra.mxu0 %v2278
          %2837 = vmatmul.f32.gmra.mxu0 %v2805
          %v2838 = vpop.f32.mrf.mxu0
          %v2839 = vadd.f32 %v2792, %v2838
          %2840 = vdwg.mxu0
          %2841 = vmatpush.msra.mxu0 %v2402
          %2842 = vmatpush.msra.mxu0 %v2398
          %2843 = vmatpush.msra.mxu0 %v2394
          %2844 = vmatpush.msra.mxu0 %v2390
          %2845 = vmatpush.msra.mxu0 %v2386
          %2846 = vmatpush.msra.mxu0 %v2382
          %2847 = vmatpush.msra.mxu0 %v2378
          %2848 = vmatpush.msra.mxu0 %v2374
          %2849 = vmatpush.msra.mxu0 %v2370
          %2850 = vmatpush.msra.mxu0 %v2366
          %2851 = vmatpush.msra.mxu0 %v2362
          %2852 = vmatpush.msra.mxu0 %v2358
          %2853 = vmatpush.msra.mxu0 %v2354
          %2854 = vmatpush.msra.mxu0 %v2350
          %2855 = vmatpush.msra.mxu0 %v2346
          %2856 = vmatpush.msra.mxu0 %v2342
          %2857 = vmatmul.f32.gmra.mxu0 %v2806
          %v2858 = vpop.f32.mrf.mxu0
          %v2859 = vadd.f32 %v2839, %v2858
          %2860 = vdwg.mxu0
          %2861 = vmatpush.msra.mxu0 %v2466
          %2862 = vmatpush.msra.mxu0 %v2462
          %2863 = vmatpush.msra.mxu0 %v2458
          %2864 = vmatpush.msra.mxu0 %v2454
          %2865 = vmatpush.msra.mxu0 %v2450
          %2866 = vmatpush.msra.mxu0 %v2446
          %2867 = vmatpush.msra.mxu0 %v2442
          %2868 = vmatpush.msra.mxu0 %v2438
          %2869 = vmatpush.msra.mxu0 %v2434
          %2870 = vmatpush.msra.mxu0 %v2430
          %2871 = vmatpush.msra.mxu0 %v2426
          %2872 = vmatpush.msra.mxu0 %v2422
          %2873 = vmatpush.msra.mxu0 %v2418
          %2874 = vmatpush.msra.mxu0 %v2414
          %2875 = vmatpush.msra.mxu0 %v2410
          %2876 = vmatpush.msra.mxu0 %v2406
          %2877 = vmatmul.f32.gmra.mxu0 %v2807
          %v2878 = vpop.f32.mrf.mxu0
          %v2879 = vadd.f32 %v2859, %v2878
          %2880 = vdwg.mxu0
          %2881 = vmatpush.msra.mxu0 %v2530
          %2882 = vmatpush.msra.mxu0 %v2526
          %2883 = vmatpush.msra.mxu0 %v2522
          %2884 = vmatpush.msra.mxu0 %v2518
          %2885 = vmatpush.msra.mxu0 %v2514
          %2886 = vmatpush.msra.mxu0 %v2510
          %2887 = vmatpush.msra.mxu0 %v2506
          %2888 = vmatpush.msra.mxu0 %v2502
          %2889 = vmatpush.msra.mxu0 %v2498
          %2890 = vmatpush.msra.mxu0 %v2494
          %2891 = vmatpush.msra.mxu0 %v2490
          %2892 = vmatpush.msra.mxu0 %v2486
          %2893 = vmatpush.msra.mxu0 %v2482
          %2894 = vmatpush.msra.mxu0 %v2478
          %2895 = vmatpush.msra.mxu0 %v2474
          %2896 = vmatpush.msra.mxu0 %v2470
          %2897 = vmatmul.f32.gmra.mxu0 %v2808
          %v2898 = vpop.f32.mrf.mxu0
          %v2899 = vadd.f32 %v2879, %v2898
          %2900 = vdwg.mxu0
          %2901 = vmatpush.msra.mxu0 %v2594
          %2902 = vmatpush.msra.mxu0 %v2590
          %2903 = vmatpush.msra.mxu0 %v2586
          %2904 = vmatpush.msra.mxu0 %v2582
          %2905 = vmatpush.msra.mxu0 %v2578
          %2906 = vmatpush.msra.mxu0 %v2574
          %2907 = vmatpush.msra.mxu0 %v2570
          %2908 = vmatpush.msra.mxu0 %v2566
          %2909 = vmatpush.msra.mxu0 %v2562
          %2910 = vmatpush.msra.mxu0 %v2558
          %2911 = vmatpush.msra.mxu0 %v2554
          %2912 = vmatpush.msra.mxu0 %v2550
          %2913 = vmatpush.msra.mxu0 %v2546
          %2914 = vmatpush.msra.mxu0 %v2542
          %2915 = vmatpush.msra.mxu0 %v2538
          %2916 = vmatpush.msra.mxu0 %v2534
          %2917 = vmatmul.f32.gmra.mxu0 %v2809
          %v2918 = vpop.f32.mrf.mxu0
          %v2919 = vadd.f32 %v2899, %v2918
          %2920 = vdwg.mxu0
          %2921 = vmatpush.msra.mxu0 %v2658
          %2922 = vmatpush.msra.mxu0 %v2654
          %2923 = vmatpush.msra.mxu0 %v2650
          %2924 = vmatpush.msra.mxu0 %v2646
          %2925 = vmatpush.msra.mxu0 %v2642
          %2926 = vmatpush.msra.mxu0 %v2638
          %2927 = vmatpush.msra.mxu0 %v2634
          %2928 = vmatpush.msra.mxu0 %v2630
          %2929 = vmatpush.msra.mxu0 %v2626
          %2930 = vmatpush.msra.mxu0 %v2622
          %2931 = vmatpush.msra.mxu0 %v2618
          %2932 = vmatpush.msra.mxu0 %v2614
          %2933 = vmatpush.msra.mxu0 %v2610
          %2934 = vmatpush.msra.mxu0 %v2606
          %2935 = vmatpush.msra.mxu0 %v2602
          %2936 = vmatpush.msra.mxu0 %v2598
          %2937 = vmatmul.f32.gmra.mxu0 %v2810
          %v2938 = vpop.f32.mrf.mxu0
          %v2939 = vadd.f32 %v2919, %v2938
          %2940 = vdwg.mxu0
          %2941 = vmatpush.msra.mxu0 %v2722
          %2942 = vmatpush.msra.mxu0 %v2718
          %2943 = vmatpush.msra.mxu0 %v2714
          %2944 = vmatpush.msra.mxu0 %v2710
          %2945 = vmatpush.msra.mxu0 %v2706
          %2946 = vmatpush.msra.mxu0 %v2702
          %2947 = vmatpush.msra.mxu0 %v2698
          %2948 = vmatpush.msra.mxu0 %v2694
          %2949 = vmatpush.msra.mxu0 %v2690
          %2950 = vmatpush.msra.mxu0 %v2686
          %2951 = vmatpush.msra.mxu0 %v2682
          %2952 = vmatpush.msra.mxu0 %v2678
          %2953 = vmatpush.msra.mxu0 %v2674
          %2954 = vmatpush.msra.mxu0 %v2670
          %2955 = vmatpush.msra.mxu0 %v2666
          %2956 = vmatpush.msra.mxu0 %v2662
          %2957 = vmatmul.f32.gmra.mxu0 %v2811
          %v2958 = vpop.f32.mrf.mxu0
          %v2959 = vadd.f32 %v2939, %v2958
          %2960 = vdwg.mxu0
          %2961 = vmatpush.msra.mxu0 %v2786
          %2962 = vmatpush.msra.mxu0 %v2782
          %2963 = vmatpush.msra.mxu0 %v2778
          %2964 = vmatpush.msra.mxu0 %v2774
          %2965 = vmatpush.msra.mxu0 %v2770
          %2966 = vmatpush.msra.mxu0 %v2766
          %2967 = vmatpush.msra.mxu0 %v2762
          %2968 = vmatpush.msra.mxu0 %v2758
          %2969 = vmatpush.msra.mxu0 %v2754
          %2970 = vmatpush.msra.mxu0 %v2750
          %2971 = vmatpush.msra.mxu0 %v2746
          %2972 = vmatpush.msra.mxu0 %v2742
          %2973 = vmatpush.msra.mxu0 %v2738
          %2974 = vmatpush.msra.mxu0 %v2734
          %2975 = vmatpush.msra.mxu0 %v2730
          %2976 = vmatpush.msra.mxu0 %v2726
          %2977 = vmatmul.f32.gmra.mxu0 %v2812
          %v2978 = vpop.f32.mrf.mxu0
          %v2979 = vadd.f32 %v2959, %v2978
          %2980 = vdwg.mxu0
          %2981 = vmatpush.msra.mxu0 %v2339
          %2982 = vmatpush.msra.mxu0 %v2335
          %2983 = vmatpush.msra.mxu0 %v2331
          %2984 = vmatpush.msra.mxu0 %v2327
          %2985 = vmatpush.msra.mxu0 %v2323
          %2986 = vmatpush.msra.mxu0 %v2319
          %2987 = vmatpush.msra.mxu0 %v2315
          %2988 = vmatpush.msra.mxu0 %v2311
          %2989 = vmatpush.msra.mxu0 %v2307
          %2990 = vmatpush.msra.mxu0 %v2303
          %2991 = vmatpush.msra.mxu0 %v2299
          %2992 = vmatpush.msra.mxu0 %v2295
          %2993 = vmatpush.msra.mxu0 %v2291
          %2994 = vmatpush.msra.mxu0 %v2287
          %2995 = vmatpush.msra.mxu0 %v2283
          %2996 = vmatpush.msra.mxu0 %v2279
          %2997 = vmatmul.f32.gmra.mxu0 %v2805
          %v2998 = vpop.f32.mrf.mxu0
          %v2999 = vadd.f32 %v2793, %v2998
          %3000 = vdwg.mxu0
          %3001 = vmatpush.msra.mxu0 %v2403
          %3002 = vmatpush.msra.mxu0 %v2399
          %3003 = vmatpush.msra.mxu0 %v2395
          %3004 = vmatpush.msra.mxu0 %v2391
          %3005 = vmatpush.msra.mxu0 %v2387
          %3006 = vmatpush.msra.mxu0 %v2383
          %3007 = vmatpush.msra.mxu0 %v2379
          %3008 = vmatpush.msra.mxu0 %v2375
          %3009 = vmatpush.msra.mxu0 %v2371
          %3010 = vmatpush.msra.mxu0 %v2367
          %3011 = vmatpush.msra.mxu0 %v2363
          %3012 = vmatpush.msra.mxu0 %v2359
          %3013 = vmatpush.msra.mxu0 %v2355
          %3014 = vmatpush.msra.mxu0 %v2351
          %3015 = vmatpush.msra.mxu0 %v2347
          %3016 = vmatpush.msra.mxu0 %v2343
          %3017 = vmatmul.f32.gmra.mxu0 %v2806
          %v3018 = vpop.f32.mrf.mxu0
          %v3019 = vadd.f32 %v2999, %v3018
          %3020 = vdwg.mxu0
          %3021 = vmatpush.msra.mxu0 %v2467
          %3022 = vmatpush.msra.mxu0 %v2463
          %3023 = vmatpush.msra.mxu0 %v2459
          %3024 = vmatpush.msra.mxu0 %v2455
          %3025 = vmatpush.msra.mxu0 %v2451
          %3026 = vmatpush.msra.mxu0 %v2447
          %3027 = vmatpush.msra.mxu0 %v2443
          %3028 = vmatpush.msra.mxu0 %v2439
          %3029 = vmatpush.msra.mxu0 %v2435
          %3030 = vmatpush.msra.mxu0 %v2431
          %3031 = vmatpush.msra.mxu0 %v2427
          %3032 = vmatpush.msra.mxu0 %v2423
          %3033 = vmatpush.msra.mxu0 %v2419
          %3034 = vmatpush.msra.mxu0 %v2415
          %3035 = vmatpush.msra.mxu0 %v2411
          %3036 = vmatpush.msra.mxu0 %v2407
          %3037 = vmatmul.f32.gmra.mxu0 %v2807
          %v3038 = vpop.f32.mrf.mxu0
          %v3039 = vadd.f32 %v3019, %v3038
          %3040 = vdwg.mxu0
          %3041 = vmatpush.msra.mxu0 %v2531
          %3042 = vmatpush.msra.mxu0 %v2527
          %3043 = vmatpush.msra.mxu0 %v2523
          %3044 = vmatpush.msra.mxu0 %v2519
          %3045 = vmatpush.msra.mxu0 %v2515
          %3046 = vmatpush.msra.mxu0 %v2511
          %3047 = vmatpush.msra.mxu0 %v2507
          %3048 = vmatpush.msra.mxu0 %v2503
          %3049 = vmatpush.msra.mxu0 %v2499
          %3050 = vmatpush.msra.mxu0 %v2495
          %3051 = vmatpush.msra.mxu0 %v2491
          %3052 = vmatpush.msra.mxu0 %v2487
          %3053 = vmatpush.msra.mxu0 %v2483
          %3054 = vmatpush.msra.mxu0 %v2479
          %3055 = vmatpush.msra.mxu0 %v2475
          %3056 = vmatpush.msra.mxu0 %v2471
          %3057 = vmatmul.f32.gmra.mxu0 %v2808
          %v3058 = vpop.f32.mrf.mxu0
          %v3059 = vadd.f32 %v3039, %v3058
          %3060 = vdwg.mxu0
          %3061 = vmatpush.msra.mxu0 %v2595
          %3062 = vmatpush.msra.mxu0 %v2591
          %3063 = vmatpush.msra.mxu0 %v2587
          %3064 = vmatpush.msra.mxu0 %v2583
          %3065 = vmatpush.msra.mxu0 %v2579
          %3066 = vmatpush.msra.mxu0 %v2575
          %3067 = vmatpush.msra.mxu0 %v2571
          %3068 = vmatpush.msra.mxu0 %v2567
          %3069 = vmatpush.msra.mxu0 %v2563
          %3070 = vmatpush.msra.mxu0 %v2559
          %3071 = vmatpush.msra.mxu0 %v2555
          %3072 = vmatpush.msra.mxu0 %v2551
          %3073 = vmatpush.msra.mxu0 %v2547
          %3074 = vmatpush.msra.mxu0 %v2543
          %3075 = vmatpush.msra.mxu0 %v2539
          %3076 = vmatpush.msra.mxu0 %v2535
          %3077 = vmatmul.f32.gmra.mxu0 %v2809
          %v3078 = vpop.f32.mrf.mxu0
          %v3079 = vadd.f32 %v3059, %v3078
          %3080 = vdwg.mxu0
          %3081 = vmatpush.msra.mxu0 %v2659
          %3082 = vmatpush.msra.mxu0 %v2655
          %3083 = vmatpush.msra.mxu0 %v2651
          %3084 = vmatpush.msra.mxu0 %v2647
          %3085 = vmatpush.msra.mxu0 %v2643
          %3086 = vmatpush.msra.mxu0 %v2639
          %3087 = vmatpush.msra.mxu0 %v2635
          %3088 = vmatpush.msra.mxu0 %v2631
          %3089 = vmatpush.msra.mxu0 %v2627
          %3090 = vmatpush.msra.mxu0 %v2623
          %3091 = vmatpush.msra.mxu0 %v2619
          %3092 = vmatpush.msra.mxu0 %v2615
          %3093 = vmatpush.msra.mxu0 %v2611
          %3094 = vmatpush.msra.mxu0 %v2607
          %3095 = vmatpush.msra.mxu0 %v2603
          %3096 = vmatpush.msra.mxu0 %v2599
          %3097 = vmatmul.f32.gmra.mxu0 %v2810
          %v3098 = vpop.f32.mrf.mxu0
          %v3099 = vadd.f32 %v3079, %v3098
          %3100 = vdwg.mxu0
          %3101 = vmatpush.msra.mxu0 %v2723
          %3102 = vmatpush.msra.mxu0 %v2719
          %3103 = vmatpush.msra.mxu0 %v2715
          %3104 = vmatpush.msra.mxu0 %v2711
          %3105 = vmatpush.msra.mxu0 %v2707
          %3106 = vmatpush.msra.mxu0 %v2703
          %3107 = vmatpush.msra.mxu0 %v2699
          %3108 = vmatpush.msra.mxu0 %v2695
          %3109 = vmatpush.msra.mxu0 %v2691
          %3110 = vmatpush.msra.mxu0 %v2687
          %3111 = vmatpush.msra.mxu0 %v2683
          %3112 = vmatpush.msra.mxu0 %v2679
          %3113 = vmatpush.msra.mxu0 %v2675
          %3114 = vmatpush.msra.mxu0 %v2671
          %3115 = vmatpush.msra.mxu0 %v2667
          %3116 = vmatpush.msra.mxu0 %v2663
          %3117 = vmatmul.f32.gmra.mxu0 %v2811
          %v3118 = vpop.f32.mrf.mxu0
          %v3119 = vadd.f32 %v3099, %v3118
          %3120 = vdwg.mxu0
          %3121 = vmatpush.msra.mxu0 %v2787
          %3122 = vmatpush.msra.mxu0 %v2783
          %3123 = vmatpush.msra.mxu0 %v2779
          %3124 = vmatpush.msra.mxu0 %v2775
          %3125 = vmatpush.msra.mxu0 %v2771
          %3126 = vmatpush.msra.mxu0 %v2767
          %3127 = vmatpush.msra.mxu0 %v2763
          %3128 = vmatpush.msra.mxu0 %v2759
          %3129 = vmatpush.msra.mxu0 %v2755
          %3130 = vmatpush.msra.mxu0 %v2751
          %3131 = vmatpush.msra.mxu0 %v2747
          %3132 = vmatpush.msra.mxu0 %v2743
          %3133 = vmatpush.msra.mxu0 %v2739
          %3134 = vmatpush.msra.mxu0 %v2735
          %3135 = vmatpush.msra.mxu0 %v2731
          %3136 = vmatpush.msra.mxu0 %v2727
          %3137 = vmatmul.f32.gmra.mxu0 %v2812
          %v3138 = vpop.f32.mrf.mxu0
          %v3139 = vadd.f32 %v3119, %v3138
          %3140 = vdwg.mxu0
          %3141 = vmatpush.msra.mxu0 %v2340
          %3142 = vmatpush.msra.mxu0 %v2336
          %3143 = vmatpush.msra.mxu0 %v2332
          %3144 = vmatpush.msra.mxu0 %v2328
          %3145 = vmatpush.msra.mxu0 %v2324
          %3146 = vmatpush.msra.mxu0 %v2320
          %3147 = vmatpush.msra.mxu0 %v2316
          %3148 = vmatpush.msra.mxu0 %v2312
          %3149 = vmatpush.msra.mxu0 %v2308
          %3150 = vmatpush.msra.mxu0 %v2304
          %3151 = vmatpush.msra.mxu0 %v2300
          %3152 = vmatpush.msra.mxu0 %v2296
          %3153 = vmatpush.msra.mxu0 %v2292
          %3154 = vmatpush.msra.mxu0 %v2288
          %3155 = vmatpush.msra.mxu0 %v2284
          %3156 = vmatpush.msra.mxu0 %v2280
          %3157 = vmatmul.f32.gmra.mxu0 %v2805
          %v3158 = vpop.f32.mrf.mxu0
          %v3159 = vadd.f32 %v2794, %v3158
          %3160 = vdwg.mxu0
          %3161 = vmatpush.msra.mxu0 %v2404
          %3162 = vmatpush.msra.mxu0 %v2400
          %3163 = vmatpush.msra.mxu0 %v2396
          %3164 = vmatpush.msra.mxu0 %v2392
          %3165 = vmatpush.msra.mxu0 %v2388
          %3166 = vmatpush.msra.mxu0 %v2384
          %3167 = vmatpush.msra.mxu0 %v2380
          %3168 = vmatpush.msra.mxu0 %v2376
          %3169 = vmatpush.msra.mxu0 %v2372
          %3170 = vmatpush.msra.mxu0 %v2368
          %3171 = vmatpush.msra.mxu0 %v2364
          %3172 = vmatpush.msra.mxu0 %v2360
          %3173 = vmatpush.msra.mxu0 %v2356
          %3174 = vmatpush.msra.mxu0 %v2352
          %3175 = vmatpush.msra.mxu0 %v2348
          %3176 = vmatpush.msra.mxu0 %v2344
          %3177 = vmatmul.f32.gmra.mxu0 %v2806
          %v3178 = vpop.f32.mrf.mxu0
          %v3179 = vadd.f32 %v3159, %v3178
          %3180 = vdwg.mxu0
          %3181 = vmatpush.msra.mxu0 %v2468
          %3182 = vmatpush.msra.mxu0 %v2464
          %3183 = vmatpush.msra.mxu0 %v2460
          %3184 = vmatpush.msra.mxu0 %v2456
          %3185 = vmatpush.msra.mxu0 %v2452
          %3186 = vmatpush.msra.mxu0 %v2448
          %3187 = vmatpush.msra.mxu0 %v2444
          %3188 = vmatpush.msra.mxu0 %v2440
          %3189 = vmatpush.msra.mxu0 %v2436
          %3190 = vmatpush.msra.mxu0 %v2432
          %3191 = vmatpush.msra.mxu0 %v2428
          %3192 = vmatpush.msra.mxu0 %v2424
          %3193 = vmatpush.msra.mxu0 %v2420
          %3194 = vmatpush.msra.mxu0 %v2416
          %3195 = vmatpush.msra.mxu0 %v2412
          %3196 = vmatpush.msra.mxu0 %v2408
          %3197 = vmatmul.f32.gmra.mxu0 %v2807
          %v3198 = vpop.f32.mrf.mxu0
          %v3199 = vadd.f32 %v3179, %v3198
          %3200 = vdwg.mxu0
          %3201 = vmatpush.msra.mxu0 %v2532
          %3202 = vmatpush.msra.mxu0 %v2528
          %3203 = vmatpush.msra.mxu0 %v2524
          %3204 = vmatpush.msra.mxu0 %v2520
          %3205 = vmatpush.msra.mxu0 %v2516
          %3206 = vmatpush.msra.mxu0 %v2512
          %3207 = vmatpush.msra.mxu0 %v2508
          %3208 = vmatpush.msra.mxu0 %v2504
          %3209 = vmatpush.msra.mxu0 %v2500
          %3210 = vmatpush.msra.mxu0 %v2496
          %3211 = vmatpush.msra.mxu0 %v2492
          %3212 = vmatpush.msra.mxu0 %v2488
          %3213 = vmatpush.msra.mxu0 %v2484
          %3214 = vmatpush.msra.mxu0 %v2480
          %3215 = vmatpush.msra.mxu0 %v2476
          %3216 = vmatpush.msra.mxu0 %v2472
          %3217 = vmatmul.f32.gmra.mxu0 %v2808
          %v3218 = vpop.f32.mrf.mxu0
          %v3219 = vadd.f32 %v3199, %v3218
          %3220 = vdwg.mxu0
          %3221 = vmatpush.msra.mxu0 %v2596
          %3222 = vmatpush.msra.mxu0 %v2592
          %3223 = vmatpush.msra.mxu0 %v2588
          %3224 = vmatpush.msra.mxu0 %v2584
          %3225 = vmatpush.msra.mxu0 %v2580
          %3226 = vmatpush.msra.mxu0 %v2576
          %3227 = vmatpush.msra.mxu0 %v2572
          %3228 = vmatpush.msra.mxu0 %v2568
          %3229 = vmatpush.msra.mxu0 %v2564
          %3230 = vmatpush.msra.mxu0 %v2560
          %3231 = vmatpush.msra.mxu0 %v2556
          %3232 = vmatpush.msra.mxu0 %v2552
          %3233 = vmatpush.msra.mxu0 %v2548
          %3234 = vmatpush.msra.mxu0 %v2544
          %3235 = vmatpush.msra.mxu0 %v2540
          %3236 = vmatpush.msra.mxu0 %v2536
          %3237 = vmatmul.f32.gmra.mxu0 %v2809
          %v3238 = vpop.f32.mrf.mxu0
          %v3239 = vadd.f32 %v3219, %v3238
          %3240 = vdwg.mxu0
          %3241 = vmatpush.msra.mxu0 %v2660
          %3242 = vmatpush.msra.mxu0 %v2656
          %3243 = vmatpush.msra.mxu0 %v2652
          %3244 = vmatpush.msra.mxu0 %v2648
          %3245 = vmatpush.msra.mxu0 %v2644
          %3246 = vmatpush.msra.mxu0 %v2640
          %3247 = vmatpush.msra.mxu0 %v2636
          %3248 = vmatpush.msra.mxu0 %v2632
          %3249 = vmatpush.msra.mxu0 %v2628
          %3250 = vmatpush.msra.mxu0 %v2624
          %3251 = vmatpush.msra.mxu0 %v2620
          %3252 = vmatpush.msra.mxu0 %v2616
          %3253 = vmatpush.msra.mxu0 %v2612
          %3254 = vmatpush.msra.mxu0 %v2608
          %3255 = vmatpush.msra.mxu0 %v2604
          %3256 = vmatpush.msra.mxu0 %v2600
          %3257 = vmatmul.f32.gmra.mxu0 %v2810
          %v3258 = vpop.f32.mrf.mxu0
          %v3259 = vadd.f32 %v3239, %v3258
          %3260 = vdwg.mxu0
          %3261 = vmatpush.msra.mxu0 %v2724
          %3262 = vmatpush.msra.mxu0 %v2720
          %3263 = vmatpush.msra.mxu0 %v2716
          %3264 = vmatpush.msra.mxu0 %v2712
          %3265 = vmatpush.msra.mxu0 %v2708
          %3266 = vmatpush.msra.mxu0 %v2704
          %3267 = vmatpush.msra.mxu0 %v2700
          %3268 = vmatpush.msra.mxu0 %v2696
          %3269 = vmatpush.msra.mxu0 %v2692
          %3270 = vmatpush.msra.mxu0 %v2688
          %3271 = vmatpush.msra.mxu0 %v2684
          %3272 = vmatpush.msra.mxu0 %v2680
          %3273 = vmatpush.msra.mxu0 %v2676
          %3274 = vmatpush.msra.mxu0 %v2672
          %3275 = vmatpush.msra.mxu0 %v2668
          %3276 = vmatpush.msra.mxu0 %v2664
          %3277 = vmatmul.f32.gmra.mxu0 %v2811
          %v3278 = vpop.f32.mrf.mxu0
          %v3279 = vadd.f32 %v3259, %v3278
          %3280 = vdwg.mxu0
          %3281 = vmatpush.msra.mxu0 %v2788
          %3282 = vmatpush.msra.mxu0 %v2784
          %3283 = vmatpush.msra.mxu0 %v2780
          %3284 = vmatpush.msra.mxu0 %v2776
          %3285 = vmatpush.msra.mxu0 %v2772
          %3286 = vmatpush.msra.mxu0 %v2768
          %3287 = vmatpush.msra.mxu0 %v2764
          %3288 = vmatpush.msra.mxu0 %v2760
          %3289 = vmatpush.msra.mxu0 %v2756
          %3290 = vmatpush.msra.mxu0 %v2752
          %3291 = vmatpush.msra.mxu0 %v2748
          %3292 = vmatpush.msra.mxu0 %v2744
          %3293 = vmatpush.msra.mxu0 %v2740
          %3294 = vmatpush.msra.mxu0 %v2736
          %3295 = vmatpush.msra.mxu0 %v2732
          %3296 = vmatpush.msra.mxu0 %v2728
          %3297 = vmatmul.f32.gmra.mxu0 %v2812
          %v3298 = vpop.f32.mrf.mxu0
          %v3299 = vadd.f32 %v3279, %v3298
          %3300 = vdwg.mxu0
          %3301 = vmatpush.msra.mxu0 %v2341
          %3302 = vmatpush.msra.mxu0 %v2337
          %3303 = vmatpush.msra.mxu0 %v2333
          %3304 = vmatpush.msra.mxu0 %v2329
          %3305 = vmatpush.msra.mxu0 %v2325
          %3306 = vmatpush.msra.mxu0 %v2321
          %3307 = vmatpush.msra.mxu0 %v2317
          %3308 = vmatpush.msra.mxu0 %v2313
          %3309 = vmatpush.msra.mxu0 %v2309
          %3310 = vmatpush.msra.mxu0 %v2305
          %3311 = vmatpush.msra.mxu0 %v2301
          %3312 = vmatpush.msra.mxu0 %v2297
          %3313 = vmatpush.msra.mxu0 %v2293
          %3314 = vmatpush.msra.mxu0 %v2289
          %3315 = vmatpush.msra.mxu0 %v2285
          %3316 = vmatpush.msra.mxu0 %v2281
          %3317 = vmatmul.f32.gmra.mxu0 %v2805
          %v3318 = vpop.f32.mrf.mxu0
          %v3319 = vadd.f32 %v2795, %v3318
          %3320 = vdwg.mxu0
          %3321 = vmatpush.msra.mxu0 %v2405
          %3322 = vmatpush.msra.mxu0 %v2401
          %3323 = vmatpush.msra.mxu0 %v2397
          %3324 = vmatpush.msra.mxu0 %v2393
          %3325 = vmatpush.msra.mxu0 %v2389
          %3326 = vmatpush.msra.mxu0 %v2385
          %3327 = vmatpush.msra.mxu0 %v2381
          %3328 = vmatpush.msra.mxu0 %v2377
          %3329 = vmatpush.msra.mxu0 %v2373
          %3330 = vmatpush.msra.mxu0 %v2369
          %3331 = vmatpush.msra.mxu0 %v2365
          %3332 = vmatpush.msra.mxu0 %v2361
          %3333 = vmatpush.msra.mxu0 %v2357
          %3334 = vmatpush.msra.mxu0 %v2353
          %3335 = vmatpush.msra.mxu0 %v2349
          %3336 = vmatpush.msra.mxu0 %v2345
          %3337 = vmatmul.f32.gmra.mxu0 %v2806
          %v3338 = vpop.f32.mrf.mxu0
          %v3339 = vadd.f32 %v3319, %v3338
          %3340 = vdwg.mxu0
          %3341 = vmatpush.msra.mxu0 %v2469
          %3342 = vmatpush.msra.mxu0 %v2465
          %3343 = vmatpush.msra.mxu0 %v2461
          %3344 = vmatpush.msra.mxu0 %v2457
          %3345 = vmatpush.msra.mxu0 %v2453
          %3346 = vmatpush.msra.mxu0 %v2449
          %3347 = vmatpush.msra.mxu0 %v2445
          %3348 = vmatpush.msra.mxu0 %v2441
          %3349 = vmatpush.msra.mxu0 %v2437
          %3350 = vmatpush.msra.mxu0 %v2433
          %3351 = vmatpush.msra.mxu0 %v2429
          %3352 = vmatpush.msra.mxu0 %v2425
          %3353 = vmatpush.msra.mxu0 %v2421
          %3354 = vmatpush.msra.mxu0 %v2417
          %3355 = vmatpush.msra.mxu0 %v2413
          %3356 = vmatpush.msra.mxu0 %v2409
          %3357 = vmatmul.f32.gmra.mxu0 %v2807
          %v3358 = vpop.f32.mrf.mxu0
          %v3359 = vadd.f32 %v3339, %v3358
          %3360 = vdwg.mxu0
          %3361 = vmatpush.msra.mxu0 %v2533
          %3362 = vmatpush.msra.mxu0 %v2529
          %3363 = vmatpush.msra.mxu0 %v2525
          %3364 = vmatpush.msra.mxu0 %v2521
          %3365 = vmatpush.msra.mxu0 %v2517
          %3366 = vmatpush.msra.mxu0 %v2513
          %3367 = vmatpush.msra.mxu0 %v2509
          %3368 = vmatpush.msra.mxu0 %v2505
          %3369 = vmatpush.msra.mxu0 %v2501
          %3370 = vmatpush.msra.mxu0 %v2497
          %3371 = vmatpush.msra.mxu0 %v2493
          %3372 = vmatpush.msra.mxu0 %v2489
          %3373 = vmatpush.msra.mxu0 %v2485
          %3374 = vmatpush.msra.mxu0 %v2481
          %3375 = vmatpush.msra.mxu0 %v2477
          %3376 = vmatpush.msra.mxu0 %v2473
          %3377 = vmatmul.f32.gmra.mxu0 %v2808
          %v3378 = vpop.f32.mrf.mxu0
          %v3379 = vadd.f32 %v3359, %v3378
          %3380 = vdwg.mxu0
          %3381 = vmatpush.msra.mxu0 %v2597
          %3382 = vmatpush.msra.mxu0 %v2593
          %3383 = vmatpush.msra.mxu0 %v2589
          %3384 = vmatpush.msra.mxu0 %v2585
          %3385 = vmatpush.msra.mxu0 %v2581
          %3386 = vmatpush.msra.mxu0 %v2577
          %3387 = vmatpush.msra.mxu0 %v2573
          %3388 = vmatpush.msra.mxu0 %v2569
          %3389 = vmatpush.msra.mxu0 %v2565
          %3390 = vmatpush.msra.mxu0 %v2561
          %3391 = vmatpush.msra.mxu0 %v2557
          %3392 = vmatpush.msra.mxu0 %v2553
          %3393 = vmatpush.msra.mxu0 %v2549
          %3394 = vmatpush.msra.mxu0 %v2545
          %3395 = vmatpush.msra.mxu0 %v2541
          %3396 = vmatpush.msra.mxu0 %v2537
          %3397 = vmatmul.f32.gmra.mxu0 %v2809
          %v3398 = vpop.f32.mrf.mxu0
          %v3399 = vadd.f32 %v3379, %v3398
          %3400 = vdwg.mxu0
          %3401 = vmatpush.msra.mxu0 %v2661
          %3402 = vmatpush.msra.mxu0 %v2657
          %3403 = vmatpush.msra.mxu0 %v2653
          %3404 = vmatpush.msra.mxu0 %v2649
          %3405 = vmatpush.msra.mxu0 %v2645
          %3406 = vmatpush.msra.mxu0 %v2641
          %3407 = vmatpush.msra.mxu0 %v2637
          %3408 = vmatpush.msra.mxu0 %v2633
          %3409 = vmatpush.msra.mxu0 %v2629
          %3410 = vmatpush.msra.mxu0 %v2625
          %3411 = vmatpush.msra.mxu0 %v2621
          %3412 = vmatpush.msra.mxu0 %v2617
          %3413 = vmatpush.msra.mxu0 %v2613
          %3414 = vmatpush.msra.mxu0 %v2609
          %3415 = vmatpush.msra.mxu0 %v2605
          %3416 = vmatpush.msra.mxu0 %v2601
          %3417 = vmatmul.f32.gmra.mxu0 %v2810
          %v3418 = vpop.f32.mrf.mxu0
          %v3419 = vadd.f32 %v3399, %v3418
          %3420 = vdwg.mxu0
          %3421 = vmatpush.msra.mxu0 %v2725
          %3422 = vmatpush.msra.mxu0 %v2721
          %3423 = vmatpush.msra.mxu0 %v2717
          %3424 = vmatpush.msra.mxu0 %v2713
          %3425 = vmatpush.msra.mxu0 %v2709
          %3426 = vmatpush.msra.mxu0 %v2705
          %3427 = vmatpush.msra.mxu0 %v2701
          %3428 = vmatpush.msra.mxu0 %v2697
          %3429 = vmatpush.msra.mxu0 %v2693
          %3430 = vmatpush.msra.mxu0 %v2689
          %3431 = vmatpush.msra.mxu0 %v2685
          %3432 = vmatpush.msra.mxu0 %v2681
          %3433 = vmatpush.msra.mxu0 %v2677
          %3434 = vmatpush.msra.mxu0 %v2673
          %3435 = vmatpush.msra.mxu0 %v2669
          %3436 = vmatpush.msra.mxu0 %v2665
          %3437 = vmatmul.f32.gmra.mxu0 %v2811
          %v3438 = vpop.f32.mrf.mxu0
          %v3439 = vadd.f32 %v3419, %v3438
          %3440 = vdwg.mxu0
          %3441 = vmatpush.msra.mxu0 %v2789
          %3442 = vmatpush.msra.mxu0 %v2785
          %3443 = vmatpush.msra.mxu0 %v2781
          %3444 = vmatpush.msra.mxu0 %v2777
          %3445 = vmatpush.msra.mxu0 %v2773
          %3446 = vmatpush.msra.mxu0 %v2769
          %3447 = vmatpush.msra.mxu0 %v2765
          %3448 = vmatpush.msra.mxu0 %v2761
          %3449 = vmatpush.msra.mxu0 %v2757
          %3450 = vmatpush.msra.mxu0 %v2753
          %3451 = vmatpush.msra.mxu0 %v2749
          %3452 = vmatpush.msra.mxu0 %v2745
          %3453 = vmatpush.msra.mxu0 %v2741
          %3454 = vmatpush.msra.mxu0 %v2737
          %3455 = vmatpush.msra.mxu0 %v2733
          %3456 = vmatpush.msra.mxu0 %v2729
          %3457 = vmatmul.f32.gmra.mxu0 %v2812
          %v3458 = vpop.f32.mrf.mxu0
          %v3459 = vadd.f32 %v3439, %v3458
          %3460 = vdwg.mxu0
          %v3461 = vmax.f32 %v2979, 0.0
          %v3462 = vmax.f32 %v3139, 0.0
          %v3463 = vmax.f32 %v3299, 0.0
          %v3464 = vmax.f32 %v3459, 0.0
          %v3465 = vld [vmem:[#allocation9] sm:$0xff]
          %v3466 = vld [vmem:[#allocation9 + $0x8] sm:$0xff]
          %v3467 = vld [vmem:[#allocation9 + $0x10] sm:$0xff]
          %v3468 = vld [vmem:[#allocation9 + $0x18] sm:$0xff]
          %v3469 = vld [vmem:[#allocation9 + $0x20] sm:$0xff]
          %v3470 = vld [vmem:[#allocation9 + $0x28] sm:$0xff]
          %v3471 = vld [vmem:[#allocation9 + $0x30] sm:$0xff]
          %v3472 = vld [vmem:[#allocation9 + $0x38] sm:$0xff]
          %v3473 = vld [vmem:[#allocation9 + $0x40] sm:$0xff]
          %v3474 = vld [vmem:[#allocation9 + $0x48] sm:$0xff]
          %v3475 = vld [vmem:[#allocation9 + $0x50] sm:$0xff]
          %v3476 = vld [vmem:[#allocation9 + $0x58] sm:$0xff]
          %v3477 = vld [vmem:[#allocation9 + $0x60] sm:$0xff]
          %v3478 = vld [vmem:[#allocation9 + $0x68] sm:$0xff]
          %v3479 = vld [vmem:[#allocation9 + $0x70] sm:$0xff]
          %v3480 = vld [vmem:[#allocation9 + $0x78] sm:$0xff]
          %v3481 = vld [vmem:[#allocation9 + $0x80] sm:$0xff]
          %v3482 = vld [vmem:[#allocation9 + $0x88] sm:$0xff]
          %v3483 = vld [vmem:[#allocation9 + $0x90] sm:$0xff]
          %v3484 = vld [vmem:[#allocation9 + $0x98] sm:$0xff]
          %v3485 = vld [vmem:[#allocation9 + $0xa0] sm:$0xff]
          %v3486 = vld [vmem:[#allocation9 + $0xa8] sm:$0xff]
          %v3487 = vld [vmem:[#allocation9 + $0xb0] sm:$0xff]
          %v3488 = vld [vmem:[#allocation9 + $0xb8] sm:$0xff]
          %v3489 = vld [vmem:[#allocation9 + $0xc0] sm:$0xff]
          %v3490 = vld [vmem:[#allocation9 + $0xc8] sm:$0xff]
          %v3491 = vld [vmem:[#allocation9 + $0xd0] sm:$0xff]
          %v3492 = vld [vmem:[#allocation9 + $0xd8] sm:$0xff]
          %v3493 = vld [vmem:[#allocation9 + $0xe0] sm:$0xff]
          %v3494 = vld [vmem:[#allocation9 + $0xe8] sm:$0xff]
          %v3495 = vld [vmem:[#allocation9 + $0xf0] sm:$0xff]
          %v3496 = vld [vmem:[#allocation9 + $0xf8] sm:$0xff]
          %v3497 = vld [vmem:[#allocation9 + $0x100] sm:$0xff]
          %v3498 = vld [vmem:[#allocation9 + $0x108] sm:$0xff]
          %v3499 = vld [vmem:[#allocation9 + $0x110] sm:$0xff]
          %v3500 = vld [vmem:[#allocation9 + $0x118] sm:$0xff]
          %v3501 = vld [vmem:[#allocation9 + $0x120] sm:$0xff]
          %v3502 = vld [vmem:[#allocation9 + $0x128] sm:$0xff]
          %v3503 = vld [vmem:[#allocation9 + $0x130] sm:$0xff]
          %v3504 = vld [vmem:[#allocation9 + $0x138] sm:$0xff]
          %v3505 = vld [vmem:[#allocation9 + $0x140] sm:$0xff]
          %v3506 = vld [vmem:[#allocation9 + $0x148] sm:$0xff]
          %v3507 = vld [vmem:[#allocation9 + $0x150] sm:$0xff]
          %v3508 = vld [vmem:[#allocation9 + $0x158] sm:$0xff]
          %v3509 = vld [vmem:[#allocation9 + $0x160] sm:$0xff]
          %v3510 = vld [vmem:[#allocation9 + $0x168] sm:$0xff]
          %v3511 = vld [vmem:[#allocation9 + $0x170] sm:$0xff]
          %v3512 = vld [vmem:[#allocation9 + $0x178] sm:$0xff]
          %v3513 = vld [vmem:[#allocation9 + $0x180] sm:$0xff]
          %v3514 = vld [vmem:[#allocation9 + $0x188] sm:$0xff]
          %v3515 = vld [vmem:[#allocation9 + $0x190] sm:$0xff]
          %v3516 = vld [vmem:[#allocation9 + $0x198] sm:$0xff]
          %v3517 = vld [vmem:[#allocation9 + $0x1a0] sm:$0xff]
          %v3518 = vld [vmem:[#allocation9 + $0x1a8] sm:$0xff]
          %v3519 = vld [vmem:[#allocation9 + $0x1b0] sm:$0xff]
          %v3520 = vld [vmem:[#allocation9 + $0x1b8] sm:$0xff]
          %v3521 = vld [vmem:[#allocation9 + $0x1c0] sm:$0xff]
          %v3522 = vld [vmem:[#allocation9 + $0x1c8] sm:$0xff]
          %v3523 = vld [vmem:[#allocation9 + $0x1d0] sm:$0xff]
          %v3524 = vld [vmem:[#allocation9 + $0x1d8] sm:$0xff]
          %v3525 = vld [vmem:[#allocation9 + $0x1e0] sm:$0xff]
          %v3526 = vld [vmem:[#allocation9 + $0x1e8] sm:$0xff]
          %v3527 = vld [vmem:[#allocation9 + $0x1f0] sm:$0xff]
          %v3528 = vld [vmem:[#allocation9 + $0x1f8] sm:$0xff]
          %v3529 = vunpack.c.l.bf16 %v3465
          %v3530 = vunpack.c.h.bf16 %v3465
          %v3531 = vunpack.c.l.bf16 %v3466
          %v3532 = vunpack.c.h.bf16 %v3466
          %v3533 = vunpack.c.l.bf16 %v3467
          %v3534 = vunpack.c.h.bf16 %v3467
          %v3535 = vunpack.c.l.bf16 %v3468
          %v3536 = vunpack.c.h.bf16 %v3468
          %v3537 = vunpack.c.l.bf16 %v3469
          %v3538 = vunpack.c.h.bf16 %v3469
          %v3539 = vunpack.c.l.bf16 %v3470
          %v3540 = vunpack.c.h.bf16 %v3470
          %v3541 = vunpack.c.l.bf16 %v3471
          %v3542 = vunpack.c.h.bf16 %v3471
          %v3543 = vunpack.c.l.bf16 %v3472
          %v3544 = vunpack.c.h.bf16 %v3472
          %v3545 = vunpack.c.l.bf16 %v3473
          %v3546 = vunpack.c.h.bf16 %v3473
          %v3547 = vunpack.c.l.bf16 %v3474
          %v3548 = vunpack.c.h.bf16 %v3474
          %v3549 = vunpack.c.l.bf16 %v3475
          %v3550 = vunpack.c.h.bf16 %v3475
          %v3551 = vunpack.c.l.bf16 %v3476
          %v3552 = vunpack.c.h.bf16 %v3476
          %v3553 = vunpack.c.l.bf16 %v3477
          %v3554 = vunpack.c.h.bf16 %v3477
          %v3555 = vunpack.c.l.bf16 %v3478
          %v3556 = vunpack.c.h.bf16 %v3478
          %v3557 = vunpack.c.l.bf16 %v3479
          %v3558 = vunpack.c.h.bf16 %v3479
          %v3559 = vunpack.c.l.bf16 %v3480
          %v3560 = vunpack.c.h.bf16 %v3480
          %v3561 = vunpack.c.l.bf16 %v3481
          %v3562 = vunpack.c.h.bf16 %v3481
          %v3563 = vunpack.c.l.bf16 %v3482
          %v3564 = vunpack.c.h.bf16 %v3482
          %v3565 = vunpack.c.l.bf16 %v3483
          %v3566 = vunpack.c.h.bf16 %v3483
          %v3567 = vunpack.c.l.bf16 %v3484
          %v3568 = vunpack.c.h.bf16 %v3484
          %v3569 = vunpack.c.l.bf16 %v3485
          %v3570 = vunpack.c.h.bf16 %v3485
          %v3571 = vunpack.c.l.bf16 %v3486
          %v3572 = vunpack.c.h.bf16 %v3486
          %v3573 = vunpack.c.l.bf16 %v3487
          %v3574 = vunpack.c.h.bf16 %v3487
          %v3575 = vunpack.c.l.bf16 %v3488
          %v3576 = vunpack.c.h.bf16 %v3488
          %v3577 = vunpack.c.l.bf16 %v3489
          %v3578 = vunpack.c.h.bf16 %v3489
          %v3579 = vunpack.c.l.bf16 %v3490
          %v3580 = vunpack.c.h.bf16 %v3490
          %v3581 = vunpack.c.l.bf16 %v3491
          %v3582 = vunpack.c.h.bf16 %v3491
          %v3583 = vunpack.c.l.bf16 %v3492
          %v3584 = vunpack.c.h.bf16 %v3492
          %v3585 = vunpack.c.l.bf16 %v3493
          %v3586 = vunpack.c.h.bf16 %v3493
          %v3587 = vunpack.c.l.bf16 %v3494
          %v3588 = vunpack.c.h.bf16 %v3494
          %v3589 = vunpack.c.l.bf16 %v3495
          %v3590 = vunpack.c.h.bf16 %v3495
          %v3591 = vunpack.c.l.bf16 %v3496
          %v3592 = vunpack.c.h.bf16 %v3496
          %v3593 = vunpack.c.l.bf16 %v3497
          %v3594 = vunpack.c.h.bf16 %v3497
          %v3595 = vunpack.c.l.bf16 %v3498
          %v3596 = vunpack.c.h.bf16 %v3498
          %v3597 = vunpack.c.l.bf16 %v3499
          %v3598 = vunpack.c.h.bf16 %v3499
          %v3599 = vunpack.c.l.bf16 %v3500
          %v3600 = vunpack.c.h.bf16 %v3500
          %v3601 = vunpack.c.l.bf16 %v3501
          %v3602 = vunpack.c.h.bf16 %v3501
          %v3603 = vunpack.c.l.bf16 %v3502
          %v3604 = vunpack.c.h.bf16 %v3502
          %v3605 = vunpack.c.l.bf16 %v3503
          %v3606 = vunpack.c.h.bf16 %v3503
          %v3607 = vunpack.c.l.bf16 %v3504
          %v3608 = vunpack.c.h.bf16 %v3504
          %v3609 = vunpack.c.l.bf16 %v3505
          %v3610 = vunpack.c.h.bf16 %v3505
          %v3611 = vunpack.c.l.bf16 %v3506
          %v3612 = vunpack.c.h.bf16 %v3506
          %v3613 = vunpack.c.l.bf16 %v3507
          %v3614 = vunpack.c.h.bf16 %v3507
          %v3615 = vunpack.c.l.bf16 %v3508
          %v3616 = vunpack.c.h.bf16 %v3508
          %v3617 = vunpack.c.l.bf16 %v3509
          %v3618 = vunpack.c.h.bf16 %v3509
          %v3619 = vunpack.c.l.bf16 %v3510
          %v3620 = vunpack.c.h.bf16 %v3510
          %v3621 = vunpack.c.l.bf16 %v3511
          %v3622 = vunpack.c.h.bf16 %v3511
          %v3623 = vunpack.c.l.bf16 %v3512
          %v3624 = vunpack.c.h.bf16 %v3512
          %v3625 = vunpack.c.l.bf16 %v3513
          %v3626 = vunpack.c.h.bf16 %v3513
          %v3627 = vunpack.c.l.bf16 %v3514
          %v3628 = vunpack.c.h.bf16 %v3514
          %v3629 = vunpack.c.l.bf16 %v3515
          %v3630 = vunpack.c.h.bf16 %v3515
          %v3631 = vunpack.c.l.bf16 %v3516
          %v3632 = vunpack.c.h.bf16 %v3516
          %v3633 = vunpack.c.l.bf16 %v3517
          %v3634 = vunpack.c.h.bf16 %v3517
          %v3635 = vunpack.c.l.bf16 %v3518
          %v3636 = vunpack.c.h.bf16 %v3518
          %v3637 = vunpack.c.l.bf16 %v3519
          %v3638 = vunpack.c.h.bf16 %v3519
          %v3639 = vunpack.c.l.bf16 %v3520
          %v3640 = vunpack.c.h.bf16 %v3520
          %v3641 = vunpack.c.l.bf16 %v3521
          %v3642 = vunpack.c.h.bf16 %v3521
          %v3643 = vunpack.c.l.bf16 %v3522
          %v3644 = vunpack.c.h.bf16 %v3522
          %v3645 = vunpack.c.l.bf16 %v3523
          %v3646 = vunpack.c.h.bf16 %v3523
          %v3647 = vunpack.c.l.bf16 %v3524
          %v3648 = vunpack.c.h.bf16 %v3524
          %v3649 = vunpack.c.l.bf16 %v3525
          %v3650 = vunpack.c.h.bf16 %v3525
          %v3651 = vunpack.c.l.bf16 %v3526
          %v3652 = vunpack.c.h.bf16 %v3526
          %v3653 = vunpack.c.l.bf16 %v3527
          %v3654 = vunpack.c.h.bf16 %v3527
          %v3655 = vunpack.c.l.bf16 %v3528
          %v3656 = vunpack.c.h.bf16 %v3528
          %v3657 = vld [vmem:[%s10] sm:$0x3]
          %v3659 = vperm.slane %v3657, 0
          %v3660 = vperm.slane %v3657, 1
          %3663 = vmatpush.msra.mxu0 %v3559
          %3664 = vmatpush.msra.mxu0 %v3557
          %3665 = vmatpush.msra.mxu0 %v3555
          %3666 = vmatpush.msra.mxu0 %v3553
          %3667 = vmatpush.msra.mxu0 %v3551
          %3668 = vmatpush.msra.mxu0 %v3549
          %3669 = vmatpush.msra.mxu0 %v3547
          %3670 = vmatpush.msra.mxu0 %v3545
          %3671 = vmatpush.msra.mxu0 %v3543
          %3672 = vmatpush.msra.mxu0 %v3541
          %3673 = vmatpush.msra.mxu0 %v3539
          %3674 = vmatpush.msra.mxu0 %v3537
          %3675 = vmatpush.msra.mxu0 %v3535
          %3676 = vmatpush.msra.mxu0 %v3533
          %3677 = vmatpush.msra.mxu0 %v3531
          %3678 = vmatpush.msra.mxu0 %v3529
          %3679 = vmatmul.f32.gmra.mxu0 %v3461
          %v3680 = vpop.f32.mrf.mxu0
          %v3681 = vadd.f32 %v3659, %v3680
          %3682 = vdwg.mxu0
          %3683 = vmatpush.msra.mxu0 %v3591
          %3684 = vmatpush.msra.mxu0 %v3589
          %3685 = vmatpush.msra.mxu0 %v3587
          %3686 = vmatpush.msra.mxu0 %v3585
          %3687 = vmatpush.msra.mxu0 %v3583
          %3688 = vmatpush.msra.mxu0 %v3581
          %3689 = vmatpush.msra.mxu0 %v3579
          %3690 = vmatpush.msra.mxu0 %v3577
          %3691 = vmatpush.msra.mxu0 %v3575
          %3692 = vmatpush.msra.mxu0 %v3573
          %3693 = vmatpush.msra.mxu0 %v3571
          %3694 = vmatpush.msra.mxu0 %v3569
          %3695 = vmatpush.msra.mxu0 %v3567
          %3696 = vmatpush.msra.mxu0 %v3565
          %3697 = vmatpush.msra.mxu0 %v3563
          %3698 = vmatpush.msra.mxu0 %v3561
          %3699 = vmatmul.f32.gmra.mxu0 %v3462
          %v3700 = vpop.f32.mrf.mxu0
          %v3701 = vadd.f32 %v3681, %v3700
          %3702 = vdwg.mxu0
          %3703 = vmatpush.msra.mxu0 %v3623
          %3704 = vmatpush.msra.mxu0 %v3621
          %3705 = vmatpush.msra.mxu0 %v3619
          %3706 = vmatpush.msra.mxu0 %v3617
          %3707 = vmatpush.msra.mxu0 %v3615
          %3708 = vmatpush.msra.mxu0 %v3613
          %3709 = vmatpush.msra.mxu0 %v3611
          %3710 = vmatpush.msra.mxu0 %v3609
          %3711 = vmatpush.msra.mxu0 %v3607
          %3712 = vmatpush.msra.mxu0 %v3605
          %3713 = vmatpush.msra.mxu0 %v3603
          %3714 = vmatpush.msra.mxu0 %v3601
          %3715 = vmatpush.msra.mxu0 %v3599
          %3716 = vmatpush.msra.mxu0 %v3597
          %3717 = vmatpush.msra.mxu0 %v3595
          %3718 = vmatpush.msra.mxu0 %v3593
          %3719 = vmatmul.f32.gmra.mxu0 %v3463
          %v3720 = vpop.f32.mrf.mxu0
          %v3721 = vadd.f32 %v3701, %v3720
          %3722 = vdwg.mxu0
          %3723 = vmatpush.msra.mxu0 %v3655
          %3724 = vmatpush.msra.mxu0 %v3653
          %3725 = vmatpush.msra.mxu0 %v3651
          %3726 = vmatpush.msra.mxu0 %v3649
          %3727 = vmatpush.msra.mxu0 %v3647
          %3728 = vmatpush.msra.mxu0 %v3645
          %3729 = vmatpush.msra.mxu0 %v3643
          %3730 = vmatpush.msra.mxu0 %v3641
          %3731 = vmatpush.msra.mxu0 %v3639
          %3732 = vmatpush.msra.mxu0 %v3637
          %3733 = vmatpush.msra.mxu0 %v3635
          %3734 = vmatpush.msra.mxu0 %v3633
          %3735 = vmatpush.msra.mxu0 %v3631
          %3736 = vmatpush.msra.mxu0 %v3629
          %3737 = vmatpush.msra.mxu0 %v3627
          %3738 = vmatpush.msra.mxu0 %v3625
          %3739 = vmatmul.f32.gmra.mxu0 %v3464
          %v3740 = vpop.f32.mrf.mxu0
          %v3741 = vadd.f32 %v3721, %v3740
          %3742 = vdwg.mxu0
          %3743 = vmatpush.msra.mxu0 %v3560
          %3744 = vmatpush.msra.mxu0 %v3558
          %3745 = vmatpush.msra.mxu0 %v3556
          %3746 = vmatpush.msra.mxu0 %v3554
          %3747 = vmatpush.msra.mxu0 %v3552
          %3748 = vmatpush.msra.mxu0 %v3550
          %3749 = vmatpush.msra.mxu0 %v3548
          %3750 = vmatpush.msra.mxu0 %v3546
          %3751 = vmatpush.msra.mxu0 %v3544
          %3752 = vmatpush.msra.mxu0 %v3542
          %3753 = vmatpush.msra.mxu0 %v3540
          %3754 = vmatpush.msra.mxu0 %v3538
          %3755 = vmatpush.msra.mxu0 %v3536
          %3756 = vmatpush.msra.mxu0 %v3534
          %3757 = vmatpush.msra.mxu0 %v3532
          %3758 = vmatpush.msra.mxu0 %v3530
          %3759 = vmatmul.f32.gmra.mxu0 %v3461
          %v3760 = vpop.f32.mrf.mxu0
          %v3761 = vadd.f32 %v3660, %v3760
          %3762 = vdwg.mxu0
          %3763 = vmatpush.msra.mxu0 %v3592
          %3764 = vmatpush.msra.mxu0 %v3590
          %3765 = vmatpush.msra.mxu0 %v3588
          %3766 = vmatpush.msra.mxu0 %v3586
          %3767 = vmatpush.msra.mxu0 %v3584
          %3768 = vmatpush.msra.mxu0 %v3582
          %3769 = vmatpush.msra.mxu0 %v3580
          %3770 = vmatpush.msra.mxu0 %v3578
          %3771 = vmatpush.msra.mxu0 %v3576
          %3772 = vmatpush.msra.mxu0 %v3574
          %3773 = vmatpush.msra.mxu0 %v3572
          %3774 = vmatpush.msra.mxu0 %v3570
          %3775 = vmatpush.msra.mxu0 %v3568
          %3776 = vmatpush.msra.mxu0 %v3566
          %3777 = vmatpush.msra.mxu0 %v3564
          %3778 = vmatpush.msra.mxu0 %v3562
          %3779 = vmatmul.f32.gmra.mxu0 %v3462
          %v3780 = vpop.f32.mrf.mxu0
          %v3781 = vadd.f32 %v3761, %v3780
          %3782 = vdwg.mxu0
          %3783 = vmatpush.msra.mxu0 %v3624
          %3784 = vmatpush.msra.mxu0 %v3622
          %3785 = vmatpush.msra.mxu0 %v3620
          %3786 = vmatpush.msra.mxu0 %v3618
          %3787 = vmatpush.msra.mxu0 %v3616
          %3788 = vmatpush.msra.mxu0 %v3614
          %3789 = vmatpush.msra.mxu0 %v3612
          %3790 = vmatpush.msra.mxu0 %v3610
          %3791 = vmatpush.msra.mxu0 %v3608
          %3792 = vmatpush.msra.mxu0 %v3606
          %3793 = vmatpush.msra.mxu0 %v3604
          %3794 = vmatpush.msra.mxu0 %v3602
          %3795 = vmatpush.msra.mxu0 %v3600
          %3796 = vmatpush.msra.mxu0 %v3598
          %3797 = vmatpush.msra.mxu0 %v3596
          %3798 = vmatpush.msra.mxu0 %v3594
          %3799 = vmatmul.f32.gmra.mxu0 %v3463
          %v3800 = vpop.f32.mrf.mxu0
          %v3801 = vadd.f32 %v3781, %v3800
          %3802 = vdwg.mxu0
          %3803 = vmatpush.msra.mxu0 %v3656
          %3804 = vmatpush.msra.mxu0 %v3654
          %3805 = vmatpush.msra.mxu0 %v3652
          %3806 = vmatpush.msra.mxu0 %v3650
          %3807 = vmatpush.msra.mxu0 %v3648
          %3808 = vmatpush.msra.mxu0 %v3646
          %3809 = vmatpush.msra.mxu0 %v3644
          %3810 = vmatpush.msra.mxu0 %v3642
          %3811 = vmatpush.msra.mxu0 %v3640
          %3812 = vmatpush.msra.mxu0 %v3638
          %3813 = vmatpush.msra.mxu0 %v3636
          %3814 = vmatpush.msra.mxu0 %v3634
          %3815 = vmatpush.msra.mxu0 %v3632
          %3816 = vmatpush.msra.mxu0 %v3630
          %3817 = vmatpush.msra.mxu0 %v3628
          %3818 = vmatpush.msra.mxu0 %v3626
          %3819 = vmatmul.f32.gmra.mxu0 %v3464
          %v3820 = vpop.f32.mrf.mxu0
          %v3821 = vadd.f32 %v3801, %v3820
          %3822 = vdwg.mxu0
          %v3823 = vmax.f32 %v3741, 0.0
          %v3824 = vmax.f32 %v3821, 0.0
          %v3825 = vld [vmem:[%s11] sm:$0xf]
          %v3826 = vld [vmem:[%s11 + $0x4] sm:$0xf]
          %v3827 = vld [vmem:[%s11 + $0x8] sm:$0xf]
          %v3828 = vld [vmem:[%s11 + $0xc] sm:$0xf]
          %v3829 = vld [vmem:[%s11 + $0x10] sm:$0xf]
          %v3830 = vld [vmem:[%s11 + $0x14] sm:$0xf]
          %v3831 = vld [vmem:[%s11 + $0x18] sm:$0xf]
          %v3832 = vld [vmem:[%s11 + $0x1c] sm:$0xf]
          %v3833 = vld [vmem:[%s11 + $0x20] sm:$0xf]
          %v3834 = vld [vmem:[%s11 + $0x24] sm:$0xf]
          %v3835 = vld [vmem:[%s11 + $0x28] sm:$0xf]
          %v3836 = vld [vmem:[%s11 + $0x2c] sm:$0xf]
          %v3837 = vld [vmem:[%s11 + $0x30] sm:$0xf]
          %v3838 = vld [vmem:[%s11 + $0x34] sm:$0xf]
          %v3839 = vld [vmem:[%s11 + $0x38] sm:$0xf]
          %v3840 = vld [vmem:[%s11 + $0x3c] sm:$0xf]
          %v3841 = vld [vmem:[%s11 + $0x40] sm:$0xf]
          %v3842 = vld [vmem:[%s11 + $0x44] sm:$0xf]
          %v3843 = vld [vmem:[%s11 + $0x48] sm:$0xf]
          %v3844 = vld [vmem:[%s11 + $0x4c] sm:$0xf]
          %v3845 = vld [vmem:[%s11 + $0x50] sm:$0xf]
          %v3846 = vld [vmem:[%s11 + $0x54] sm:$0xf]
          %v3847 = vld [vmem:[%s11 + $0x58] sm:$0xf]
          %v3848 = vld [vmem:[%s11 + $0x5c] sm:$0xf]
          %v3849 = vld [vmem:[%s11 + $0x60] sm:$0xf]
          %v3850 = vld [vmem:[%s11 + $0x64] sm:$0xf]
          %v3851 = vld [vmem:[%s11 + $0x68] sm:$0xf]
          %v3852 = vld [vmem:[%s11 + $0x6c] sm:$0xf]
          %v3853 = vld [vmem:[%s11 + $0x70] sm:$0xf]
          %v3854 = vld [vmem:[%s11 + $0x74] sm:$0xf]
          %v3855 = vld [vmem:[%s11 + $0x78] sm:$0xf]
          %v3856 = vld [vmem:[%s11 + $0x7c] sm:$0xf]
          %v3857 = vunpack.c.l.bf16 %v3825
          %v3858 = vunpack.c.l.bf16 %v3826
          %v3859 = vunpack.c.l.bf16 %v3827
          %v3860 = vunpack.c.l.bf16 %v3828
          %v3861 = vunpack.c.l.bf16 %v3829
          %v3862 = vunpack.c.l.bf16 %v3830
          %v3863 = vunpack.c.l.bf16 %v3831
          %v3864 = vunpack.c.l.bf16 %v3832
          %v3865 = vunpack.c.l.bf16 %v3833
          %v3866 = vunpack.c.l.bf16 %v3834
          %v3867 = vunpack.c.l.bf16 %v3835
          %v3868 = vunpack.c.l.bf16 %v3836
          %v3869 = vunpack.c.l.bf16 %v3837
          %v3870 = vunpack.c.l.bf16 %v3838
          %v3871 = vunpack.c.l.bf16 %v3839
          %v3872 = vunpack.c.l.bf16 %v3840
          %v3873 = vunpack.c.l.bf16 %v3841
          %v3874 = vunpack.c.l.bf16 %v3842
          %v3875 = vunpack.c.l.bf16 %v3843
          %v3876 = vunpack.c.l.bf16 %v3844
          %v3877 = vunpack.c.l.bf16 %v3845
          %v3878 = vunpack.c.l.bf16 %v3846
          %v3879 = vunpack.c.l.bf16 %v3847
          %v3880 = vunpack.c.l.bf16 %v3848
          %v3881 = vunpack.c.l.bf16 %v3849
          %v3882 = vunpack.c.l.bf16 %v3850
          %v3883 = vunpack.c.l.bf16 %v3851
          %v3884 = vunpack.c.l.bf16 %v3852
          %v3885 = vunpack.c.l.bf16 %v3853
          %v3886 = vunpack.c.l.bf16 %v3854
          %v3887 = vunpack.c.l.bf16 %v3855
          %v3888 = vunpack.c.l.bf16 %v3856
          %v3889 = vld [vmem:[%s12] sm:$0x1]
          %v3891 = vperm.slane %v3889, 0
          %3893 = vmatpush.msra.mxu0 %v3872
          %3894 = vmatpush.msra.mxu0 %v3871
          %3895 = vmatpush.msra.mxu0 %v3870
          %3896 = vmatpush.msra.mxu0 %v3869
          %3897 = vmatpush.msra.mxu0 %v3868
          %3898 = vmatpush.msra.mxu0 %v3867
          %3899 = vmatpush.msra.mxu0 %v3866
          %3900 = vmatpush.msra.mxu0 %v3865
          %3901 = vmatpush.msra.mxu0 %v3864
          %3902 = vmatpush.msra.mxu0 %v3863
          %3903 = vmatpush.msra.mxu0 %v3862
          %3904 = vmatpush.msra.mxu0 %v3861
          %3905 = vmatpush.msra.mxu0 %v3860
          %3906 = vmatpush.msra.mxu0 %v3859
          %3907 = vmatpush.msra.mxu0 %v3858
          %3908 = vmatpush.msra.mxu0 %v3857
          %3909 = vmatmul.f32.gmra.mxu0 %v3823
          %v3910 = vpop.f32.mrf.mxu0
          %v3911 = vadd.f32 %v3891, %v3910
          %3912 = vdwg.mxu0
          %3913 = vmatpush.msra.mxu0 %v3888
          %3914 = vmatpush.msra.mxu0 %v3887
          %3915 = vmatpush.msra.mxu0 %v3886
          %3916 = vmatpush.msra.mxu0 %v3885
          %3917 = vmatpush.msra.mxu0 %v3884
          %3918 = vmatpush.msra.mxu0 %v3883
          %3919 = vmatpush.msra.mxu0 %v3882
          %3920 = vmatpush.msra.mxu0 %v3881
          %3921 = vmatpush.msra.mxu0 %v3880
          %3922 = vmatpush.msra.mxu0 %v3879
          %3923 = vmatpush.msra.mxu0 %v3878
          %3924 = vmatpush.msra.mxu0 %v3877
          %3925 = vmatpush.msra.mxu0 %v3876
          %3926 = vmatpush.msra.mxu0 %v3875
          %3927 = vmatpush.msra.mxu0 %v3874
          %3928 = vmatpush.msra.mxu0 %v3873
          %3929 = vmatmul.f32.gmra.mxu0 %v3824
          %v3930 = vpop.f32.mrf.mxu0
          %v3931 = vadd.f32 %v3911, %v3930
          %3932 = vdwg.mxu0
          %vm3933 = vcmask 66560
          %3934 = vst.msk [vmem:[#allocation10] sm:$0x3] %vm3933, %v3931
        $region130: #{tpu_custom_call.1} parent=105 // pred_fallthru
          _
        // Predicated region
        $region131: #{tpu_custom_call.1} parent=105 // pred_check
          %p3935 = pneg %p337
        $region132: #{tpu_custom_call.1} parent=105 // pred_check_branch
          %3937 = sbr.rel (%p3935) target = $region134
        $region133: #{tpu_custom_call.1} parent=105 // pred_region
          %3939 = vsyncadd [#allocation6], 0
          %s3940 = smul.addr %s31, 2
          %s3941 = scalar_lea.hbm %s13, %s3940
          %s3943 = sshll.u32 [#allocation10], 4
          %s3944 = int_to_ptr.vmem [resolvable:$true] %s3943
          %s3945 = sshll.u32 %s3941, 4
          %s3946 = int_to_ptr.hbm [resolvable:$true] %s3945
          %3948 = dma.vmem_to_hbm [thread:$0]  %s3944, 32, %s3946, [#allocation6]
        $region134: #{tpu_custom_call.1} parent=105 // pred_fallthru
          _
        // Predicated region
        $region135: #{tpu_custom_call.1} parent=105 // pred_check
          %p3949 = pneg %p337
        $region136: #{tpu_custom_call.1} parent=105 // pred_check_branch
          %3951 = sbr.rel (%p3949) target = $region138
        $region137: #{tpu_custom_call.1} parent=105 // pred_region
          %3953 = dma.done [#allocation6], 32
        $region138: #{tpu_custom_call.1} parent=105 // pred_fallthru
          _
      $region106: #{tpu_custom_call.1} parent=5 // pred_fallthru
        _
      %p3954 = scmp.le.s32.totalorder 2, %s22
      // Predicated region
      $region139: #{tpu_custom_call.1} parent=5 // pred_check
        %p3955 = pneg %p3954
      $region140: #{tpu_custom_call.1} parent=5 // pred_check_branch
        %3957 = sbr.rel (%p3955) target = $region142
      $region141: #{tpu_custom_call.1} parent=5 // pred_region
        %s3958 = ssub.s32 %s22, 2
      $region142: #{tpu_custom_call.1} parent=5 // pred_fallthru
        _
    $region6: #{tpu_custom_call.1} parent=1 // loop_footer
      %s26 = sadd.s32 1, %s22
    $region7: #{tpu_custom_call.1} parent=1 // loop_footer_branch
      %21 = sbr.rel target = $region3
    $region8: #{tpu_custom_call.1} parent=1 // loop_exit
      _
    %3959 = vsyncpa [#allocation5], 1
    %s3960 = scalar_lea.sflag [#allocation5], 1
    %3961 = vsyncpa %s3960, 1
    %3962 = vsyncpa [#allocation8], 1
    %3963 = vsyncpa [#allocation6], 1
    %s3964 = scalar_lea.sflag [#allocation6], 1
    %3965 = vsyncpa %s3964, 1

</llo_original>
